<compile_context>
chip_gen: v6e
topology: v6e:2x2x1
jax: 0.10.0
libtpu: 0.0.40
codegen_flags: <defaults>
</compile_context>

<pallas_src>
import math
import functools

import jax
import jax.numpy as jnp
from jax.experimental import pallas as pl

NEG = -1e9
EPS = 1e-6


# --------------------------- in-kernel helpers --------------------------------

def _rms(x, g):
    return x * jax.lax.rsqrt(jnp.mean(x * x, axis=-1, keepdims=True) + EPS) * g


def _softmax_rows(s):
    m = jnp.max(s, axis=-1, keepdims=True)
    p = jnp.exp(s - m)
    return p / jnp.sum(p, axis=-1, keepdims=True)


def _mha_proj(q, k, v, bias, wo, num_heads, scale, cdt):
    """Multi-head attention with the output projection folded in.

    q: (M, A); k, v: (N, A); bias: (M, N) additive f32; wo: (A, A) bf16.
    Per head: softmax(Q_h K_h^T * scale + bias) V_h @ Wo[h*Dh:(h+1)*Dh, :],
    summed over heads (no lane concatenation). bf16 MXU inputs, f32 accumulation.
    """
    A = q.shape[-1]
    Dh = A // num_heads
    qb, kb, vb = q.astype(cdt), k.astype(cdt), v.astype(cdt)
    acc = None
    for h in range(num_heads):                       # static unroll over heads
        lo, hi = h * Dh, (h + 1) * Dh
        s = jax.lax.dot_general(qb[:, lo:hi], kb[:, lo:hi],
                                (((1,), (1,)), ((), ())),
                                preferred_element_type=jnp.float32) * scale + bias
        p = _softmax_rows(s)
        oh = jnp.dot(p.astype(cdt), vb[:, lo:hi],
                     preferred_element_type=jnp.float32)
        contrib = jnp.dot(oh.astype(cdt), wo[lo:hi, :],
                          preferred_element_type=jnp.float32)
        acc = contrib if acc is None else acc + contrib
    return acc                                       # (M, A) f32


# --------------------------- the fused kernel ----------------------------------

def _tiger_fused_kernel(
        enc_in_ref, dec_in_ref, enc_bias_ref, self_bias_ref, cross_bias_ref,
        tgt_ref, lw_ref,
        gctx_ref, wctx_ref, gdec_ref, wdec_ref,
        e_wqkv, e_bqkv, e_wo, e_bo, e_g1, e_w1, e_b1, e_w2, e_b2, e_g2,
        enc_gn_ref,
        d_swqkv, d_sbqkv, d_swo, d_sbo, d_g1,
        d_cwq, d_cbq, d_cwkv, d_cbkv, d_cwo, d_cbo, d_g2,
        d_w1, d_b1, d_w2, d_b2, d_g3,
        dec_gn_ref, head_w_ref,
        logits_ref, loss_ref,
        *, num_heads, n_enc, n_dec, V):
    A = wctx_ref.shape[1]
    cdt = wctx_ref.dtype                     # bf16 compute dtype for MXU inputs
    scale = 1.0 / math.sqrt(A // num_heads)

    enc_bias = enc_bias_ref[...]             # (Ms, Ms)  batch-block + key-pad
    self_bias = self_bias_ref[...]           # (Mt, Mt)  batch-block + causal
    cross_bias = cross_bias_ref[...]         # (Mt, Ms)  batch-block + key-pad

    # pre-transformer RMSNorm + in_proj (dropout = identity, eval mode)
    x_enc = jnp.dot(_rms(enc_in_ref[...], gctx_ref[...]).astype(cdt), wctx_ref[...],
                    preferred_element_type=jnp.float32)          # (Ms, A)
    x_dec = jnp.dot(_rms(dec_in_ref[...], gdec_ref[...]).astype(cdt), wdec_ref[...],
                    preferred_element_type=jnp.float32)          # (Mt, A)

    # ---------------- encoder stack (post-norm, ReLU FFN) ----------------
    h = x_enc
    for l in range(n_enc):
        hb = h.astype(cdt)
        qkv = jnp.dot(hb, e_wqkv[l], preferred_element_type=jnp.float32) + e_bqkv[l]
        attn = _mha_proj(qkv[:, :A], qkv[:, A:2 * A], qkv[:, 2 * A:], enc_bias,
                         e_wo[l], num_heads, scale, cdt) + e_bo[l]
        h1 = _rms(h + attn, e_g1[l])
        f = jnp.dot(h1.astype(cdt), e_w1[l], preferred_element_type=jnp.float32) + e_b1[l]
        f = jnp.maximum(f, 0.0)
        f = jnp.dot(f.astype(cdt), e_w2[l], preferred_element_type=jnp.float32) + e_b2[l]
        h = _rms(h1 + f, e_g2[l])
    memory = _rms(h, enc_gn_ref[...])                             # (Ms, A)
    memb = memory.astype(cdt)

    # ---------------- decoder stack ----------------
    g = x_dec
    for l in range(n_dec):
        gb = g.astype(cdt)
        # masked self-attention
        qkv = jnp.dot(gb, d_swqkv[l], preferred_element_type=jnp.float32) + d_sbqkv[l]
        attn = _mha_proj(qkv[:, :A], qkv[:, A:2 * A], qkv[:, 2 * A:], self_bias,
                         d_swo[l], num_heads, scale, cdt) + d_sbo[l]
        h1 = _rms(g + attn, d_g1[l])
        # cross-attention over encoder memory
        h1b = h1.astype(cdt)
        q = jnp.dot(h1b, d_cwq[l], preferred_element_type=jnp.float32) + d_cbq[l]
        kv = jnp.dot(memb, d_cwkv[l], preferred_element_type=jnp.float32) + d_cbkv[l]
        cattn = _mha_proj(q, kv[:, :A], kv[:, A:], cross_bias,
                          d_cwo[l], num_heads, scale, cdt) + d_cbo[l]
        h2 = _rms(h1 + cattn, d_g2[l])
        # FFN
        f = jnp.dot(h2.astype(cdt), d_w1[l], preferred_element_type=jnp.float32) + d_b1[l]
        f = jnp.maximum(f, 0.0)
        f = jnp.dot(f.astype(cdt), d_w2[l], preferred_element_type=jnp.float32) + d_b2[l]
        g = _rms(h2 + f, d_g3[l])

    # ---------------- final norm + output head + cross-entropy ----------------
    xn = _rms(g, dec_gn_ref[...])
    logits = jnp.dot(xn.astype(cdt), head_w_ref[...],
                     preferred_element_type=jnp.float32)          # (Mt, Vp) lane-dense
    logits_ref[...] = logits

    cols = jax.lax.broadcasted_iota(jnp.int32, logits.shape, 1)
    logit_m = jnp.where(cols < V, logits, NEG)                    # mask padded vocab cols
    m = jnp.max(logit_m, axis=-1, keepdims=True)
    lse = m + jnp.log(jnp.sum(jnp.exp(logit_m - m), axis=-1, keepdims=True))
    picked = jnp.sum(jnp.where(cols == tgt_ref[...], logits, 0.0),
                     axis=-1, keepdims=True)
    nll = lse - picked                                            # (Mt, 1)
    # loss = sum_rows(nll * weight); weight already folds the [: -1] position
    # mask and the 1/B batch mean.  Contraction over rows -> (1, 1).
    loss_ref[...] = jax.lax.dot_general(nll, lw_ref[...],
                                        (((0,), (0,)), ((), ())),
                                        preferred_element_type=jnp.float32)


# --------------------------- forward pass ---------------------------------------

def tiger_forward(params, cfg, user_input_ids, item_input_ids, token_type_ids,
                  target_input_ids, target_token_type_ids, seq_mask):
    D = cfg["embedding_dim"]
    A = cfg["attn_dim"]
    H = cfg["num_heads"]
    V = cfg["num_item_embeddings"]
    B, N = item_input_ids.shape

    # embeddings (gathers are glue; plain JAX)
    user_emb = params["user_emb"][user_input_ids]                          # (B, 1, D)
    item_emb = params["sem_emb"][token_type_ids * V + item_input_ids]      # (B, N, D)
    _pos_emb = params["pos_emb"][jnp.arange(N)[None, :]]                   # computed, unused (as in reference)
    encoder_input = jnp.concatenate([user_emb, item_emb], axis=1)          # (B, S, D)

    target_emb = params["sem_emb"][target_token_type_ids * V + target_input_ids]
    _dec_pos_emb = params["dec_pos_emb"][target_token_type_ids]            # computed, unused (as in reference)
    bos = jnp.broadcast_to(params["bos"][None, None, :], (B, 1, D))
    decoder_input = jnp.concatenate([bos, target_emb], axis=1)             # (B, Tq, D)

    S = N + 1
    Tq = decoder_input.shape[1]
    Ms, Mt = B * S, B * Tq

    # tiny additive-bias matrices (no per-head broadcasts, no in-kernel int div)
    encoder_mask = jnp.concatenate(
        [jnp.ones((B, 1), dtype=seq_mask.dtype), seq_mask], axis=1)        # (B, S)
    kp = jnp.where(encoder_mask == 0, NEG, 0.0).astype(jnp.float32).reshape(1, Ms)

    bidx_s = jnp.arange(Ms, dtype=jnp.int32) // S                          # batch id per enc row
    bidx_t = jnp.arange(Mt, dtype=jnp.int32) // Tq                         # batch id per dec row
    tpos = jnp.arange(Mt, dtype=jnp.int32) % Tq                            # position within dec seq

    enc_bias = jnp.where(bidx_s[:, None] == bidx_s[None, :], 0.0, NEG).astype(jnp.float32) + kp
    self_bias = jnp.where((bidx_t[:, None] == bidx_t[None, :]) &
                          (tpos[None, :] <= tpos[:, None]),
                          0.0, NEG).astype(jnp.float32)
    cross_bias = jnp.where(bidx_t[:, None] == bidx_s[None, :], 0.0, NEG).astype(jnp.float32) + kp

    T = target_input_ids.shape[1]
    tgt_full = jnp.concatenate(
        [target_input_ids.astype(jnp.int32),
         jnp.zeros((B, Tq - T), jnp.int32)], axis=1).reshape(Mt, 1)        # (B*Tq, 1)
    # positions [:-1] contribute; last decoder position masked out; 1/B = batch mean
    loss_w = jnp.where(tpos < Tq - 1, 1.0 / B, 0.0).astype(jnp.float32).reshape(Mt, 1)

    e, d = params["enc"], params["dec"]
    Vp = params["output_head_w"].shape[1]
    kernel = functools.partial(_tiger_fused_kernel, num_heads=H, V=V,
                               n_enc=e["wqkv"].shape[0], n_dec=d["swqkv"].shape[0])

    logits_pad, loss2d = pl.pallas_call(
        kernel,
        out_shape=(jax.ShapeDtypeStruct((Mt, Vp), jnp.float32),
                   jax.ShapeDtypeStruct((1, 1), jnp.float32)),
    )(encoder_input.reshape(Ms, D), decoder_input.reshape(Mt, D),
      enc_bias, self_bias, cross_bias, tgt_full, loss_w,
      params["norm_context"], params["in_proj_context_w"],
      params["norm"], params["in_proj_w"],
      e["wqkv"], e["bqkv"], e["wo"], e["bo"], e["g1"],
      e["w1"], e["b1"], e["w2"], e["b2"], e["g2"],
      params["encoder_norm"],
      d["swqkv"], d["sbqkv"], d["swo"], d["sbo"], d["g1"],
      d["cwq"], d["cbq"], d["cwkv"], d["cbkv"], d["cwo"], d["cbo"], d["g2"],
      d["w1"], d["b1"], d["w2"], d["b2"], d["g3"],
      params["decoder_norm"], params["output_head_w"])

    logits = logits_pad[:, :V].reshape(B, Tq, V)
    loss = loss2d[0, 0]
    return logits, loss


# --------------------------- deterministic init ----------------------------------

def init_params(key, cfg):
    D, A = cfg["embedding_dim"], cfg["attn_dim"]
    V, U, T = cfg["num_item_embeddings"], cfg["num_user_embeddings"], cfg["sem_id_dim"]
    F = cfg["dim_feedforward"]
    L = cfg["n_layers"] // 2
    keys = iter(jax.random.split(key, 1024))

    WDT = jnp.bfloat16   # MXU-matmul weights in bf16; biases/norms/activations f32

    def w(shape, scale=0.02, dtype=jnp.float32):
        return (scale * jax.random.normal(next(keys), shape)).astype(dtype)

    def zeros(shape):
        return jnp.zeros(shape, jnp.float32)

    def ones(shape):
        return jnp.ones(shape, jnp.float32)

    # encoder layers, stacked along a leading layer axis
    enc = dict(
        wqkv=w((L, A, 3 * A), dtype=WDT), bqkv=zeros((L, 1, 3 * A)),
        wo=w((L, A, A), dtype=WDT), bo=zeros((L, 1, A)),
        g1=ones((L, 1, A)),
        w1=w((L, A, F), dtype=WDT), b1=zeros((L, 1, F)),
        w2=w((L, F, A), dtype=WDT), b2=zeros((L, 1, A)),
        g2=ones((L, 1, A)))

    # decoder layers, stacked along a leading layer axis
    dec = dict(
        swqkv=w((L, A, 3 * A), dtype=WDT), sbqkv=zeros((L, 1, 3 * A)),
        swo=w((L, A, A), dtype=WDT), sbo=zeros((L, 1, A)),
        g1=ones((L, 1, A)),
        cwq=w((L, A, A), dtype=WDT), cbq=zeros((L, 1, A)),
        cwkv=w((L, A, 2 * A), dtype=WDT), cbkv=zeros((L, 1, 2 * A)),
        cwo=w((L, A, A), dtype=WDT), cbo=zeros((L, 1, A)),
        g2=ones((L, 1, A)),
        w1=w((L, A, F), dtype=WDT), b1=zeros((L, 1, F)),
        w2=w((L, F, A), dtype=WDT), b2=zeros((L, 1, A)),
        g3=ones((L, 1, A)))

    # output head padded to a multiple of 128 vocab columns (lane-dense store)
    Vp = max(128, ((V + 127) // 128) * 128)
    head = jnp.zeros((A, Vp), WDT).at[:, :V].set(w((A, V), dtype=WDT))

    return dict(
        bos=w((D,), 1.0),
        norm=ones((1, D)),
        norm_context=ones((1, D)),
        sem_emb=w((T * V, D)),
        user_emb=w((U, D)),
        pos_emb=w((cfg["max_pos"], D)),
        dec_pos_emb=w((T, D)),
        in_proj_w=w((D, A), dtype=WDT),
        in_proj_context_w=w((D, A), dtype=WDT),
        enc=enc, dec=dec,
        encoder_norm=ones((1, A)),
        decoder_norm=ones((1, A)),
        output_head_w=head,
        # out_proj / output_heads exist in __init__ but are unused in forward.
    )


# --------------------------- main -------------------------------------------------

if __name__ == "__main__":
    cfg = dict(embedding_dim=32, attn_dim=32, dropout=0.0, num_heads=2, n_layers=2,
               num_item_embeddings=64, num_user_embeddings=8, sem_id_dim=4,
               max_pos=64, dim_feedforward=1024)

    key = jax.random.PRNGKey(0)
    pk, dk = jax.random.split(key)
    params = init_params(pk, cfg)

    B, N, T = 2, 8, cfg["sem_id_dim"]
    ks = jax.random.split(dk, 4)
    user_input_ids = jax.random.randint(ks[0], (B, 1), 0, cfg["num_user_embeddings"])
    item_input_ids = jax.random.randint(ks[1], (B, N), 0, cfg["num_item_embeddings"])
    token_type_ids = jnp.tile(jnp.arange(T, dtype=jnp.int32)[None, :], (B, N // T))
    target_input_ids = jax.random.randint(ks[2], (B, T), 0, cfg["num_item_embeddings"])
    target_token_type_ids = jnp.tile(jnp.arange(T, dtype=jnp.int32)[None, :], (B, 1))
    seq_mask = jnp.ones((B, N), dtype=jnp.int32).at[1, -2:].set(0)

    @jax.jit
    def fwd(params, user_input_ids, item_input_ids, token_type_ids,
            target_input_ids, target_token_type_ids, seq_mask):
        return tiger_forward(params, cfg, user_input_ids, item_input_ids,
                             token_type_ids, target_input_ids,
                             target_token_type_ids, seq_mask)

    logits, loss = fwd(params, user_input_ids, item_input_ids, token_type_ids,
                       target_input_ids, target_token_type_ids, seq_mask)
    jax.block_until_ready((logits, loss))
    assert logits.shape == (B, T + 1, cfg["num_item_embeddings"])
    assert loss.shape == ()
    assert bool(jnp.isfinite(loss))
    print("KERNEL_OK")
</pallas_src>

<mosaic_0001>
module attributes {stable_mosaic.version = 11 : i64} {
  func.func @_tiger_fused_kernel(%arg0: memref<18x32xf32, #tpu.memory_space<vmem>>, %arg1: memref<10x32xf32, #tpu.memory_space<vmem>>, %arg2: memref<18x18xf32, #tpu.memory_space<vmem>>, %arg3: memref<10x10xf32, #tpu.memory_space<vmem>>, %arg4: memref<10x18xf32, #tpu.memory_space<vmem>>, %arg5: memref<10x1xi32, #tpu.memory_space<vmem>>, %arg6: memref<10x1xf32, #tpu.memory_space<vmem>>, %arg7: memref<1x32xf32, #tpu.memory_space<vmem>>, %arg8: memref<32x32xbf16, #tpu.memory_space<vmem>>, %arg9: memref<1x32xf32, #tpu.memory_space<vmem>>, %arg10: memref<32x32xbf16, #tpu.memory_space<vmem>>, %arg11: memref<1x32x96xbf16, #tpu.memory_space<vmem>>, %arg12: memref<1x1x96xf32, #tpu.memory_space<vmem>>, %arg13: memref<1x32x32xbf16, #tpu.memory_space<vmem>>, %arg14: memref<1x1x32xf32, #tpu.memory_space<vmem>>, %arg15: memref<1x1x32xf32, #tpu.memory_space<vmem>>, %arg16: memref<1x32x1024xbf16, #tpu.memory_space<vmem>>, %arg17: memref<1x1x1024xf32, #tpu.memory_space<vmem>>, %arg18: memref<1x1024x32xbf16, #tpu.memory_space<vmem>>, %arg19: memref<1x1x32xf32, #tpu.memory_space<vmem>>, %arg20: memref<1x1x32xf32, #tpu.memory_space<vmem>>, %arg21: memref<1x32xf32, #tpu.memory_space<vmem>>, %arg22: memref<1x32x96xbf16, #tpu.memory_space<vmem>>, %arg23: memref<1x1x96xf32, #tpu.memory_space<vmem>>, %arg24: memref<1x32x32xbf16, #tpu.memory_space<vmem>>, %arg25: memref<1x1x32xf32, #tpu.memory_space<vmem>>, %arg26: memref<1x1x32xf32, #tpu.memory_space<vmem>>, %arg27: memref<1x32x32xbf16, #tpu.memory_space<vmem>>, %arg28: memref<1x1x32xf32, #tpu.memory_space<vmem>>, %arg29: memref<1x32x64xbf16, #tpu.memory_space<vmem>>, %arg30: memref<1x1x64xf32, #tpu.memory_space<vmem>>, %arg31: memref<1x32x32xbf16, #tpu.memory_space<vmem>>, %arg32: memref<1x1x32xf32, #tpu.memory_space<vmem>>, %arg33: memref<1x1x32xf32, #tpu.memory_space<vmem>>, %arg34: memref<1x32x1024xbf16, #tpu.memory_space<vmem>>, %arg35: memref<1x1x1024xf32, #tpu.memory_space<vmem>>, %arg36: memref<1x1024x32xbf16, #tpu.memory_space<vmem>>, %arg37: memref<1x1x32xf32, #tpu.memory_space<vmem>>, %arg38: memref<1x1x32xf32, #tpu.memory_space<vmem>>, %arg39: memref<1x32xf32, #tpu.memory_space<vmem>>, %arg40: memref<32x128xbf16, #tpu.memory_space<vmem>>, %arg41: memref<10x128xf32, #tpu.memory_space<vmem>>, %arg42: memref<1x1xf32, #tpu.memory_space<vmem>>) attributes {dimension_semantics = [], scalar_prefetch = 0 : i64, scratch_operands = 0 : i64, tpu.core_type = #tpu.core_type<tc>} {
    %c0 = arith.constant 0 : index
    %c0_0 = arith.constant 0 : index
    %0 = vector.load %arg2[%c0, %c0_0] : memref<18x18xf32, #tpu.memory_space<vmem>>, vector<18x18xf32>
    %c0_1 = arith.constant 0 : index
    %c0_2 = arith.constant 0 : index
    %1 = vector.load %arg3[%c0_1, %c0_2] : memref<10x10xf32, #tpu.memory_space<vmem>>, vector<10x10xf32>
    %c0_3 = arith.constant 0 : index
    %c0_4 = arith.constant 0 : index
    %2 = vector.load %arg4[%c0_3, %c0_4] : memref<10x18xf32, #tpu.memory_space<vmem>>, vector<10x18xf32>
    %c0_5 = arith.constant 0 : index
    %c0_6 = arith.constant 0 : index
    %3 = vector.load %arg0[%c0_5, %c0_6] : memref<18x32xf32, #tpu.memory_space<vmem>>, vector<18x32xf32>
    %c0_7 = arith.constant 0 : index
    %c0_8 = arith.constant 0 : index
    %4 = vector.load %arg7[%c0_7, %c0_8] : memref<1x32xf32, #tpu.memory_space<vmem>>, vector<1x32xf32>
    %5 = arith.mulf %3, %3 : vector<18x32xf32>
    %cst = arith.constant dense<0.000000e+00> : vector<18xf32>
    %6 = vector.multi_reduction <add>, %5, %cst [1] : vector<18x32xf32> to vector<18xf32>
    %7 = vector.shape_cast %6 : vector<18xf32> to vector<18x1xf32>
    %cst_9 = arith.constant 3.200000e+01 : f32
    %8 = vector.broadcast %cst_9 : f32 to vector<18x1xf32>
    %9 = arith.divf %7, %8 : vector<18x1xf32>
    %cst_10 = arith.constant 9.99999997E-7 : f32
    %10 = vector.broadcast %cst_10 : f32 to vector<18x1xf32>
    %11 = arith.addf %9, %10 : vector<18x1xf32>
    %12 = math.rsqrt %11 : vector<18x1xf32>
    %13 = vector.broadcast %12 : vector<18x1xf32> to vector<18x32xf32>
    %14 = arith.mulf %3, %13 : vector<18x32xf32>
    %15 = vector.broadcast %4 : vector<1x32xf32> to vector<18x32xf32>
    %16 = arith.mulf %14, %15 : vector<18x32xf32>
    %17 = arith.truncf %16 : vector<18x32xf32> to vector<18x32xbf16>
    %c0_11 = arith.constant 0 : index
    %c0_12 = arith.constant 0 : index
    %18 = vector.load %arg8[%c0_11, %c0_12] : memref<32x32xbf16, #tpu.memory_space<vmem>>, vector<32x32xbf16>
    %cst_13 = arith.constant dense<0.000000e+00> : vector<18x32xf32>
    %19 = tpu.matmul %17, %18, %cst_13 {dimension_numbers = #tpu.dot_dimension_numbers<[1], [0], [0], [1], [0, 0, 1, 1], [], []>} : vector<18x32xbf16>, vector<32x32xbf16>, vector<18x32xf32> -> vector<18x32xf32>
    %c0_14 = arith.constant 0 : index
    %c0_15 = arith.constant 0 : index
    %20 = vector.load %arg1[%c0_14, %c0_15] : memref<10x32xf32, #tpu.memory_space<vmem>>, vector<10x32xf32>
    %c0_16 = arith.constant 0 : index
    %c0_17 = arith.constant 0 : index
    %21 = vector.load %arg9[%c0_16, %c0_17] : memref<1x32xf32, #tpu.memory_space<vmem>>, vector<1x32xf32>
    %22 = arith.mulf %20, %20 : vector<10x32xf32>
    %cst_18 = arith.constant dense<0.000000e+00> : vector<10xf32>
    %23 = vector.multi_reduction <add>, %22, %cst_18 [1] : vector<10x32xf32> to vector<10xf32>
    %24 = vector.shape_cast %23 : vector<10xf32> to vector<10x1xf32>
    %cst_19 = arith.constant 3.200000e+01 : f32
    %25 = vector.broadcast %cst_19 : f32 to vector<10x1xf32>
    %26 = arith.divf %24, %25 : vector<10x1xf32>
    %cst_20 = arith.constant 9.99999997E-7 : f32
    %27 = vector.broadcast %cst_20 : f32 to vector<10x1xf32>
    %28 = arith.addf %26, %27 : vector<10x1xf32>
    %29 = math.rsqrt %28 : vector<10x1xf32>
    %30 = vector.broadcast %29 : vector<10x1xf32> to vector<10x32xf32>
    %31 = arith.mulf %20, %30 : vector<10x32xf32>
    %32 = vector.broadcast %21 : vector<1x32xf32> to vector<10x32xf32>
    %33 = arith.mulf %31, %32 : vector<10x32xf32>
    %34 = arith.truncf %33 : vector<10x32xf32> to vector<10x32xbf16>
    %c0_21 = arith.constant 0 : index
    %c0_22 = arith.constant 0 : index
    %35 = vector.load %arg10[%c0_21, %c0_22] : memref<32x32xbf16, #tpu.memory_space<vmem>>, vector<32x32xbf16>
    %cst_23 = arith.constant dense<0.000000e+00> : vector<10x32xf32>
    %36 = tpu.matmul %34, %35, %cst_23 {dimension_numbers = #tpu.dot_dimension_numbers<[1], [0], [0], [1], [0, 0, 1, 1], [], []>} : vector<10x32xbf16>, vector<32x32xbf16>, vector<10x32xf32> -> vector<10x32xf32>
    %37 = arith.truncf %19 : vector<18x32xf32> to vector<18x32xbf16>
    %c0_24 = arith.constant 0 : index
    %c0_25 = arith.constant 0 : index
    %c0_26 = arith.constant 0 : index
    %38 = vector.load %arg11[%c0_24, %c0_25, %c0_26] : memref<1x32x96xbf16, #tpu.memory_space<vmem>>, vector<1x32x96xbf16>
    %39 = vector.shape_cast %38 : vector<1x32x96xbf16> to vector<32x96xbf16>
    %cst_27 = arith.constant dense<0.000000e+00> : vector<18x96xf32>
    %40 = tpu.matmul %37, %39, %cst_27 {dimension_numbers = #tpu.dot_dimension_numbers<[1], [0], [0], [1], [0, 0, 1, 1], [], []>} : vector<18x32xbf16>, vector<32x96xbf16>, vector<18x96xf32> -> vector<18x96xf32>
    %c0_28 = arith.constant 0 : index
    %c0_29 = arith.constant 0 : index
    %c0_30 = arith.constant 0 : index
    %41 = vector.load %arg12[%c0_28, %c0_29, %c0_30] : memref<1x1x96xf32, #tpu.memory_space<vmem>>, vector<1x1x96xf32>
    %42 = vector.shape_cast %41 : vector<1x1x96xf32> to vector<1x96xf32>
    %43 = vector.broadcast %42 : vector<1x96xf32> to vector<18x96xf32>
    %44 = arith.addf %40, %43 : vector<18x96xf32>
    %45 = vector.extract_strided_slice %44 {offsets = [0, 0], sizes = [18, 32], strides = [1, 1]} : vector<18x96xf32> to vector<18x32xf32>
    %46 = vector.extract_strided_slice %44 {offsets = [0, 32], sizes = [18, 32], strides = [1, 1]} : vector<18x96xf32> to vector<18x32xf32>
    %47 = vector.extract_strided_slice %44 {offsets = [0, 64], sizes = [18, 32], strides = [1, 1]} : vector<18x96xf32> to vector<18x32xf32>
    %c0_31 = arith.constant 0 : index
    %c0_32 = arith.constant 0 : index
    %c0_33 = arith.constant 0 : index
    %48 = vector.load %arg13[%c0_31, %c0_32, %c0_33] : memref<1x32x32xbf16, #tpu.memory_space<vmem>>, vector<1x32x32xbf16>
    %49 = vector.shape_cast %48 : vector<1x32x32xbf16> to vector<32x32xbf16>
    %50 = arith.truncf %45 : vector<18x32xf32> to vector<18x32xbf16>
    %51 = arith.truncf %46 : vector<18x32xf32> to vector<18x32xbf16>
    %52 = arith.truncf %47 : vector<18x32xf32> to vector<18x32xbf16>
    %53 = vector.extract_strided_slice %50 {offsets = [0, 0], sizes = [18, 16], strides = [1, 1]} : vector<18x32xbf16> to vector<18x16xbf16>
    %54 = vector.extract_strided_slice %51 {offsets = [0, 0], sizes = [18, 16], strides = [1, 1]} : vector<18x32xbf16> to vector<18x16xbf16>
    %cst_34 = arith.constant dense<0.000000e+00> : vector<18x18xf32>
    %55 = tpu.matmul %53, %54, %cst_34 {dimension_numbers = #tpu.dot_dimension_numbers<[1], [1], [0], [0], [0, 0, 1, 0], [], []>} : vector<18x16xbf16>, vector<18x16xbf16>, vector<18x18xf32> -> vector<18x18xf32>
    %cst_35 = arith.constant 2.500000e-01 : f32
    %56 = vector.broadcast %cst_35 : f32 to vector<18x18xf32>
    %57 = arith.mulf %55, %56 : vector<18x18xf32>
    %58 = arith.addf %57, %0 : vector<18x18xf32>
    %cst_36 = arith.constant dense<0xFF800000> : vector<18xf32>
    %59 = vector.multi_reduction <maximumf>, %58, %cst_36 [1] : vector<18x18xf32> to vector<18xf32>
    %60 = vector.shape_cast %59 : vector<18xf32> to vector<18x1xf32>
    %61 = vector.broadcast %60 : vector<18x1xf32> to vector<18x18xf32>
    %62 = arith.subf %58, %61 : vector<18x18xf32>
    %63 = math.exp %62 : vector<18x18xf32>
    %cst_37 = arith.constant dense<0.000000e+00> : vector<18xf32>
    %64 = vector.multi_reduction <add>, %63, %cst_37 [1] : vector<18x18xf32> to vector<18xf32>
    %65 = vector.shape_cast %64 : vector<18xf32> to vector<18x1xf32>
    %66 = vector.broadcast %65 : vector<18x1xf32> to vector<18x18xf32>
    %67 = arith.divf %63, %66 : vector<18x18xf32>
    %68 = arith.truncf %67 : vector<18x18xf32> to vector<18x18xbf16>
    %69 = vector.extract_strided_slice %52 {offsets = [0, 0], sizes = [18, 16], strides = [1, 1]} : vector<18x32xbf16> to vector<18x16xbf16>
    %cst_38 = arith.constant dense<0.000000e+00> : vector<18x16xf32>
    %70 = tpu.matmul %68, %69, %cst_38 {dimension_numbers = #tpu.dot_dimension_numbers<[1], [0], [0], [1], [0, 0, 1, 1], [], []>} : vector<18x18xbf16>, vector<18x16xbf16>, vector<18x16xf32> -> vector<18x16xf32>
    %71 = arith.truncf %70 : vector<18x16xf32> to vector<18x16xbf16>
    %72 = vector.extract_strided_slice %49 {offsets = [0, 0], sizes = [16, 32], strides = [1, 1]} : vector<32x32xbf16> to vector<16x32xbf16>
    %cst_39 = arith.constant dense<0.000000e+00> : vector<18x32xf32>
    %73 = tpu.matmul %71, %72, %cst_39 {dimension_numbers = #tpu.dot_dimension_numbers<[1], [0], [0], [1], [0, 0, 1, 1], [], []>} : vector<18x16xbf16>, vector<16x32xbf16>, vector<18x32xf32> -> vector<18x32xf32>
    %74 = vector.extract_strided_slice %50 {offsets = [0, 16], sizes = [18, 16], strides = [1, 1]} : vector<18x32xbf16> to vector<18x16xbf16>
    %75 = vector.extract_strided_slice %51 {offsets = [0, 16], sizes = [18, 16], strides = [1, 1]} : vector<18x32xbf16> to vector<18x16xbf16>
    %cst_40 = arith.constant dense<0.000000e+00> : vector<18x18xf32>
    %76 = tpu.matmul %74, %75, %cst_40 {dimension_numbers = #tpu.dot_dimension_numbers<[1], [1], [0], [0], [0, 0, 1, 0], [], []>} : vector<18x16xbf16>, vector<18x16xbf16>, vector<18x18xf32> -> vector<18x18xf32>
    %cst_41 = arith.constant 2.500000e-01 : f32
    %77 = vector.broadcast %cst_41 : f32 to vector<18x18xf32>
    %78 = arith.mulf %76, %77 : vector<18x18xf32>
    %79 = arith.addf %78, %0 : vector<18x18xf32>
    %cst_42 = arith.constant dense<0xFF800000> : vector<18xf32>
    %80 = vector.multi_reduction <maximumf>, %79, %cst_42 [1] : vector<18x18xf32> to vector<18xf32>
    %81 = vector.shape_cast %80 : vector<18xf32> to vector<18x1xf32>
    %82 = vector.broadcast %81 : vector<18x1xf32> to vector<18x18xf32>
    %83 = arith.subf %79, %82 : vector<18x18xf32>
    %84 = math.exp %83 : vector<18x18xf32>
    %cst_43 = arith.constant dense<0.000000e+00> : vector<18xf32>
    %85 = vector.multi_reduction <add>, %84, %cst_43 [1] : vector<18x18xf32> to vector<18xf32>
    %86 = vector.shape_cast %85 : vector<18xf32> to vector<18x1xf32>
    %87 = vector.broadcast %86 : vector<18x1xf32> to vector<18x18xf32>
    %88 = arith.divf %84, %87 : vector<18x18xf32>
    %89 = arith.truncf %88 : vector<18x18xf32> to vector<18x18xbf16>
    %90 = vector.extract_strided_slice %52 {offsets = [0, 16], sizes = [18, 16], strides = [1, 1]} : vector<18x32xbf16> to vector<18x16xbf16>
    %cst_44 = arith.constant dense<0.000000e+00> : vector<18x16xf32>
    %91 = tpu.matmul %89, %90, %cst_44 {dimension_numbers = #tpu.dot_dimension_numbers<[1], [0], [0], [1], [0, 0, 1, 1], [], []>} : vector<18x18xbf16>, vector<18x16xbf16>, vector<18x16xf32> -> vector<18x16xf32>
    %92 = arith.truncf %91 : vector<18x16xf32> to vector<18x16xbf16>
    %93 = vector.extract_strided_slice %49 {offsets = [16, 0], sizes = [16, 32], strides = [1, 1]} : vector<32x32xbf16> to vector<16x32xbf16>
    %cst_45 = arith.constant dense<0.000000e+00> : vector<18x32xf32>
    %94 = tpu.matmul %92, %93, %cst_45 {dimension_numbers = #tpu.dot_dimension_numbers<[1], [0], [0], [1], [0, 0, 1, 1], [], []>} : vector<18x16xbf16>, vector<16x32xbf16>, vector<18x32xf32> -> vector<18x32xf32>
    %95 = arith.addf %73, %94 : vector<18x32xf32>
    %c0_46 = arith.constant 0 : index
    %c0_47 = arith.constant 0 : index
    %c0_48 = arith.constant 0 : index
    %96 = vector.load %arg14[%c0_46, %c0_47, %c0_48] : memref<1x1x32xf32, #tpu.memory_space<vmem>>, vector<1x1x32xf32>
    %97 = vector.shape_cast %96 : vector<1x1x32xf32> to vector<1x32xf32>
    %98 = vector.broadcast %97 : vector<1x32xf32> to vector<18x32xf32>
    %99 = arith.addf %95, %98 : vector<18x32xf32>
    %100 = arith.addf %19, %99 : vector<18x32xf32>
    %c0_49 = arith.constant 0 : index
    %c0_50 = arith.constant 0 : index
    %c0_51 = arith.constant 0 : index
    %101 = vector.load %arg15[%c0_49, %c0_50, %c0_51] : memref<1x1x32xf32, #tpu.memory_space<vmem>>, vector<1x1x32xf32>
    %102 = vector.shape_cast %101 : vector<1x1x32xf32> to vector<1x32xf32>
    %103 = arith.mulf %100, %100 : vector<18x32xf32>
    %cst_52 = arith.constant dense<0.000000e+00> : vector<18xf32>
    %104 = vector.multi_reduction <add>, %103, %cst_52 [1] : vector<18x32xf32> to vector<18xf32>
    %105 = vector.shape_cast %104 : vector<18xf32> to vector<18x1xf32>
    %cst_53 = arith.constant 3.200000e+01 : f32
    %106 = vector.broadcast %cst_53 : f32 to vector<18x1xf32>
    %107 = arith.divf %105, %106 : vector<18x1xf32>
    %cst_54 = arith.constant 9.99999997E-7 : f32
    %108 = vector.broadcast %cst_54 : f32 to vector<18x1xf32>
    %109 = arith.addf %107, %108 : vector<18x1xf32>
    %110 = math.rsqrt %109 : vector<18x1xf32>
    %111 = vector.broadcast %110 : vector<18x1xf32> to vector<18x32xf32>
    %112 = arith.mulf %100, %111 : vector<18x32xf32>
    %113 = vector.broadcast %102 : vector<1x32xf32> to vector<18x32xf32>
    %114 = arith.mulf %112, %113 : vector<18x32xf32>
    %115 = arith.truncf %114 : vector<18x32xf32> to vector<18x32xbf16>
    %c0_55 = arith.constant 0 : index
    %c0_56 = arith.constant 0 : index
    %c0_57 = arith.constant 0 : index
    %116 = vector.load %arg16[%c0_55, %c0_56, %c0_57] : memref<1x32x1024xbf16, #tpu.memory_space<vmem>>, vector<1x32x1024xbf16>
    %117 = vector.shape_cast %116 : vector<1x32x1024xbf16> to vector<32x1024xbf16>
    %cst_58 = arith.constant dense<0.000000e+00> : vector<18x1024xf32>
    %118 = tpu.matmul %115, %117, %cst_58 {dimension_numbers = #tpu.dot_dimension_numbers<[1], [0], [0], [1], [0, 0, 1, 1], [], []>} : vector<18x32xbf16>, vector<32x1024xbf16>, vector<18x1024xf32> -> vector<18x1024xf32>
    %c0_59 = arith.constant 0 : index
    %c0_60 = arith.constant 0 : index
    %c0_61 = arith.constant 0 : index
    %119 = vector.load %arg17[%c0_59, %c0_60, %c0_61] : memref<1x1x1024xf32, #tpu.memory_space<vmem>>, vector<1x1x1024xf32>
    %120 = vector.shape_cast %119 : vector<1x1x1024xf32> to vector<1x1024xf32>
    %121 = vector.broadcast %120 : vector<1x1024xf32> to vector<18x1024xf32>
    %122 = arith.addf %118, %121 : vector<18x1024xf32>
    %cst_62 = arith.constant 0.000000e+00 : f32
    %123 = vector.broadcast %cst_62 : f32 to vector<18x1024xf32>
    %124 = arith.maximumf %122, %123 : vector<18x1024xf32>
    %125 = arith.truncf %124 : vector<18x1024xf32> to vector<18x1024xbf16>
    %c0_63 = arith.constant 0 : index
    %c0_64 = arith.constant 0 : index
    %c0_65 = arith.constant 0 : index
    %126 = vector.load %arg18[%c0_63, %c0_64, %c0_65] : memref<1x1024x32xbf16, #tpu.memory_space<vmem>>, vector<1x1024x32xbf16>
    %127 = vector.shape_cast %126 : vector<1x1024x32xbf16> to vector<1024x32xbf16>
    %cst_66 = arith.constant dense<0.000000e+00> : vector<18x32xf32>
    %128 = tpu.matmul %125, %127, %cst_66 {dimension_numbers = #tpu.dot_dimension_numbers<[1], [0], [0], [1], [0, 0, 1, 1], [], []>} : vector<18x1024xbf16>, vector<1024x32xbf16>, vector<18x32xf32> -> vector<18x32xf32>
    %c0_67 = arith.constant 0 : index
    %c0_68 = arith.constant 0 : index
    %c0_69 = arith.constant 0 : index
    %129 = vector.load %arg19[%c0_67, %c0_68, %c0_69] : memref<1x1x32xf32, #tpu.memory_space<vmem>>, vector<1x1x32xf32>
    %130 = vector.shape_cast %129 : vector<1x1x32xf32> to vector<1x32xf32>
    %131 = vector.broadcast %130 : vector<1x32xf32> to vector<18x32xf32>
    %132 = arith.addf %128, %131 : vector<18x32xf32>
    %133 = arith.addf %114, %132 : vector<18x32xf32>
    %c0_70 = arith.constant 0 : index
    %c0_71 = arith.constant 0 : index
    %c0_72 = arith.constant 0 : index
    %134 = vector.load %arg20[%c0_70, %c0_71, %c0_72] : memref<1x1x32xf32, #tpu.memory_space<vmem>>, vector<1x1x32xf32>
    %135 = vector.shape_cast %134 : vector<1x1x32xf32> to vector<1x32xf32>
    %136 = arith.mulf %133, %133 : vector<18x32xf32>
    %cst_73 = arith.constant dense<0.000000e+00> : vector<18xf32>
    %137 = vector.multi_reduction <add>, %136, %cst_73 [1] : vector<18x32xf32> to vector<18xf32>
    %138 = vector.shape_cast %137 : vector<18xf32> to vector<18x1xf32>
    %cst_74 = arith.constant 3.200000e+01 : f32
    %139 = vector.broadcast %cst_74 : f32 to vector<18x1xf32>
    %140 = arith.divf %138, %139 : vector<18x1xf32>
    %cst_75 = arith.constant 9.99999997E-7 : f32
    %141 = vector.broadcast %cst_75 : f32 to vector<18x1xf32>
    %142 = arith.addf %140, %141 : vector<18x1xf32>
    %143 = math.rsqrt %142 : vector<18x1xf32>
    %144 = vector.broadcast %143 : vector<18x1xf32> to vector<18x32xf32>
    %145 = arith.mulf %133, %144 : vector<18x32xf32>
    %146 = vector.broadcast %135 : vector<1x32xf32> to vector<18x32xf32>
    %147 = arith.mulf %145, %146 : vector<18x32xf32>
    %c0_76 = arith.constant 0 : index
    %c0_77 = arith.constant 0 : index
    %148 = vector.load %arg21[%c0_76, %c0_77] : memref<1x32xf32, #tpu.memory_space<vmem>>, vector<1x32xf32>
    %149 = arith.mulf %147, %147 : vector<18x32xf32>
    %cst_78 = arith.constant dense<0.000000e+00> : vector<18xf32>
    %150 = vector.multi_reduction <add>, %149, %cst_78 [1] : vector<18x32xf32> to vector<18xf32>
    %151 = vector.shape_cast %150 : vector<18xf32> to vector<18x1xf32>
    %cst_79 = arith.constant 3.200000e+01 : f32
    %152 = vector.broadcast %cst_79 : f32 to vector<18x1xf32>
    %153 = arith.divf %151, %152 : vector<18x1xf32>
    %cst_80 = arith.constant 9.99999997E-7 : f32
    %154 = vector.broadcast %cst_80 : f32 to vector<18x1xf32>
    %155 = arith.addf %153, %154 : vector<18x1xf32>
    %156 = math.rsqrt %155 : vector<18x1xf32>
    %157 = vector.broadcast %156 : vector<18x1xf32> to vector<18x32xf32>
    %158 = arith.mulf %147, %157 : vector<18x32xf32>
    %159 = vector.broadcast %148 : vector<1x32xf32> to vector<18x32xf32>
    %160 = arith.mulf %158, %159 : vector<18x32xf32>
    %161 = arith.truncf %160 : vector<18x32xf32> to vector<18x32xbf16>
    %162 = arith.truncf %36 : vector<10x32xf32> to vector<10x32xbf16>
    %c0_81 = arith.constant 0 : index
    %c0_82 = arith.constant 0 : index
    %c0_83 = arith.constant 0 : index
    %163 = vector.load %arg22[%c0_81, %c0_82, %c0_83] : memref<1x32x96xbf16, #tpu.memory_space<vmem>>, vector<1x32x96xbf16>
    %164 = vector.shape_cast %163 : vector<1x32x96xbf16> to vector<32x96xbf16>
    %cst_84 = arith.constant dense<0.000000e+00> : vector<10x96xf32>
    %165 = tpu.matmul %162, %164, %cst_84 {dimension_numbers = #tpu.dot_dimension_numbers<[1], [0], [0], [1], [0, 0, 1, 1], [], []>} : vector<10x32xbf16>, vector<32x96xbf16>, vector<10x96xf32> -> vector<10x96xf32>
    %c0_85 = arith.constant 0 : index
    %c0_86 = arith.constant 0 : index
    %c0_87 = arith.constant 0 : index
    %166 = vector.load %arg23[%c0_85, %c0_86, %c0_87] : memref<1x1x96xf32, #tpu.memory_space<vmem>>, vector<1x1x96xf32>
    %167 = vector.shape_cast %166 : vector<1x1x96xf32> to vector<1x96xf32>
    %168 = vector.broadcast %167 : vector<1x96xf32> to vector<10x96xf32>
    %169 = arith.addf %165, %168 : vector<10x96xf32>
    %170 = vector.extract_strided_slice %169 {offsets = [0, 0], sizes = [10, 32], strides = [1, 1]} : vector<10x96xf32> to vector<10x32xf32>
    %171 = vector.extract_strided_slice %169 {offsets = [0, 32], sizes = [10, 32], strides = [1, 1]} : vector<10x96xf32> to vector<10x32xf32>
    %172 = vector.extract_strided_slice %169 {offsets = [0, 64], sizes = [10, 32], strides = [1, 1]} : vector<10x96xf32> to vector<10x32xf32>
    %c0_88 = arith.constant 0 : index
    %c0_89 = arith.constant 0 : index
    %c0_90 = arith.constant 0 : index
    %173 = vector.load %arg24[%c0_88, %c0_89, %c0_90] : memref<1x32x32xbf16, #tpu.memory_space<vmem>>, vector<1x32x32xbf16>
    %174 = vector.shape_cast %173 : vector<1x32x32xbf16> to vector<32x32xbf16>
    %175 = arith.truncf %170 : vector<10x32xf32> to vector<10x32xbf16>
    %176 = arith.truncf %171 : vector<10x32xf32> to vector<10x32xbf16>
    %177 = arith.truncf %172 : vector<10x32xf32> to vector<10x32xbf16>
    %178 = vector.extract_strided_slice %175 {offsets = [0, 0], sizes = [10, 16], strides = [1, 1]} : vector<10x32xbf16> to vector<10x16xbf16>
    %179 = vector.extract_strided_slice %176 {offsets = [0, 0], sizes = [10, 16], strides = [1, 1]} : vector<10x32xbf16> to vector<10x16xbf16>
    %cst_91 = arith.constant dense<0.000000e+00> : vector<10x10xf32>
    %180 = tpu.matmul %178, %179, %cst_91 {dimension_numbers = #tpu.dot_dimension_numbers<[1], [1], [0], [0], [0, 0, 1, 0], [], []>} : vector<10x16xbf16>, vector<10x16xbf16>, vector<10x10xf32> -> vector<10x10xf32>
    %cst_92 = arith.constant 2.500000e-01 : f32
    %181 = vector.broadcast %cst_92 : f32 to vector<10x10xf32>
    %182 = arith.mulf %180, %181 : vector<10x10xf32>
    %183 = arith.addf %182, %1 : vector<10x10xf32>
    %cst_93 = arith.constant dense<0xFF800000> : vector<10xf32>
    %184 = vector.multi_reduction <maximumf>, %183, %cst_93 [1] : vector<10x10xf32> to vector<10xf32>
    %185 = vector.shape_cast %184 : vector<10xf32> to vector<10x1xf32>
    %186 = vector.broadcast %185 : vector<10x1xf32> to vector<10x10xf32>
    %187 = arith.subf %183, %186 : vector<10x10xf32>
    %188 = math.exp %187 : vector<10x10xf32>
    %cst_94 = arith.constant dense<0.000000e+00> : vector<10xf32>
    %189 = vector.multi_reduction <add>, %188, %cst_94 [1] : vector<10x10xf32> to vector<10xf32>
    %190 = vector.shape_cast %189 : vector<10xf32> to vector<10x1xf32>
    %191 = vector.broadcast %190 : vector<10x1xf32> to vector<10x10xf32>
    %192 = arith.divf %188, %191 : vector<10x10xf32>
    %193 = arith.truncf %192 : vector<10x10xf32> to vector<10x10xbf16>
    %194 = vector.extract_strided_slice %177 {offsets = [0, 0], sizes = [10, 16], strides = [1, 1]} : vector<10x32xbf16> to vector<10x16xbf16>
    %cst_95 = arith.constant dense<0.000000e+00> : vector<10x16xf32>
    %195 = tpu.matmul %193, %194, %cst_95 {dimension_numbers = #tpu.dot_dimension_numbers<[1], [0], [0], [1], [0, 0, 1, 1], [], []>} : vector<10x10xbf16>, vector<10x16xbf16>, vector<10x16xf32> -> vector<10x16xf32>
    %196 = arith.truncf %195 : vector<10x16xf32> to vector<10x16xbf16>
    %197 = vector.extract_strided_slice %174 {offsets = [0, 0], sizes = [16, 32], strides = [1, 1]} : vector<32x32xbf16> to vector<16x32xbf16>
    %cst_96 = arith.constant dense<0.000000e+00> : vector<10x32xf32>
    %198 = tpu.matmul %196, %197, %cst_96 {dimension_numbers = #tpu.dot_dimension_numbers<[1], [0], [0], [1], [0, 0, 1, 1], [], []>} : vector<10x16xbf16>, vector<16x32xbf16>, vector<10x32xf32> -> vector<10x32xf32>
    %199 = vector.extract_strided_slice %175 {offsets = [0, 16], sizes = [10, 16], strides = [1, 1]} : vector<10x32xbf16> to vector<10x16xbf16>
    %200 = vector.extract_strided_slice %176 {offsets = [0, 16], sizes = [10, 16], strides = [1, 1]} : vector<10x32xbf16> to vector<10x16xbf16>
    %cst_97 = arith.constant dense<0.000000e+00> : vector<10x10xf32>
    %201 = tpu.matmul %199, %200, %cst_97 {dimension_numbers = #tpu.dot_dimension_numbers<[1], [1], [0], [0], [0, 0, 1, 0], [], []>} : vector<10x16xbf16>, vector<10x16xbf16>, vector<10x10xf32> -> vector<10x10xf32>
    %cst_98 = arith.constant 2.500000e-01 : f32
    %202 = vector.broadcast %cst_98 : f32 to vector<10x10xf32>
    %203 = arith.mulf %201, %202 : vector<10x10xf32>
    %204 = arith.addf %203, %1 : vector<10x10xf32>
    %cst_99 = arith.constant dense<0xFF800000> : vector<10xf32>
    %205 = vector.multi_reduction <maximumf>, %204, %cst_99 [1] : vector<10x10xf32> to vector<10xf32>
    %206 = vector.shape_cast %205 : vector<10xf32> to vector<10x1xf32>
    %207 = vector.broadcast %206 : vector<10x1xf32> to vector<10x10xf32>
    %208 = arith.subf %204, %207 : vector<10x10xf32>
    %209 = math.exp %208 : vector<10x10xf32>
    %cst_100 = arith.constant dense<0.000000e+00> : vector<10xf32>
    %210 = vector.multi_reduction <add>, %209, %cst_100 [1] : vector<10x10xf32> to vector<10xf32>
    %211 = vector.shape_cast %210 : vector<10xf32> to vector<10x1xf32>
    %212 = vector.broadcast %211 : vector<10x1xf32> to vector<10x10xf32>
    %213 = arith.divf %209, %212 : vector<10x10xf32>
    %214 = arith.truncf %213 : vector<10x10xf32> to vector<10x10xbf16>
    %215 = vector.extract_strided_slice %177 {offsets = [0, 16], sizes = [10, 16], strides = [1, 1]} : vector<10x32xbf16> to vector<10x16xbf16>
    %cst_101 = arith.constant dense<0.000000e+00> : vector<10x16xf32>
    %216 = tpu.matmul %214, %215, %cst_101 {dimension_numbers = #tpu.dot_dimension_numbers<[1], [0], [0], [1], [0, 0, 1, 1], [], []>} : vector<10x10xbf16>, vector<10x16xbf16>, vector<10x16xf32> -> vector<10x16xf32>
    %217 = arith.truncf %216 : vector<10x16xf32> to vector<10x16xbf16>
    %218 = vector.extract_strided_slice %174 {offsets = [16, 0], sizes = [16, 32], strides = [1, 1]} : vector<32x32xbf16> to vector<16x32xbf16>
    %cst_102 = arith.constant dense<0.000000e+00> : vector<10x32xf32>
    %219 = tpu.matmul %217, %218, %cst_102 {dimension_numbers = #tpu.dot_dimension_numbers<[1], [0], [0], [1], [0, 0, 1, 1], [], []>} : vector<10x16xbf16>, vector<16x32xbf16>, vector<10x32xf32> -> vector<10x32xf32>
    %220 = arith.addf %198, %219 : vector<10x32xf32>
    %c0_103 = arith.constant 0 : index
    %c0_104 = arith.constant 0 : index
    %c0_105 = arith.constant 0 : index
    %221 = vector.load %arg25[%c0_103, %c0_104, %c0_105] : memref<1x1x32xf32, #tpu.memory_space<vmem>>, vector<1x1x32xf32>
    %222 = vector.shape_cast %221 : vector<1x1x32xf32> to vector<1x32xf32>
    %223 = vector.broadcast %222 : vector<1x32xf32> to vector<10x32xf32>
    %224 = arith.addf %220, %223 : vector<10x32xf32>
    %225 = arith.addf %36, %224 : vector<10x32xf32>
    %c0_106 = arith.constant 0 : index
    %c0_107 = arith.constant 0 : index
    %c0_108 = arith.constant 0 : index
    %226 = vector.load %arg26[%c0_106, %c0_107, %c0_108] : memref<1x1x32xf32, #tpu.memory_space<vmem>>, vector<1x1x32xf32>
    %227 = vector.shape_cast %226 : vector<1x1x32xf32> to vector<1x32xf32>
    %228 = arith.mulf %225, %225 : vector<10x32xf32>
    %cst_109 = arith.constant dense<0.000000e+00> : vector<10xf32>
    %229 = vector.multi_reduction <add>, %228, %cst_109 [1] : vector<10x32xf32> to vector<10xf32>
    %230 = vector.shape_cast %229 : vector<10xf32> to vector<10x1xf32>
    %cst_110 = arith.constant 3.200000e+01 : f32
    %231 = vector.broadcast %cst_110 : f32 to vector<10x1xf32>
    %232 = arith.divf %230, %231 : vector<10x1xf32>
    %cst_111 = arith.constant 9.99999997E-7 : f32
    %233 = vector.broadcast %cst_111 : f32 to vector<10x1xf32>
    %234 = arith.addf %232, %233 : vector<10x1xf32>
    %235 = math.rsqrt %234 : vector<10x1xf32>
    %236 = vector.broadcast %235 : vector<10x1xf32> to vector<10x32xf32>
    %237 = arith.mulf %225, %236 : vector<10x32xf32>
    %238 = vector.broadcast %227 : vector<1x32xf32> to vector<10x32xf32>
    %239 = arith.mulf %237, %238 : vector<10x32xf32>
    %240 = arith.truncf %239 : vector<10x32xf32> to vector<10x32xbf16>
    %c0_112 = arith.constant 0 : index
    %c0_113 = arith.constant 0 : index
    %c0_114 = arith.constant 0 : index
    %241 = vector.load %arg27[%c0_112, %c0_113, %c0_114] : memref<1x32x32xbf16, #tpu.memory_space<vmem>>, vector<1x32x32xbf16>
    %242 = vector.shape_cast %241 : vector<1x32x32xbf16> to vector<32x32xbf16>
    %cst_115 = arith.constant dense<0.000000e+00> : vector<10x32xf32>
    %243 = tpu.matmul %240, %242, %cst_115 {dimension_numbers = #tpu.dot_dimension_numbers<[1], [0], [0], [1], [0, 0, 1, 1], [], []>} : vector<10x32xbf16>, vector<32x32xbf16>, vector<10x32xf32> -> vector<10x32xf32>
    %c0_116 = arith.constant 0 : index
    %c0_117 = arith.constant 0 : index
    %c0_118 = arith.constant 0 : index
    %244 = vector.load %arg28[%c0_116, %c0_117, %c0_118] : memref<1x1x32xf32, #tpu.memory_space<vmem>>, vector<1x1x32xf32>
    %245 = vector.shape_cast %244 : vector<1x1x32xf32> to vector<1x32xf32>
    %246 = vector.broadcast %245 : vector<1x32xf32> to vector<10x32xf32>
    %247 = arith.addf %243, %246 : vector<10x32xf32>
    %c0_119 = arith.constant 0 : index
    %c0_120 = arith.constant 0 : index
    %c0_121 = arith.constant 0 : index
    %248 = vector.load %arg29[%c0_119, %c0_120, %c0_121] : memref<1x32x64xbf16, #tpu.memory_space<vmem>>, vector<1x32x64xbf16>
    %249 = vector.shape_cast %248 : vector<1x32x64xbf16> to vector<32x64xbf16>
    %cst_122 = arith.constant dense<0.000000e+00> : vector<18x64xf32>
    %250 = tpu.matmul %161, %249, %cst_122 {dimension_numbers = #tpu.dot_dimension_numbers<[1], [0], [0], [1], [0, 0, 1, 1], [], []>} : vector<18x32xbf16>, vector<32x64xbf16>, vector<18x64xf32> -> vector<18x64xf32>
    %c0_123 = arith.constant 0 : index
    %c0_124 = arith.constant 0 : index
    %c0_125 = arith.constant 0 : index
    %251 = vector.load %arg30[%c0_123, %c0_124, %c0_125] : memref<1x1x64xf32, #tpu.memory_space<vmem>>, vector<1x1x64xf32>
    %252 = vector.shape_cast %251 : vector<1x1x64xf32> to vector<1x64xf32>
    %253 = vector.broadcast %252 : vector<1x64xf32> to vector<18x64xf32>
    %254 = arith.addf %250, %253 : vector<18x64xf32>
    %255 = vector.extract_strided_slice %254 {offsets = [0, 0], sizes = [18, 32], strides = [1, 1]} : vector<18x64xf32> to vector<18x32xf32>
    %256 = vector.extract_strided_slice %254 {offsets = [0, 32], sizes = [18, 32], strides = [1, 1]} : vector<18x64xf32> to vector<18x32xf32>
    %c0_126 = arith.constant 0 : index
    %c0_127 = arith.constant 0 : index
    %c0_128 = arith.constant 0 : index
    %257 = vector.load %arg31[%c0_126, %c0_127, %c0_128] : memref<1x32x32xbf16, #tpu.memory_space<vmem>>, vector<1x32x32xbf16>
    %258 = vector.shape_cast %257 : vector<1x32x32xbf16> to vector<32x32xbf16>
    %259 = arith.truncf %247 : vector<10x32xf32> to vector<10x32xbf16>
    %260 = arith.truncf %255 : vector<18x32xf32> to vector<18x32xbf16>
    %261 = arith.truncf %256 : vector<18x32xf32> to vector<18x32xbf16>
    %262 = vector.extract_strided_slice %259 {offsets = [0, 0], sizes = [10, 16], strides = [1, 1]} : vector<10x32xbf16> to vector<10x16xbf16>
    %263 = vector.extract_strided_slice %260 {offsets = [0, 0], sizes = [18, 16], strides = [1, 1]} : vector<18x32xbf16> to vector<18x16xbf16>
    %cst_129 = arith.constant dense<0.000000e+00> : vector<10x18xf32>
    %264 = tpu.matmul %262, %263, %cst_129 {dimension_numbers = #tpu.dot_dimension_numbers<[1], [1], [0], [0], [0, 0, 1, 0], [], []>} : vector<10x16xbf16>, vector<18x16xbf16>, vector<10x18xf32> -> vector<10x18xf32>
    %cst_130 = arith.constant 2.500000e-01 : f32
    %265 = vector.broadcast %cst_130 : f32 to vector<10x18xf32>
    %266 = arith.mulf %264, %265 : vector<10x18xf32>
    %267 = arith.addf %266, %2 : vector<10x18xf32>
    %cst_131 = arith.constant dense<0xFF800000> : vector<10xf32>
    %268 = vector.multi_reduction <maximumf>, %267, %cst_131 [1] : vector<10x18xf32> to vector<10xf32>
    %269 = vector.shape_cast %268 : vector<10xf32> to vector<10x1xf32>
    %270 = vector.broadcast %269 : vector<10x1xf32> to vector<10x18xf32>
    %271 = arith.subf %267, %270 : vector<10x18xf32>
    %272 = math.exp %271 : vector<10x18xf32>
    %cst_132 = arith.constant dense<0.000000e+00> : vector<10xf32>
    %273 = vector.multi_reduction <add>, %272, %cst_132 [1] : vector<10x18xf32> to vector<10xf32>
    %274 = vector.shape_cast %273 : vector<10xf32> to vector<10x1xf32>
    %275 = vector.broadcast %274 : vector<10x1xf32> to vector<10x18xf32>
    %276 = arith.divf %272, %275 : vector<10x18xf32>
    %277 = arith.truncf %276 : vector<10x18xf32> to vector<10x18xbf16>
    %278 = vector.extract_strided_slice %261 {offsets = [0, 0], sizes = [18, 16], strides = [1, 1]} : vector<18x32xbf16> to vector<18x16xbf16>
    %cst_133 = arith.constant dense<0.000000e+00> : vector<10x16xf32>
    %279 = tpu.matmul %277, %278, %cst_133 {dimension_numbers = #tpu.dot_dimension_numbers<[1], [0], [0], [1], [0, 0, 1, 1], [], []>} : vector<10x18xbf16>, vector<18x16xbf16>, vector<10x16xf32> -> vector<10x16xf32>
    %280 = arith.truncf %279 : vector<10x16xf32> to vector<10x16xbf16>
    %281 = vector.extract_strided_slice %258 {offsets = [0, 0], sizes = [16, 32], strides = [1, 1]} : vector<32x32xbf16> to vector<16x32xbf16>
    %cst_134 = arith.constant dense<0.000000e+00> : vector<10x32xf32>
    %282 = tpu.matmul %280, %281, %cst_134 {dimension_numbers = #tpu.dot_dimension_numbers<[1], [0], [0], [1], [0, 0, 1, 1], [], []>} : vector<10x16xbf16>, vector<16x32xbf16>, vector<10x32xf32> -> vector<10x32xf32>
    %283 = vector.extract_strided_slice %259 {offsets = [0, 16], sizes = [10, 16], strides = [1, 1]} : vector<10x32xbf16> to vector<10x16xbf16>
    %284 = vector.extract_strided_slice %260 {offsets = [0, 16], sizes = [18, 16], strides = [1, 1]} : vector<18x32xbf16> to vector<18x16xbf16>
    %cst_135 = arith.constant dense<0.000000e+00> : vector<10x18xf32>
    %285 = tpu.matmul %283, %284, %cst_135 {dimension_numbers = #tpu.dot_dimension_numbers<[1], [1], [0], [0], [0, 0, 1, 0], [], []>} : vector<10x16xbf16>, vector<18x16xbf16>, vector<10x18xf32> -> vector<10x18xf32>
    %cst_136 = arith.constant 2.500000e-01 : f32
    %286 = vector.broadcast %cst_136 : f32 to vector<10x18xf32>
    %287 = arith.mulf %285, %286 : vector<10x18xf32>
    %288 = arith.addf %287, %2 : vector<10x18xf32>
    %cst_137 = arith.constant dense<0xFF800000> : vector<10xf32>
    %289 = vector.multi_reduction <maximumf>, %288, %cst_137 [1] : vector<10x18xf32> to vector<10xf32>
    %290 = vector.shape_cast %289 : vector<10xf32> to vector<10x1xf32>
    %291 = vector.broadcast %290 : vector<10x1xf32> to vector<10x18xf32>
    %292 = arith.subf %288, %291 : vector<10x18xf32>
    %293 = math.exp %292 : vector<10x18xf32>
    %cst_138 = arith.constant dense<0.000000e+00> : vector<10xf32>
    %294 = vector.multi_reduction <add>, %293, %cst_138 [1] : vector<10x18xf32> to vector<10xf32>
    %295 = vector.shape_cast %294 : vector<10xf32> to vector<10x1xf32>
    %296 = vector.broadcast %295 : vector<10x1xf32> to vector<10x18xf32>
    %297 = arith.divf %293, %296 : vector<10x18xf32>
    %298 = arith.truncf %297 : vector<10x18xf32> to vector<10x18xbf16>
    %299 = vector.extract_strided_slice %261 {offsets = [0, 16], sizes = [18, 16], strides = [1, 1]} : vector<18x32xbf16> to vector<18x16xbf16>
    %cst_139 = arith.constant dense<0.000000e+00> : vector<10x16xf32>
    %300 = tpu.matmul %298, %299, %cst_139 {dimension_numbers = #tpu.dot_dimension_numbers<[1], [0], [0], [1], [0, 0, 1, 1], [], []>} : vector<10x18xbf16>, vector<18x16xbf16>, vector<10x16xf32> -> vector<10x16xf32>
    %301 = arith.truncf %300 : vector<10x16xf32> to vector<10x16xbf16>
    %302 = vector.extract_strided_slice %258 {offsets = [16, 0], sizes = [16, 32], strides = [1, 1]} : vector<32x32xbf16> to vector<16x32xbf16>
    %cst_140 = arith.constant dense<0.000000e+00> : vector<10x32xf32>
    %303 = tpu.matmul %301, %302, %cst_140 {dimension_numbers = #tpu.dot_dimension_numbers<[1], [0], [0], [1], [0, 0, 1, 1], [], []>} : vector<10x16xbf16>, vector<16x32xbf16>, vector<10x32xf32> -> vector<10x32xf32>
    %304 = arith.addf %282, %303 : vector<10x32xf32>
    %c0_141 = arith.constant 0 : index
    %c0_142 = arith.constant 0 : index
    %c0_143 = arith.constant 0 : index
    %305 = vector.load %arg32[%c0_141, %c0_142, %c0_143] : memref<1x1x32xf32, #tpu.memory_space<vmem>>, vector<1x1x32xf32>
    %306 = vector.shape_cast %305 : vector<1x1x32xf32> to vector<1x32xf32>
    %307 = vector.broadcast %306 : vector<1x32xf32> to vector<10x32xf32>
    %308 = arith.addf %304, %307 : vector<10x32xf32>
    %309 = arith.addf %239, %308 : vector<10x32xf32>
    %c0_144 = arith.constant 0 : index
    %c0_145 = arith.constant 0 : index
    %c0_146 = arith.constant 0 : index
    %310 = vector.load %arg33[%c0_144, %c0_145, %c0_146] : memref<1x1x32xf32, #tpu.memory_space<vmem>>, vector<1x1x32xf32>
    %311 = vector.shape_cast %310 : vector<1x1x32xf32> to vector<1x32xf32>
    %312 = arith.mulf %309, %309 : vector<10x32xf32>
    %cst_147 = arith.constant dense<0.000000e+00> : vector<10xf32>
    %313 = vector.multi_reduction <add>, %312, %cst_147 [1] : vector<10x32xf32> to vector<10xf32>
    %314 = vector.shape_cast %313 : vector<10xf32> to vector<10x1xf32>
    %cst_148 = arith.constant 3.200000e+01 : f32
    %315 = vector.broadcast %cst_148 : f32 to vector<10x1xf32>
    %316 = arith.divf %314, %315 : vector<10x1xf32>
    %cst_149 = arith.constant 9.99999997E-7 : f32
    %317 = vector.broadcast %cst_149 : f32 to vector<10x1xf32>
    %318 = arith.addf %316, %317 : vector<10x1xf32>
    %319 = math.rsqrt %318 : vector<10x1xf32>
    %320 = vector.broadcast %319 : vector<10x1xf32> to vector<10x32xf32>
    %321 = arith.mulf %309, %320 : vector<10x32xf32>
    %322 = vector.broadcast %311 : vector<1x32xf32> to vector<10x32xf32>
    %323 = arith.mulf %321, %322 : vector<10x32xf32>
    %324 = arith.truncf %323 : vector<10x32xf32> to vector<10x32xbf16>
    %c0_150 = arith.constant 0 : index
    %c0_151 = arith.constant 0 : index
    %c0_152 = arith.constant 0 : index
    %325 = vector.load %arg34[%c0_150, %c0_151, %c0_152] : memref<1x32x1024xbf16, #tpu.memory_space<vmem>>, vector<1x32x1024xbf16>
    %326 = vector.shape_cast %325 : vector<1x32x1024xbf16> to vector<32x1024xbf16>
    %cst_153 = arith.constant dense<0.000000e+00> : vector<10x1024xf32>
    %327 = tpu.matmul %324, %326, %cst_153 {dimension_numbers = #tpu.dot_dimension_numbers<[1], [0], [0], [1], [0, 0, 1, 1], [], []>} : vector<10x32xbf16>, vector<32x1024xbf16>, vector<10x1024xf32> -> vector<10x1024xf32>
    %c0_154 = arith.constant 0 : index
    %c0_155 = arith.constant 0 : index
    %c0_156 = arith.constant 0 : index
    %328 = vector.load %arg35[%c0_154, %c0_155, %c0_156] : memref<1x1x1024xf32, #tpu.memory_space<vmem>>, vector<1x1x1024xf32>
    %329 = vector.shape_cast %328 : vector<1x1x1024xf32> to vector<1x1024xf32>
    %330 = vector.broadcast %329 : vector<1x1024xf32> to vector<10x1024xf32>
    %331 = arith.addf %327, %330 : vector<10x1024xf32>
    %cst_157 = arith.constant 0.000000e+00 : f32
    %332 = vector.broadcast %cst_157 : f32 to vector<10x1024xf32>
    %333 = arith.maximumf %331, %332 : vector<10x1024xf32>
    %334 = arith.truncf %333 : vector<10x1024xf32> to vector<10x1024xbf16>
    %c0_158 = arith.constant 0 : index
    %c0_159 = arith.constant 0 : index
    %c0_160 = arith.constant 0 : index
    %335 = vector.load %arg36[%c0_158, %c0_159, %c0_160] : memref<1x1024x32xbf16, #tpu.memory_space<vmem>>, vector<1x1024x32xbf16>
    %336 = vector.shape_cast %335 : vector<1x1024x32xbf16> to vector<1024x32xbf16>
    %cst_161 = arith.constant dense<0.000000e+00> : vector<10x32xf32>
    %337 = tpu.matmul %334, %336, %cst_161 {dimension_numbers = #tpu.dot_dimension_numbers<[1], [0], [0], [1], [0, 0, 1, 1], [], []>} : vector<10x1024xbf16>, vector<1024x32xbf16>, vector<10x32xf32> -> vector<10x32xf32>
    %c0_162 = arith.constant 0 : index
    %c0_163 = arith.constant 0 : index
    %c0_164 = arith.constant 0 : index
    %338 = vector.load %arg37[%c0_162, %c0_163, %c0_164] : memref<1x1x32xf32, #tpu.memory_space<vmem>>, vector<1x1x32xf32>
    %339 = vector.shape_cast %338 : vector<1x1x32xf32> to vector<1x32xf32>
    %340 = vector.broadcast %339 : vector<1x32xf32> to vector<10x32xf32>
    %341 = arith.addf %337, %340 : vector<10x32xf32>
    %342 = arith.addf %323, %341 : vector<10x32xf32>
    %c0_165 = arith.constant 0 : index
    %c0_166 = arith.constant 0 : index
    %c0_167 = arith.constant 0 : index
    %343 = vector.load %arg38[%c0_165, %c0_166, %c0_167] : memref<1x1x32xf32, #tpu.memory_space<vmem>>, vector<1x1x32xf32>
    %344 = vector.shape_cast %343 : vector<1x1x32xf32> to vector<1x32xf32>
    %345 = arith.mulf %342, %342 : vector<10x32xf32>
    %cst_168 = arith.constant dense<0.000000e+00> : vector<10xf32>
    %346 = vector.multi_reduction <add>, %345, %cst_168 [1] : vector<10x32xf32> to vector<10xf32>
    %347 = vector.shape_cast %346 : vector<10xf32> to vector<10x1xf32>
    %cst_169 = arith.constant 3.200000e+01 : f32
    %348 = vector.broadcast %cst_169 : f32 to vector<10x1xf32>
    %349 = arith.divf %347, %348 : vector<10x1xf32>
    %cst_170 = arith.constant 9.99999997E-7 : f32
    %350 = vector.broadcast %cst_170 : f32 to vector<10x1xf32>
    %351 = arith.addf %349, %350 : vector<10x1xf32>
    %352 = math.rsqrt %351 : vector<10x1xf32>
    %353 = vector.broadcast %352 : vector<10x1xf32> to vector<10x32xf32>
    %354 = arith.mulf %342, %353 : vector<10x32xf32>
    %355 = vector.broadcast %344 : vector<1x32xf32> to vector<10x32xf32>
    %356 = arith.mulf %354, %355 : vector<10x32xf32>
    %c0_171 = arith.constant 0 : index
    %c0_172 = arith.constant 0 : index
    %357 = vector.load %arg39[%c0_171, %c0_172] : memref<1x32xf32, #tpu.memory_space<vmem>>, vector<1x32xf32>
    %358 = arith.mulf %356, %356 : vector<10x32xf32>
    %cst_173 = arith.constant dense<0.000000e+00> : vector<10xf32>
    %359 = vector.multi_reduction <add>, %358, %cst_173 [1] : vector<10x32xf32> to vector<10xf32>
    %360 = vector.shape_cast %359 : vector<10xf32> to vector<10x1xf32>
    %cst_174 = arith.constant 3.200000e+01 : f32
    %361 = vector.broadcast %cst_174 : f32 to vector<10x1xf32>
    %362 = arith.divf %360, %361 : vector<10x1xf32>
    %cst_175 = arith.constant 9.99999997E-7 : f32
    %363 = vector.broadcast %cst_175 : f32 to vector<10x1xf32>
    %364 = arith.addf %362, %363 : vector<10x1xf32>
    %365 = math.rsqrt %364 : vector<10x1xf32>
    %366 = vector.broadcast %365 : vector<10x1xf32> to vector<10x32xf32>
    %367 = arith.mulf %356, %366 : vector<10x32xf32>
    %368 = vector.broadcast %357 : vector<1x32xf32> to vector<10x32xf32>
    %369 = arith.mulf %367, %368 : vector<10x32xf32>
    %370 = arith.truncf %369 : vector<10x32xf32> to vector<10x32xbf16>
    %c0_176 = arith.constant 0 : index
    %c0_177 = arith.constant 0 : index
    %371 = vector.load %arg40[%c0_176, %c0_177] : memref<32x128xbf16, #tpu.memory_space<vmem>>, vector<32x128xbf16>
    %cst_178 = arith.constant dense<0.000000e+00> : vector<10x128xf32>
    %372 = tpu.matmul %370, %371, %cst_178 {dimension_numbers = #tpu.dot_dimension_numbers<[1], [0], [0], [1], [0, 0, 1, 1], [], []>} : vector<10x32xbf16>, vector<32x128xbf16>, vector<10x128xf32> -> vector<10x128xf32>
    %c0_179 = arith.constant 0 : index
    %c0_180 = arith.constant 0 : index
    %373 = vector.load %arg41[%c0_179, %c0_180] : memref<10x128xf32, #tpu.memory_space<vmem>>, vector<10x128xf32>
    tpu.vector_store %arg41[%c0_179, %c0_180], %372 {strides = array<i32>} : memref<10x128xf32, #tpu.memory_space<vmem>>, vector<10x128xf32>,
    %374 = tpu.iota {dimensions = array<i32: 1>} : vector<10x128xi32>
    %c64_i32 = arith.constant 64 : i32
    %375 = vector.broadcast %c64_i32 : i32 to vector<10x128xi32>
    %376 = arith.cmpi slt, %374, %375 : vector<10x128xi32>
    %cst_181 = arith.constant -1.000000e+09 : f32
    %377 = vector.broadcast %cst_181 : f32 to vector<10x128xf32>
    %378 = arith.select %376, %372, %377 : vector<10x128xi1>, vector<10x128xf32>
    %cst_182 = arith.constant dense<0xFF800000> : vector<10xf32>
    %379 = vector.multi_reduction <maximumf>, %378, %cst_182 [1] : vector<10x128xf32> to vector<10xf32>
    %380 = vector.shape_cast %379 : vector<10xf32> to vector<10x1xf32>
    %381 = vector.broadcast %380 : vector<10x1xf32> to vector<10x128xf32>
    %382 = arith.subf %378, %381 : vector<10x128xf32>
    %383 = math.exp %382 : vector<10x128xf32>
    %cst_183 = arith.constant dense<0.000000e+00> : vector<10xf32>
    %384 = vector.multi_reduction <add>, %383, %cst_183 [1] : vector<10x128xf32> to vector<10xf32>
    %385 = vector.shape_cast %384 : vector<10xf32> to vector<10x1xf32>
    %386 = math.log %385 : vector<10x1xf32>
    %387 = arith.addf %380, %386 : vector<10x1xf32>
    %c0_184 = arith.constant 0 : index
    %c0_185 = arith.constant 0 : index
    %388 = vector.load %arg5[%c0_184, %c0_185] : memref<10x1xi32, #tpu.memory_space<vmem>>, vector<10x1xi32>
    %389 = vector.broadcast %388 : vector<10x1xi32> to vector<10x128xi32>
    %390 = arith.cmpi eq, %374, %389 : vector<10x128xi32>
    %cst_186 = arith.constant 0.000000e+00 : f32
    %391 = vector.broadcast %cst_186 : f32 to vector<10x128xf32>
    %392 = arith.select %390, %372, %391 : vector<10x128xi1>, vector<10x128xf32>
    %cst_187 = arith.constant dense<0.000000e+00> : vector<10xf32>
    %393 = vector.multi_reduction <add>, %392, %cst_187 [1] : vector<10x128xf32> to vector<10xf32>
    %394 = vector.shape_cast %393 : vector<10xf32> to vector<10x1xf32>
    %395 = arith.subf %387, %394 : vector<10x1xf32>
    %c0_188 = arith.constant 0 : index
    %c0_189 = arith.constant 0 : index
    %396 = vector.load %arg6[%c0_188, %c0_189] : memref<10x1xf32, #tpu.memory_space<vmem>>, vector<10x1xf32>
    %cst_190 = arith.constant dense<0.000000e+00> : vector<1x1xf32>
    %397 = tpu.matmul %395, %396, %cst_190 {dimension_numbers = #tpu.dot_dimension_numbers<[0], [0], [1], [1], [0, 1, 1, 1], [], []>} : vector<10x1xf32>, vector<10x1xf32>, vector<1x1xf32> -> vector<1x1xf32>
    %c0_191 = arith.constant 0 : index
    %c0_192 = arith.constant 0 : index
    %398 = vector.load %arg42[%c0_191, %c0_192] : memref<1x1xf32, #tpu.memory_space<vmem>>, vector<1x1xf32>
    tpu.vector_store %arg42[%c0_191, %c0_192], %397 {strides = array<i32>} : memref<1x1xf32, #tpu.memory_space<vmem>>, vector<1x1xf32>,
    return
  }
}

</mosaic_0001>

<llo_original>
// kernel: fwd.1
$region0: #{fwd.1}
  #allocation0 [shape = 'u32[]', space=smem, size = 0x4, offset = 0x4, fixed_abs, tag = 'smem constant byte address 0x4 - core index']
  #allocation1 [shape = 'u32[144,128]{1,0:T(1,128)}', space=vmem, size = 0x12000, scoped, tag = 'internal scratch']
  %s0 = inlined_call_operand.smem [shape: u32[43], index: -1, kind: input, shape index: {}]
  %s1 = sld [smem:[%s0]]
  %s2 = scalar_lea.smem %s0, 1
  %s3 = sld [smem:[%s2]]
  %s4 = scalar_lea.smem %s0, 2
  %s5 = sld [smem:[%s4]]
  %s6 = scalar_lea.smem %s0, 3
  %s7 = sld [smem:[%s6]]
  %s8 = scalar_lea.smem %s0, 4
  %s9 = sld [smem:[%s8]]
  %s10 = scalar_lea.smem %s0, 5
  %s11 = sld [smem:[%s10]]
  %s12 = scalar_lea.smem %s0, 6
  %s13 = sld [smem:[%s12]]
  %s14 = scalar_lea.smem %s0, 7
  %s15 = sld [smem:[%s14]]
  %s16 = scalar_lea.smem %s0, 8
  %s17 = sld [smem:[%s16]]
  %s18 = scalar_lea.smem %s0, 9
  %s19 = sld [smem:[%s18]]
  %s20 = scalar_lea.smem %s0, 10
  %s21 = sld [smem:[%s20]]
  %s22 = scalar_lea.smem %s0, 11
  %s23 = sld [smem:[%s22]]
  %s24 = scalar_lea.smem %s0, 12
  %s25 = sld [smem:[%s24]]
  %s26 = scalar_lea.smem %s0, 13
  %s27 = sld [smem:[%s26]]
  %s28 = scalar_lea.smem %s0, 14
  %s29 = sld [smem:[%s28]]
  %s30 = scalar_lea.smem %s0, 15
  %s31 = sld [smem:[%s30]]
  %s32 = scalar_lea.smem %s0, 16
  %s33 = sld [smem:[%s32]]
  %s34 = scalar_lea.smem %s0, 17
  %s35 = sld [smem:[%s34]]
  %s36 = scalar_lea.smem %s0, 18
  %s37 = sld [smem:[%s36]]
  %s38 = scalar_lea.smem %s0, 19
  %s39 = sld [smem:[%s38]]
  %s40 = scalar_lea.smem %s0, 20
  %s41 = sld [smem:[%s40]]
  %s42 = scalar_lea.smem %s0, 21
  %s43 = sld [smem:[%s42]]
  %s44 = scalar_lea.smem %s0, 22
  %s45 = sld [smem:[%s44]]
  %s46 = scalar_lea.smem %s0, 23
  %s47 = sld [smem:[%s46]]
  %s48 = scalar_lea.smem %s0, 24
  %s49 = sld [smem:[%s48]]
  %s50 = scalar_lea.smem %s0, 25
  %s51 = sld [smem:[%s50]]
  %s52 = scalar_lea.smem %s0, 26
  %s53 = sld [smem:[%s52]]
  %s54 = scalar_lea.smem %s0, 27
  %s55 = sld [smem:[%s54]]
  %s56 = scalar_lea.smem %s0, 28
  %s57 = sld [smem:[%s56]]
  %s58 = scalar_lea.smem %s0, 29
  %s59 = sld [smem:[%s58]]
  %s60 = scalar_lea.smem %s0, 30
  %s61 = sld [smem:[%s60]]
  %s62 = scalar_lea.smem %s0, 31
  %s63 = sld [smem:[%s62]]
  %s64 = scalar_lea.smem %s0, 32
  %s65 = sld [smem:[%s64]]
  %s66 = scalar_lea.smem %s0, 33
  %s67 = sld [smem:[%s66]]
  %s68 = scalar_lea.smem %s0, 34
  %s69 = sld [smem:[%s68]]
  %s70 = scalar_lea.smem %s0, 35
  %s71 = sld [smem:[%s70]]
  %s72 = scalar_lea.smem %s0, 36
  %s73 = sld [smem:[%s72]]
  %s74 = scalar_lea.smem %s0, 37
  %s75 = sld [smem:[%s74]]
  %s76 = scalar_lea.smem %s0, 38
  %s77 = sld [smem:[%s76]]
  %s78 = scalar_lea.smem %s0, 39
  %s79 = sld [smem:[%s78]]
  %s80 = scalar_lea.smem %s0, 40
  %s81 = sld [smem:[%s80]]
  %s82 = scalar_lea.smem %s0, 41
  %s83 = sld [smem:[%s82]]
  %s84 = scalar_lea.smem %s0, 42
  %s85 = sld [smem:[%s84]]
  %86 = xla_tuple %s83, %s85
  %s87 = sld [smem:[#allocation0]]
  $region182: #{fwd.1} parent=0
    _
  %s89 = ssub.s32 1, %s87
  %s90 = scalar_select 0, %s89, %s87
  $region1: #{fwd.1} parent=0
    #allocation2 [shape = 'u8[512]{0}', space=vmem, size = 0x400, scoped, tag = 'output window, operand 1, single buffered']
    #allocation3 [shape = 's32[1]{0}', space=sflag, size = 0x4, scoped, tag = 'scoped memory for fwd.1']
    %91 = vsyncpa [#allocation3], 0
    // Predicated region
    $region2: #{fwd.1} parent=1 // pred_check
      _
    $region3: #{fwd.1} parent=1 // pred_check_branch
      %93 = sbr.rel (0) target = $region5
    $region4: #{fwd.1} parent=1 // pred_region
      _
    $region5: #{fwd.1} parent=1 // pred_fallthru
      _
    // Predicated region
    $region6: #{fwd.1} parent=1 // pred_check
      _
    $region7: #{fwd.1} parent=1 // pred_check_branch
      %95 = sbr.rel (0) target = $region9
    $region8: #{fwd.1} parent=1 // pred_region
      _
    $region9: #{fwd.1} parent=1 // pred_fallthru
      _
    // Predicated region
    $region10: #{fwd.1} parent=1 // pred_check
      _
    $region11: #{fwd.1} parent=1 // pred_check_branch
      %97 = sbr.rel (0) target = $region13
    $region12: #{fwd.1} parent=1 // pred_region
      _
    $region13: #{fwd.1} parent=1 // pred_fallthru
      _
    // Predicated region
    $region14: #{fwd.1} parent=1 // pred_check
      _
    $region15: #{fwd.1} parent=1 // pred_check_branch
      %99 = sbr.rel (0) target = $region17
    $region16: #{fwd.1} parent=1 // pred_region
      _
    $region17: #{fwd.1} parent=1 // pred_fallthru
      _
    // Predicated region
    $region18: #{fwd.1} parent=1 // pred_check
      _
    $region19: #{fwd.1} parent=1 // pred_check_branch
      %101 = sbr.rel (0) target = $region21
    $region20: #{fwd.1} parent=1 // pred_region
      _
    $region21: #{fwd.1} parent=1 // pred_fallthru
      _
    // Predicated region
    $region22: #{fwd.1} parent=1 // pred_check
      _
    $region23: #{fwd.1} parent=1 // pred_check_branch
      %103 = sbr.rel (0) target = $region25
    $region24: #{fwd.1} parent=1 // pred_region
      _
    $region25: #{fwd.1} parent=1 // pred_fallthru
      _
    // Predicated region
    $region26: #{fwd.1} parent=1 // pred_check
      _
    $region27: #{fwd.1} parent=1 // pred_check_branch
      %105 = sbr.rel (0) target = $region29
    $region28: #{fwd.1} parent=1 // pred_region
      _
    $region29: #{fwd.1} parent=1 // pred_fallthru
      _
    // Predicated region
    $region30: #{fwd.1} parent=1 // pred_check
      _
    $region31: #{fwd.1} parent=1 // pred_check_branch
      %107 = sbr.rel (0) target = $region33
    $region32: #{fwd.1} parent=1 // pred_region
      _
    $region33: #{fwd.1} parent=1 // pred_fallthru
      _
    // Predicated region
    $region34: #{fwd.1} parent=1 // pred_check
      _
    $region35: #{fwd.1} parent=1 // pred_check_branch
      %109 = sbr.rel (0) target = $region37
    $region36: #{fwd.1} parent=1 // pred_region
      _
    $region37: #{fwd.1} parent=1 // pred_fallthru
      _
    // Predicated region
    $region38: #{fwd.1} parent=1 // pred_check
      _
    $region39: #{fwd.1} parent=1 // pred_check_branch
      %111 = sbr.rel (0) target = $region41
    $region40: #{fwd.1} parent=1 // pred_region
      _
    $region41: #{fwd.1} parent=1 // pred_fallthru
      _
    // Predicated region
    $region42: #{fwd.1} parent=1 // pred_check
      _
    $region43: #{fwd.1} parent=1 // pred_check_branch
      %113 = sbr.rel (0) target = $region45
    $region44: #{fwd.1} parent=1 // pred_region
      _
    $region45: #{fwd.1} parent=1 // pred_fallthru
      _
    // Predicated region
    $region46: #{fwd.1} parent=1 // pred_check
      _
    $region47: #{fwd.1} parent=1 // pred_check_branch
      %115 = sbr.rel (0) target = $region49
    $region48: #{fwd.1} parent=1 // pred_region
      _
    $region49: #{fwd.1} parent=1 // pred_fallthru
      _
    // Predicated region
    $region50: #{fwd.1} parent=1 // pred_check
      _
    $region51: #{fwd.1} parent=1 // pred_check_branch
      %117 = sbr.rel (0) target = $region53
    $region52: #{fwd.1} parent=1 // pred_region
      _
    $region53: #{fwd.1} parent=1 // pred_fallthru
      _
    // Predicated region
    $region54: #{fwd.1} parent=1 // pred_check
      _
    $region55: #{fwd.1} parent=1 // pred_check_branch
      %119 = sbr.rel (0) target = $region57
    $region56: #{fwd.1} parent=1 // pred_region
      _
    $region57: #{fwd.1} parent=1 // pred_fallthru
      _
    // Predicated region
    $region58: #{fwd.1} parent=1 // pred_check
      _
    $region59: #{fwd.1} parent=1 // pred_check_branch
      %121 = sbr.rel (0) target = $region61
    $region60: #{fwd.1} parent=1 // pred_region
      _
    $region61: #{fwd.1} parent=1 // pred_fallthru
      _
    // Predicated region
    $region62: #{fwd.1} parent=1 // pred_check
      _
    $region63: #{fwd.1} parent=1 // pred_check_branch
      %123 = sbr.rel (0) target = $region65
    $region64: #{fwd.1} parent=1 // pred_region
      _
    $region65: #{fwd.1} parent=1 // pred_fallthru
      _
    // Predicated region
    $region66: #{fwd.1} parent=1 // pred_check
      _
    $region67: #{fwd.1} parent=1 // pred_check_branch
      %125 = sbr.rel (0) target = $region69
    $region68: #{fwd.1} parent=1 // pred_region
      _
    $region69: #{fwd.1} parent=1 // pred_fallthru
      _
    // Predicated region
    $region70: #{fwd.1} parent=1 // pred_check
      _
    $region71: #{fwd.1} parent=1 // pred_check_branch
      %127 = sbr.rel (0) target = $region73
    $region72: #{fwd.1} parent=1 // pred_region
      _
    $region73: #{fwd.1} parent=1 // pred_fallthru
      _
    // Predicated region
    $region74: #{fwd.1} parent=1 // pred_check
      _
    $region75: #{fwd.1} parent=1 // pred_check_branch
      %129 = sbr.rel (0) target = $region77
    $region76: #{fwd.1} parent=1 // pred_region
      _
    $region77: #{fwd.1} parent=1 // pred_fallthru
      _
    // Predicated region
    $region78: #{fwd.1} parent=1 // pred_check
      _
    $region79: #{fwd.1} parent=1 // pred_check_branch
      %131 = sbr.rel (0) target = $region81
    $region80: #{fwd.1} parent=1 // pred_region
      _
    $region81: #{fwd.1} parent=1 // pred_fallthru
      _
    // Predicated region
    $region82: #{fwd.1} parent=1 // pred_check
      _
    $region83: #{fwd.1} parent=1 // pred_check_branch
      %133 = sbr.rel (0) target = $region85
    $region84: #{fwd.1} parent=1 // pred_region
      _
    $region85: #{fwd.1} parent=1 // pred_fallthru
      _
    // Predicated region
    $region86: #{fwd.1} parent=1 // pred_check
      _
    $region87: #{fwd.1} parent=1 // pred_check_branch
      %135 = sbr.rel (0) target = $region89
    $region88: #{fwd.1} parent=1 // pred_region
      _
    $region89: #{fwd.1} parent=1 // pred_fallthru
      _
    // Predicated region
    $region90: #{fwd.1} parent=1 // pred_check
      _
    $region91: #{fwd.1} parent=1 // pred_check_branch
      %137 = sbr.rel (0) target = $region93
    $region92: #{fwd.1} parent=1 // pred_region
      _
    $region93: #{fwd.1} parent=1 // pred_fallthru
      _
    // Predicated region
    $region94: #{fwd.1} parent=1 // pred_check
      _
    $region95: #{fwd.1} parent=1 // pred_check_branch
      %139 = sbr.rel (0) target = $region97
    $region96: #{fwd.1} parent=1 // pred_region
      _
    $region97: #{fwd.1} parent=1 // pred_fallthru
      _
    // Predicated region
    $region98: #{fwd.1} parent=1 // pred_check
      _
    $region99: #{fwd.1} parent=1 // pred_check_branch
      %141 = sbr.rel (0) target = $region101
    $region100: #{fwd.1} parent=1 // pred_region
      _
    $region101: #{fwd.1} parent=1 // pred_fallthru
      _
    // Predicated region
    $region102: #{fwd.1} parent=1 // pred_check
      _
    $region103: #{fwd.1} parent=1 // pred_check_branch
      %143 = sbr.rel (0) target = $region105
    $region104: #{fwd.1} parent=1 // pred_region
      _
    $region105: #{fwd.1} parent=1 // pred_fallthru
      _
    // Predicated region
    $region106: #{fwd.1} parent=1 // pred_check
      _
    $region107: #{fwd.1} parent=1 // pred_check_branch
      %145 = sbr.rel (0) target = $region109
    $region108: #{fwd.1} parent=1 // pred_region
      _
    $region109: #{fwd.1} parent=1 // pred_fallthru
      _
    // Predicated region
    $region110: #{fwd.1} parent=1 // pred_check
      _
    $region111: #{fwd.1} parent=1 // pred_check_branch
      %147 = sbr.rel (0) target = $region113
    $region112: #{fwd.1} parent=1 // pred_region
      _
    $region113: #{fwd.1} parent=1 // pred_fallthru
      _
    // Predicated region
    $region114: #{fwd.1} parent=1 // pred_check
      _
    $region115: #{fwd.1} parent=1 // pred_check_branch
      %149 = sbr.rel (0) target = $region117
    $region116: #{fwd.1} parent=1 // pred_region
      _
    $region117: #{fwd.1} parent=1 // pred_fallthru
      _
    // Predicated region
    $region118: #{fwd.1} parent=1 // pred_check
      _
    $region119: #{fwd.1} parent=1 // pred_check_branch
      %151 = sbr.rel (0) target = $region121
    $region120: #{fwd.1} parent=1 // pred_region
      _
    $region121: #{fwd.1} parent=1 // pred_fallthru
      _
    // Predicated region
    $region122: #{fwd.1} parent=1 // pred_check
      _
    $region123: #{fwd.1} parent=1 // pred_check_branch
      %153 = sbr.rel (0) target = $region125
    $region124: #{fwd.1} parent=1 // pred_region
      _
    $region125: #{fwd.1} parent=1 // pred_fallthru
      _
    // Predicated region
    $region126: #{fwd.1} parent=1 // pred_check
      _
    $region127: #{fwd.1} parent=1 // pred_check_branch
      %155 = sbr.rel (0) target = $region129
    $region128: #{fwd.1} parent=1 // pred_region
      _
    $region129: #{fwd.1} parent=1 // pred_fallthru
      _
    // Predicated region
    $region130: #{fwd.1} parent=1 // pred_check
      _
    $region131: #{fwd.1} parent=1 // pred_check_branch
      %157 = sbr.rel (0) target = $region133
    $region132: #{fwd.1} parent=1 // pred_region
      _
    $region133: #{fwd.1} parent=1 // pred_fallthru
      _
    // Predicated region
    $region134: #{fwd.1} parent=1 // pred_check
      _
    $region135: #{fwd.1} parent=1 // pred_check_branch
      %159 = sbr.rel (0) target = $region137
    $region136: #{fwd.1} parent=1 // pred_region
      _
    $region137: #{fwd.1} parent=1 // pred_fallthru
      _
    // Predicated region
    $region138: #{fwd.1} parent=1 // pred_check
      _
    $region139: #{fwd.1} parent=1 // pred_check_branch
      %161 = sbr.rel (0) target = $region141
    $region140: #{fwd.1} parent=1 // pred_region
      _
    $region141: #{fwd.1} parent=1 // pred_fallthru
      _
    // Predicated region
    $region142: #{fwd.1} parent=1 // pred_check
      _
    $region143: #{fwd.1} parent=1 // pred_check_branch
      %163 = sbr.rel (0) target = $region145
    $region144: #{fwd.1} parent=1 // pred_region
      _
    $region145: #{fwd.1} parent=1 // pred_fallthru
      _
    // Predicated region
    $region146: #{fwd.1} parent=1 // pred_check
      _
    $region147: #{fwd.1} parent=1 // pred_check_branch
      %165 = sbr.rel (0) target = $region149
    $region148: #{fwd.1} parent=1 // pred_region
      _
    $region149: #{fwd.1} parent=1 // pred_fallthru
      _
    // Predicated region
    $region150: #{fwd.1} parent=1 // pred_check
      _
    $region151: #{fwd.1} parent=1 // pred_check_branch
      %167 = sbr.rel (0) target = $region153
    $region152: #{fwd.1} parent=1 // pred_region
      _
    $region153: #{fwd.1} parent=1 // pred_fallthru
      _
    // Predicated region
    $region154: #{fwd.1} parent=1 // pred_check
      _
    $region155: #{fwd.1} parent=1 // pred_check_branch
      %169 = sbr.rel (0) target = $region157
    $region156: #{fwd.1} parent=1 // pred_region
      _
    $region157: #{fwd.1} parent=1 // pred_fallthru
      _
    // Predicated region
    $region158: #{fwd.1} parent=1 // pred_check
      _
    $region159: #{fwd.1} parent=1 // pred_check_branch
      %171 = sbr.rel (0) target = $region161
    $region160: #{fwd.1} parent=1 // pred_region
      _
    $region161: #{fwd.1} parent=1 // pred_fallthru
      _
    // Predicated region
    $region162: #{fwd.1} parent=1 // pred_check
      _
    $region163: #{fwd.1} parent=1 // pred_check_branch
      %173 = sbr.rel (0) target = $region165
    $region164: #{fwd.1} parent=1 // pred_region
      _
    $region165: #{fwd.1} parent=1 // pred_fallthru
      _
    %v175 = vld [vmem:[%s5] sm:$0xff]
    %v176 = vld [vmem:[%s5 + $0x8] sm:$0xff]
    %v177 = vld [vmem:[%s5 + $0x10] sm:$0x3]
    %v178 = vld [vmem:[%s7] sm:$0xff]
    %v179 = vld [vmem:[%s7 + $0x8] sm:$0x3]
    %v180 = vld [vmem:[%s9] sm:$0xff]
    %v181 = vld [vmem:[%s9 + $0x8] sm:$0x3]
    %v182 = vld [vmem:[%s1] sm:$0xff]
    %v183 = vld [vmem:[%s1 + $0x8] sm:$0xff]
    %v184 = vld [vmem:[%s1 + $0x10] sm:$0x3]
    %v185 = vld [vmem:[%s15] sm:$0x1]
    %v186 = vmul.f32 %v182, %v182
    %v187 = vmul.f32 %v183, %v183
    %v188 = vmul.f32 %v184, %v184
    %vm189 = vcmask 261120
    %v190 = vsel %vm189, %v186, 0.0
    %191 = vadd.xlane.f32.xlu0 %v190
    %v192 = vpop.xlane.xlu0 %191
    %v193 = vsel %vm189, %v187, 0.0
    %194 = vadd.xlane.f32.xlu0 %v193
    %v195 = vpop.xlane.xlu0 %194
    %vm196 = vcmask 254976
    %v197 = vsel %vm196, %v188, 0.0
    %198 = vadd.xlane.f32.xlu0 %v197
    %v199 = vpop.xlane.xlu0 %198
    %v200 = vrcp.pop 32.0
    %v201 = vmul.f32 %v192, %v200
    %v202 = vmul.f32 %v195, %v200
    %v203 = vmul.f32 %v199, %v200
    %v204 = vadd.f32 %v201, 1e-06
    %v205 = vadd.f32 %v202, 1e-06
    %v206 = vadd.f32 %v203, 1e-06
    %v207 = vrsqrt.pop %v204
    %v208 = vrsqrt.pop %v205
    %v209 = vrsqrt.pop %v206
    %v210 = vmul.f32 %v182, %v207
    %v211 = vmul.f32 %v183, %v208
    %v212 = vmul.f32 %v184, %v209
    %v214 = vlaneseq
    %v215 = vshrl.u32 %v214, 7
    %v216 = vsub.s32 0, %v215
    %v217 = vrot.slane %v185, %v216
    %v219 = vmul.f32 %v210, %v217
    %v220 = vmul.f32 %v211, %v217
    %v221 = vmul.f32 %v212, %v217
    %v222 = vpack.c.bf16 %v220, %v219
    %v223 = vpack.c.bf16 %v221, %v221
    %v224 = vld [vmem:[%s17] sm:$0xf]
    %v225 = vld [vmem:[%s17 + $0x4] sm:$0xf]
    %v226 = vld [vmem:[%s17 + $0x8] sm:$0xf]
    %v227 = vld [vmem:[%s17 + $0xc] sm:$0xf]
    %v232 = vunpack.c.l.b16 %v224
    %v233 = vunpack.c.l.b16 %v225
    %v234 = vunpack.c.l.b16 %v226
    %v235 = vunpack.c.l.b16 %v227
    %v236 = vpack.c.b16 %v233, %v232
    %v237 = vpack.c.b16 %v235, %v234
    %v241 = vsel %vm189, %v222, 0
    %v244 = vsel %vm189, %v223, 0
    %246 = vmatprep.subr.bf16.mxu0 0
    %247 = vmatpush1.bf16.msra.mxu0 0
    %248 = vmatprep.subr.bf16.mxu0 0
    %249 = vmatpush1.bf16.msra.mxu0 0
    %250 = vmatprep.subr.bf16.mxu0 0
    %251 = vmatpush1.bf16.msra.mxu0 0
    %252 = vmatprep.subr.bf16.mxu0 0
    %253 = vmatpush1.bf16.msra.mxu0 0
    %254 = vmatprep.subr.bf16.mxu0 0
    %255 = vmatpush1.bf16.msra.mxu0 0
    %256 = vmatprep.subr.bf16.mxu0 0
    %257 = vmatpush1.bf16.msra.mxu0 0
    %258 = vmatprep.subr.bf16.mxu0 0
    %259 = vmatpush1.bf16.msra.mxu0 %v237
    %260 = vmatprep.subr.bf16.mxu0 0
    %261 = vmatpush1.bf16.msra.mxu0 %v236
    %262 = vmatprep.subr.bf16.mxu0 0
    %263 = vmatpush2.bf16.msra.mxu0 0
    %264 = vmatprep.subr.bf16.mxu0 0
    %265 = vmatpush2.bf16.msra.mxu0 0
    %266 = vmatprep.subr.bf16.mxu0 0
    %267 = vmatpush2.bf16.msra.mxu0 0
    %268 = vmatprep.subr.bf16.mxu0 0
    %269 = vmatpush2.bf16.msra.mxu0 0
    %270 = vmatprep.subr.bf16.mxu0 0
    %271 = vmatpush2.bf16.msra.mxu0 0
    %272 = vmatprep.subr.bf16.mxu0 0
    %273 = vmatpush2.bf16.msra.mxu0 0
    %274 = vmatprep.subr.bf16.mxu0 0
    %275 = vmatpush2.bf16.msra.mxu0 0
    %276 = vmatprep.subr.bf16.mxu0 0
    %277 = vmatpush2.bf16.msra.mxu0 0
    %278 = vmatprep.mubr.bf16.mxu0 0
    %279 = vmatmul.mubr.bf16.gmra.mxu0 %v241
    %v280 = vpop.f32.mrf.mxu0
    %v281 = vadd.f32 0.0, %v280
    %v282 = vpop.f32.mrf.mxu0
    %v283 = vpop.f32.mrf.mxu0
    %v284 = vadd.f32 0.0, %v283
    %v285 = vpop.f32.mrf.mxu0
    %286 = vmatprep.mubr.bf16.mxu0 0
    %287 = vmatmul.mubr.bf16.gmra.mxu0 %v244
    %v288 = vpop.f32.mrf.mxu0
    %v289 = vadd.f32 0.0, %v288
    %v290 = vpop.f32.mrf.mxu0
    %v291 = vpop.f32.mrf.mxu0
    %v292 = vpop.f32.mrf.mxu0
    %293 = vdwg.mxu0
    %v294 = vld [vmem:[%s3] sm:$0xff]
    %v295 = vld [vmem:[%s3 + $0x8] sm:$0x3]
    %v296 = vld [vmem:[%s19] sm:$0x1]
    %v297 = vmul.f32 %v294, %v294
    %v298 = vmul.f32 %v295, %v295
    %v299 = vsel %vm189, %v297, 0.0
    %300 = vadd.xlane.f32.xlu0 %v299
    %v301 = vpop.xlane.xlu0 %300
    %v302 = vsel %vm196, %v298, 0.0
    %303 = vadd.xlane.f32.xlu0 %v302
    %v304 = vpop.xlane.xlu0 %303
    %v305 = vmul.f32 %v301, %v200
    %v306 = vmul.f32 %v304, %v200
    %v307 = vadd.f32 %v305, 1e-06
    %v308 = vadd.f32 %v306, 1e-06
    %v309 = vrsqrt.pop %v307
    %v310 = vrsqrt.pop %v308
    %v311 = vmul.f32 %v294, %v309
    %v312 = vmul.f32 %v295, %v310
    %v314 = vlaneseq
    %v315 = vshrl.u32 %v314, 7
    %v316 = vsub.s32 0, %v315
    %v317 = vrot.slane %v296, %v316
    %v319 = vmul.f32 %v311, %v317
    %v320 = vmul.f32 %v312, %v317
    %v321 = vpack.c.bf16 %v320, %v319
    %v322 = vld [vmem:[%s21] sm:$0xf]
    %v323 = vld [vmem:[%s21 + $0x4] sm:$0xf]
    %v324 = vld [vmem:[%s21 + $0x8] sm:$0xf]
    %v325 = vld [vmem:[%s21 + $0xc] sm:$0xf]
    %v330 = vunpack.c.l.b16 %v322
    %v331 = vunpack.c.l.b16 %v323
    %v332 = vunpack.c.l.b16 %v324
    %v333 = vunpack.c.l.b16 %v325
    %v334 = vpack.c.b16 %v331, %v330
    %v335 = vpack.c.b16 %v333, %v332
    %v339 = vsel %vm189, %v321, 0
    %341 = vmatprep.subr.bf16.mxu0 0
    %342 = vmatpush1.bf16.msra.mxu0 0
    %343 = vmatprep.subr.bf16.mxu0 0
    %344 = vmatpush1.bf16.msra.mxu0 0
    %345 = vmatprep.subr.bf16.mxu0 0
    %346 = vmatpush1.bf16.msra.mxu0 0
    %347 = vmatprep.subr.bf16.mxu0 0
    %348 = vmatpush1.bf16.msra.mxu0 0
    %349 = vmatprep.subr.bf16.mxu0 0
    %350 = vmatpush1.bf16.msra.mxu0 0
    %351 = vmatprep.subr.bf16.mxu0 0
    %352 = vmatpush1.bf16.msra.mxu0 0
    %353 = vmatprep.subr.bf16.mxu0 0
    %354 = vmatpush1.bf16.msra.mxu0 %v335
    %355 = vmatprep.subr.bf16.mxu0 0
    %356 = vmatpush1.bf16.msra.mxu0 %v334
    %357 = vmatprep.subr.bf16.mxu0 0
    %358 = vmatpush2.bf16.msra.mxu0 0
    %359 = vmatprep.subr.bf16.mxu0 0
    %360 = vmatpush2.bf16.msra.mxu0 0
    %361 = vmatprep.subr.bf16.mxu0 0
    %362 = vmatpush2.bf16.msra.mxu0 0
    %363 = vmatprep.subr.bf16.mxu0 0
    %364 = vmatpush2.bf16.msra.mxu0 0
    %365 = vmatprep.subr.bf16.mxu0 0
    %366 = vmatpush2.bf16.msra.mxu0 0
    %367 = vmatprep.subr.bf16.mxu0 0
    %368 = vmatpush2.bf16.msra.mxu0 0
    %369 = vmatprep.subr.bf16.mxu0 0
    %370 = vmatpush2.bf16.msra.mxu0 0
    %371 = vmatprep.subr.bf16.mxu0 0
    %372 = vmatpush2.bf16.msra.mxu0 0
    %373 = vmatprep.mubr.bf16.mxu0 0
    %374 = vmatmul.mubr.bf16.gmra.mxu0 %v339
    %v375 = vpop.f32.mrf.mxu0
    %v376 = vadd.f32 0.0, %v375
    %v377 = vpop.f32.mrf.mxu0
    %v378 = vpop.f32.mrf.mxu0
    %v379 = vadd.f32 0.0, %v378
    %v380 = vpop.f32.mrf.mxu0
    %381 = vdwg.mxu0
    %v382 = vpack.c.bf16 %v284, %v281
    %v383 = vpack.c.bf16 %v289, %v289
    %v384 = vld [vmem:[%s23] sm:$0xf]
    %v385 = vld [vmem:[%s23 + $0x4] sm:$0xf]
    %v386 = vld [vmem:[%s23 + $0x8] sm:$0xf]
    %v387 = vld [vmem:[%s23 + $0xc] sm:$0xf]
    %v388 = vld [vmem:[%s25] sm:$0x1]
    %v390 = vlaneseq
    %v391 = vshrl.u32 %v390, 7
    %v392 = vsub.s32 0, %v391
    %v393 = vrot.slane %v388, %v392
    %v399 = vunpack.c.l.b16 %v384
    %v400 = vunpack.c.l.b16 %v385
    %v401 = vunpack.c.l.b16 %v386
    %v402 = vunpack.c.l.b16 %v387
    %v403 = vpack.c.b16 %v400, %v399
    %v404 = vpack.c.b16 %v402, %v401
    %v408 = vsel %vm189, %v382, 0
    %v411 = vsel %vm189, %v383, 0
    %413 = vmatprep.subr.bf16.mxu0 0
    %414 = vmatpush1.bf16.msra.mxu0 0
    %415 = vmatprep.subr.bf16.mxu0 0
    %416 = vmatpush1.bf16.msra.mxu0 0
    %417 = vmatprep.subr.bf16.mxu0 0
    %418 = vmatpush1.bf16.msra.mxu0 0
    %419 = vmatprep.subr.bf16.mxu0 0
    %420 = vmatpush1.bf16.msra.mxu0 0
    %421 = vmatprep.subr.bf16.mxu0 0
    %422 = vmatpush1.bf16.msra.mxu0 0
    %423 = vmatprep.subr.bf16.mxu0 0
    %424 = vmatpush1.bf16.msra.mxu0 0
    %425 = vmatprep.subr.bf16.mxu0 0
    %426 = vmatpush1.bf16.msra.mxu0 %v404
    %427 = vmatprep.subr.bf16.mxu0 0
    %428 = vmatpush1.bf16.msra.mxu0 %v403
    %429 = vmatprep.subr.bf16.mxu0 0
    %430 = vmatpush2.bf16.msra.mxu0 0
    %431 = vmatprep.subr.bf16.mxu0 0
    %432 = vmatpush2.bf16.msra.mxu0 0
    %433 = vmatprep.subr.bf16.mxu0 0
    %434 = vmatpush2.bf16.msra.mxu0 0
    %435 = vmatprep.subr.bf16.mxu0 0
    %436 = vmatpush2.bf16.msra.mxu0 0
    %437 = vmatprep.subr.bf16.mxu0 0
    %438 = vmatpush2.bf16.msra.mxu0 0
    %439 = vmatprep.subr.bf16.mxu0 0
    %440 = vmatpush2.bf16.msra.mxu0 0
    %441 = vmatprep.subr.bf16.mxu0 0
    %442 = vmatpush2.bf16.msra.mxu0 0
    %443 = vmatprep.subr.bf16.mxu0 0
    %444 = vmatpush2.bf16.msra.mxu0 0
    %445 = vmatprep.mubr.bf16.mxu0 0
    %446 = vmatmul.mubr.bf16.gmra.mxu0 %v408
    %v447 = vpop.f32.mrf.mxu0
    %v448 = vadd.f32 %v393, %v447
    %v449 = vpop.f32.mrf.mxu0
    %v450 = vpop.f32.mrf.mxu0
    %v451 = vadd.f32 %v393, %v450
    %v452 = vpop.f32.mrf.mxu0
    %453 = vmatprep.mubr.bf16.mxu0 0
    %454 = vmatmul.mubr.bf16.gmra.mxu0 %v411
    %v455 = vpop.f32.mrf.mxu0
    %v456 = vadd.f32 %v393, %v455
    %v457 = vpop.f32.mrf.mxu0
    %v458 = vpop.f32.mrf.mxu0
    %v459 = vpop.f32.mrf.mxu0
    %460 = vdwg.mxu0
    %v461 = vld [vmem:[%s27] sm:$0xf]
    %v462 = vld [vmem:[%s27 + $0x4] sm:$0xf]
    %v463 = vld [vmem:[%s27 + $0x8] sm:$0xf]
    %v464 = vld [vmem:[%s27 + $0xc] sm:$0xf]
    %v465 = vpack.c.bf16 %v451, %v448
    %v466 = vpack.c.bf16 %v456, %v456
    %469 = vrot.lane.b32.xlu0 %v465, 96
    %v470 = vpop.permute.xlu0 %469
    %471 = vrot.lane.b32.xlu0 %v466, 96
    %v472 = vpop.permute.xlu0 %471
    %vm473 = vcmask 130048
    %v475 = vsel %vm473, %v465, 0
    %v478 = vsel %vm473, %v466, 0
    %v481 = vsel %vm473, %v470, 0
    %v484 = vsel %vm473, %v472, 0
    %486 = vmatprep.subr.bf16.mxu0 0
    %487 = vmatpush1.bf16.xpose.msra.mxu0 0
    %488 = vmatprep.subr.bf16.mxu0 0
    %489 = vmatpush1.bf16.xpose.msra.mxu0 0
    %490 = vmatprep.subr.bf16.mxu0 0
    %491 = vmatpush1.bf16.xpose.msra.mxu0 0
    %492 = vmatprep.subr.bf16.mxu0 0
    %493 = vmatpush1.bf16.xpose.msra.mxu0 0
    %494 = vmatprep.subr.bf16.mxu0 0
    %495 = vmatpush1.bf16.xpose.msra.mxu0 0
    %496 = vmatprep.subr.bf16.mxu0 0
    %497 = vmatpush1.bf16.xpose.msra.mxu0 0
    %498 = vmatprep.subr.bf16.mxu0 0
    %499 = vmatpush1.bf16.xpose.msra.mxu0 %v484
    %500 = vmatprep.subr.bf16.mxu0 0
    %501 = vmatpush1.bf16.xpose.msra.mxu0 %v481
    %502 = vmatprep.subr.bf16.mxu0 0
    %503 = vmatpush2.bf16.xpose.msra.mxu0 0
    %504 = vmatprep.subr.bf16.mxu0 0
    %505 = vmatpush2.bf16.xpose.msra.mxu0 0
    %506 = vmatprep.subr.bf16.mxu0 0
    %507 = vmatpush2.bf16.xpose.msra.mxu0 0
    %508 = vmatprep.subr.bf16.mxu0 0
    %509 = vmatpush2.bf16.xpose.msra.mxu0 0
    %510 = vmatprep.subr.bf16.mxu0 0
    %511 = vmatpush2.bf16.xpose.msra.mxu0 0
    %512 = vmatprep.subr.bf16.mxu0 0
    %513 = vmatpush2.bf16.xpose.msra.mxu0 0
    %514 = vmatprep.subr.bf16.mxu0 0
    %515 = vmatpush2.bf16.xpose.msra.mxu0 0
    %516 = vmatprep.subr.bf16.mxu0 0
    %517 = vmatpush2.bf16.xpose.msra.mxu0 0
    %518 = vmatprep.mubr.bf16.mxu0 0
    %519 = vmatmul.mubr.bf16.gmra.mxu0 %v475
    %v520 = vpop.f32.mrf.mxu0
    %v521 = vadd.f32 0.0, %v520
    %v522 = vpop.f32.mrf.mxu0
    %v523 = vpop.f32.mrf.mxu0
    %v524 = vadd.f32 0.0, %v523
    %v525 = vpop.f32.mrf.mxu0
    %526 = vmatprep.mubr.bf16.mxu0 0
    %527 = vmatmul.mubr.bf16.gmra.mxu0 %v478
    %v528 = vpop.f32.mrf.mxu0
    %v529 = vadd.f32 0.0, %v528
    %v530 = vpop.f32.mrf.mxu0
    %v531 = vpop.f32.mrf.mxu0
    %v532 = vpop.f32.mrf.mxu0
    %533 = vdwg.mxu0
    %v534 = vmul.f32 %v521, 0.25
    %v535 = vmul.f32 %v524, 0.25
    %v536 = vmul.f32 %v529, 0.25
    %v537 = vadd.f32 %v534, %v175
    %v538 = vadd.f32 %v535, %v176
    %v539 = vadd.f32 %v536, %v177
    %vm540 = vcmask 146432
    %v541 = vsel %vm540, %v537, -inf
    %542 = vmax.xlane.f32.xlu0 %v541
    %v543 = vpop.xlane.xlu0 %542
    %v544 = vsel %vm540, %v538, -inf
    %545 = vmax.xlane.f32.xlu0 %v544
    %v546 = vpop.xlane.xlu0 %545
    %vm547 = vcmask 140288
    %v548 = vsel %vm547, %v539, -inf
    %549 = vmax.xlane.f32.xlu0 %v548
    %v550 = vpop.xlane.xlu0 %549
    %v551 = vsub.f32 %v537, %v543
    %v552 = vsub.f32 %v538, %v546
    %v553 = vsub.f32 %v539, %v550
    %v554 = vmul.f32 %v551, 1.442695
    %v555 = vpow.pop %v554
    %v556 = vmul.f32 %v552, 1.442695
    %v557 = vpow.pop %v556
    %v558 = vmul.f32 %v553, 1.442695
    %v559 = vpow.pop %v558
    %v560 = vsel %vm540, %v555, 0.0
    %561 = vadd.xlane.f32.xlu0 %v560
    %v562 = vpop.xlane.xlu0 %561
    %v563 = vsel %vm540, %v557, 0.0
    %564 = vadd.xlane.f32.xlu0 %v563
    %v565 = vpop.xlane.xlu0 %564
    %v566 = vsel %vm547, %v559, 0.0
    %567 = vadd.xlane.f32.xlu0 %v566
    %v568 = vpop.xlane.xlu0 %567
    %v569 = vrcp.pop %v562
    %v570 = vmul.f32 %v555, %v569
    %v571 = vrcp.pop %v565
    %v572 = vmul.f32 %v557, %v571
    %v573 = vrcp.pop %v568
    %v574 = vmul.f32 %v559, %v573
    %v575 = vpack.c.bf16 %v572, %v570
    %v576 = vpack.c.bf16 %v574, %v574
    %577 = vrot.lane.b32.xlu0 %v465, 64
    %v578 = vpop.permute.xlu0 %577
    %579 = vrot.lane.b32.xlu0 %v466, 64
    %v580 = vpop.permute.xlu0 %579
    %v583 = vsel %vm540, %v575, 0
    %v586 = vsel %vm540, %v576, 0
    %vm588 = vcmask 1040384
    %v590 = vsel %vm588, %v580, 0
    %592 = vmatprep.subr.bf16.mxu0 0
    %593 = vmatpush1.bf16.msra.mxu0 0
    %594 = vmatprep.subr.bf16.mxu0 0
    %595 = vmatpush1.bf16.msra.mxu0 0
    %596 = vmatprep.subr.bf16.mxu0 0
    %597 = vmatpush1.bf16.msra.mxu0 0
    %598 = vmatprep.subr.bf16.mxu0 0
    %599 = vmatpush1.bf16.msra.mxu0 0
    %600 = vmatprep.subr.bf16.mxu0 0
    %601 = vmatpush1.bf16.msra.mxu0 0
    %602 = vmatprep.subr.bf16.mxu0 0
    %603 = vmatpush1.bf16.msra.mxu0 0
    %604 = vmatprep.subr.bf16.mxu0 0
    %605 = vmatpush1.bf16.msra.mxu0 %v590
    %606 = vmatprep.subr.bf16.mxu0 0
    %607 = vmatpush1.bf16.msra.mxu0 %v578
    %608 = vmatprep.subr.bf16.mxu0 0
    %609 = vmatpush2.bf16.msra.mxu0 0
    %610 = vmatprep.subr.bf16.mxu0 0
    %611 = vmatpush2.bf16.msra.mxu0 0
    %612 = vmatprep.subr.bf16.mxu0 0
    %613 = vmatpush2.bf16.msra.mxu0 0
    %614 = vmatprep.subr.bf16.mxu0 0
    %615 = vmatpush2.bf16.msra.mxu0 0
    %616 = vmatprep.subr.bf16.mxu0 0
    %617 = vmatpush2.bf16.msra.mxu0 0
    %618 = vmatprep.subr.bf16.mxu0 0
    %619 = vmatpush2.bf16.msra.mxu0 0
    %620 = vmatprep.subr.bf16.mxu0 0
    %621 = vmatpush2.bf16.msra.mxu0 0
    %622 = vmatprep.subr.bf16.mxu0 0
    %623 = vmatpush2.bf16.msra.mxu0 0
    %624 = vmatprep.mubr.bf16.mxu0 0
    %625 = vmatmul.mubr.bf16.gmra.mxu0 %v583
    %v626 = vpop.f32.mrf.mxu0
    %v627 = vadd.f32 0.0, %v626
    %v628 = vpop.f32.mrf.mxu0
    %v629 = vpop.f32.mrf.mxu0
    %v630 = vadd.f32 0.0, %v629
    %v631 = vpop.f32.mrf.mxu0
    %632 = vmatprep.mubr.bf16.mxu0 0
    %633 = vmatmul.mubr.bf16.gmra.mxu0 %v586
    %v634 = vpop.f32.mrf.mxu0
    %v635 = vadd.f32 0.0, %v634
    %v636 = vpop.f32.mrf.mxu0
    %v637 = vpop.f32.mrf.mxu0
    %v638 = vpop.f32.mrf.mxu0
    %639 = vdwg.mxu0
    %v640 = vpack.c.bf16 %v630, %v627
    %v641 = vpack.c.bf16 %v635, %v635
    %642 = vrot.lane.b32.xlu0 %v465, 112
    %v643 = vpop.permute.xlu0 %642
    %644 = vrot.lane.b32.xlu0 %v466, 112
    %v645 = vpop.permute.xlu0 %644
    %646 = vrot.lane.b32.xlu0 %v465, 80
    %v647 = vpop.permute.xlu0 %646
    %648 = vrot.lane.b32.xlu0 %v466, 80
    %v649 = vpop.permute.xlu0 %648
    %v651 = vsel %vm473, %v643, 0
    %v654 = vsel %vm473, %v645, 0
    %v657 = vsel %vm473, %v647, 0
    %v660 = vsel %vm473, %v649, 0
    %662 = vmatprep.subr.bf16.mxu0 0
    %663 = vmatpush1.bf16.xpose.msra.mxu0 0
    %664 = vmatprep.subr.bf16.mxu0 0
    %665 = vmatpush1.bf16.xpose.msra.mxu0 0
    %666 = vmatprep.subr.bf16.mxu0 0
    %667 = vmatpush1.bf16.xpose.msra.mxu0 0
    %668 = vmatprep.subr.bf16.mxu0 0
    %669 = vmatpush1.bf16.xpose.msra.mxu0 0
    %670 = vmatprep.subr.bf16.mxu0 0
    %671 = vmatpush1.bf16.xpose.msra.mxu0 0
    %672 = vmatprep.subr.bf16.mxu0 0
    %673 = vmatpush1.bf16.xpose.msra.mxu0 0
    %674 = vmatprep.subr.bf16.mxu0 0
    %675 = vmatpush1.bf16.xpose.msra.mxu0 %v660
    %676 = vmatprep.subr.bf16.mxu0 0
    %677 = vmatpush1.bf16.xpose.msra.mxu0 %v657
    %678 = vmatprep.subr.bf16.mxu0 0
    %679 = vmatpush2.bf16.xpose.msra.mxu0 0
    %680 = vmatprep.subr.bf16.mxu0 0
    %681 = vmatpush2.bf16.xpose.msra.mxu0 0
    %682 = vmatprep.subr.bf16.mxu0 0
    %683 = vmatpush2.bf16.xpose.msra.mxu0 0
    %684 = vmatprep.subr.bf16.mxu0 0
    %685 = vmatpush2.bf16.xpose.msra.mxu0 0
    %686 = vmatprep.subr.bf16.mxu0 0
    %687 = vmatpush2.bf16.xpose.msra.mxu0 0
    %688 = vmatprep.subr.bf16.mxu0 0
    %689 = vmatpush2.bf16.xpose.msra.mxu0 0
    %690 = vmatprep.subr.bf16.mxu0 0
    %691 = vmatpush2.bf16.xpose.msra.mxu0 0
    %692 = vmatprep.subr.bf16.mxu0 0
    %693 = vmatpush2.bf16.xpose.msra.mxu0 0
    %694 = vmatprep.mubr.bf16.mxu0 0
    %695 = vmatmul.mubr.bf16.gmra.mxu0 %v651
    %v696 = vpop.f32.mrf.mxu0
    %v697 = vadd.f32 0.0, %v696
    %v698 = vpop.f32.mrf.mxu0
    %v699 = vpop.f32.mrf.mxu0
    %v700 = vadd.f32 0.0, %v699
    %v701 = vpop.f32.mrf.mxu0
    %702 = vmatprep.mubr.bf16.mxu0 0
    %703 = vmatmul.mubr.bf16.gmra.mxu0 %v654
    %v704 = vpop.f32.mrf.mxu0
    %v705 = vadd.f32 0.0, %v704
    %v706 = vpop.f32.mrf.mxu0
    %v707 = vpop.f32.mrf.mxu0
    %v708 = vpop.f32.mrf.mxu0
    %709 = vdwg.mxu0
    %v710 = vmul.f32 %v697, 0.25
    %v711 = vmul.f32 %v700, 0.25
    %v712 = vmul.f32 %v705, 0.25
    %v713 = vadd.f32 %v710, %v175
    %v714 = vadd.f32 %v711, %v176
    %v715 = vadd.f32 %v712, %v177
    %v716 = vsel %vm540, %v713, -inf
    %717 = vmax.xlane.f32.xlu0 %v716
    %v718 = vpop.xlane.xlu0 %717
    %v719 = vsel %vm540, %v714, -inf
    %720 = vmax.xlane.f32.xlu0 %v719
    %v721 = vpop.xlane.xlu0 %720
    %v722 = vsel %vm547, %v715, -inf
    %723 = vmax.xlane.f32.xlu0 %v722
    %v724 = vpop.xlane.xlu0 %723
    %v725 = vsub.f32 %v713, %v718
    %v726 = vsub.f32 %v714, %v721
    %v727 = vsub.f32 %v715, %v724
    %v728 = vmul.f32 %v725, 1.442695
    %v729 = vpow.pop %v728
    %v730 = vmul.f32 %v726, 1.442695
    %v731 = vpow.pop %v730
    %v732 = vmul.f32 %v727, 1.442695
    %v733 = vpow.pop %v732
    %v734 = vsel %vm540, %v729, 0.0
    %735 = vadd.xlane.f32.xlu0 %v734
    %v736 = vpop.xlane.xlu0 %735
    %v737 = vsel %vm540, %v731, 0.0
    %738 = vadd.xlane.f32.xlu0 %v737
    %v739 = vpop.xlane.xlu0 %738
    %v740 = vsel %vm547, %v733, 0.0
    %741 = vadd.xlane.f32.xlu0 %v740
    %v742 = vpop.xlane.xlu0 %741
    %v743 = vrcp.pop %v736
    %v744 = vmul.f32 %v729, %v743
    %v745 = vrcp.pop %v739
    %v746 = vmul.f32 %v731, %v745
    %v747 = vrcp.pop %v742
    %v748 = vmul.f32 %v733, %v747
    %v749 = vpack.c.bf16 %v746, %v744
    %v750 = vpack.c.bf16 %v748, %v748
    %751 = vrot.lane.b32.xlu0 %v465, 48
    %v752 = vpop.permute.xlu0 %751
    %753 = vrot.lane.b32.xlu0 %v466, 48
    %v754 = vpop.permute.xlu0 %753
    %v757 = vsel %vm540, %v749, 0
    %v760 = vsel %vm540, %v750, 0
    %v763 = vsel %vm588, %v754, 0
    %765 = vmatprep.subr.bf16.mxu0 0
    %766 = vmatpush1.bf16.msra.mxu0 0
    %767 = vmatprep.subr.bf16.mxu0 0
    %768 = vmatpush1.bf16.msra.mxu0 0
    %769 = vmatprep.subr.bf16.mxu0 0
    %770 = vmatpush1.bf16.msra.mxu0 0
    %771 = vmatprep.subr.bf16.mxu0 0
    %772 = vmatpush1.bf16.msra.mxu0 0
    %773 = vmatprep.subr.bf16.mxu0 0
    %774 = vmatpush1.bf16.msra.mxu0 0
    %775 = vmatprep.subr.bf16.mxu0 0
    %776 = vmatpush1.bf16.msra.mxu0 0
    %777 = vmatprep.subr.bf16.mxu0 0
    %778 = vmatpush1.bf16.msra.mxu0 %v763
    %779 = vmatprep.subr.bf16.mxu0 0
    %780 = vmatpush1.bf16.msra.mxu0 %v752
    %781 = vmatprep.subr.bf16.mxu0 0
    %782 = vmatpush2.bf16.msra.mxu0 0
    %783 = vmatprep.subr.bf16.mxu0 0
    %784 = vmatpush2.bf16.msra.mxu0 0
    %785 = vmatprep.subr.bf16.mxu0 0
    %786 = vmatpush2.bf16.msra.mxu0 0
    %787 = vmatprep.subr.bf16.mxu0 0
    %788 = vmatpush2.bf16.msra.mxu0 0
    %789 = vmatprep.subr.bf16.mxu0 0
    %790 = vmatpush2.bf16.msra.mxu0 0
    %791 = vmatprep.subr.bf16.mxu0 0
    %792 = vmatpush2.bf16.msra.mxu0 0
    %793 = vmatprep.subr.bf16.mxu0 0
    %794 = vmatpush2.bf16.msra.mxu0 0
    %795 = vmatprep.subr.bf16.mxu0 0
    %796 = vmatpush2.bf16.msra.mxu0 0
    %797 = vmatprep.mubr.bf16.mxu0 0
    %798 = vmatmul.mubr.bf16.gmra.mxu0 %v757
    %v799 = vpop.f32.mrf.mxu0
    %v800 = vadd.f32 0.0, %v799
    %v801 = vpop.f32.mrf.mxu0
    %v802 = vpop.f32.mrf.mxu0
    %v803 = vadd.f32 0.0, %v802
    %v804 = vpop.f32.mrf.mxu0
    %805 = vmatprep.mubr.bf16.mxu0 0
    %806 = vmatmul.mubr.bf16.gmra.mxu0 %v760
    %v807 = vpop.f32.mrf.mxu0
    %v808 = vadd.f32 0.0, %v807
    %v809 = vpop.f32.mrf.mxu0
    %v810 = vpop.f32.mrf.mxu0
    %v811 = vpop.f32.mrf.mxu0
    %812 = vdwg.mxu0
    %v813 = vpack.c.bf16 %v803, %v800
    %v814 = vpack.c.bf16 %v808, %v808
    %v817 = vunpack.c.l.b16 %v463
    %v818 = vunpack.c.l.b16 %v464
    %v819 = vpack.c.b16 %v818, %v817
    %v822 = vsel %vm473, %v813, 0
    %v825 = vsel %vm473, %v814, 0
    %827 = vmatprep.subr.bf16.mxu0 0
    %828 = vmatpush1.bf16.msra.mxu0 0
    %829 = vmatprep.subr.bf16.mxu0 0
    %830 = vmatpush1.bf16.msra.mxu0 0
    %831 = vmatprep.subr.bf16.mxu0 0
    %832 = vmatpush1.bf16.msra.mxu0 0
    %833 = vmatprep.subr.bf16.mxu0 0
    %834 = vmatpush1.bf16.msra.mxu0 0
    %835 = vmatprep.subr.bf16.mxu0 0
    %836 = vmatpush1.bf16.msra.mxu0 0
    %837 = vmatprep.subr.bf16.mxu0 0
    %838 = vmatpush1.bf16.msra.mxu0 0
    %839 = vmatprep.subr.bf16.mxu0 0
    %840 = vmatpush1.bf16.msra.mxu0 0
    %841 = vmatprep.subr.bf16.mxu0 0
    %842 = vmatpush1.bf16.msra.mxu0 %v819
    %843 = vmatprep.subr.bf16.mxu0 0
    %844 = vmatpush2.bf16.msra.mxu0 0
    %845 = vmatprep.subr.bf16.mxu0 0
    %846 = vmatpush2.bf16.msra.mxu0 0
    %847 = vmatprep.subr.bf16.mxu0 0
    %848 = vmatpush2.bf16.msra.mxu0 0
    %849 = vmatprep.subr.bf16.mxu0 0
    %850 = vmatpush2.bf16.msra.mxu0 0
    %851 = vmatprep.subr.bf16.mxu0 0
    %852 = vmatpush2.bf16.msra.mxu0 0
    %853 = vmatprep.subr.bf16.mxu0 0
    %854 = vmatpush2.bf16.msra.mxu0 0
    %855 = vmatprep.subr.bf16.mxu0 0
    %856 = vmatpush2.bf16.msra.mxu0 0
    %857 = vmatprep.subr.bf16.mxu0 0
    %858 = vmatpush2.bf16.msra.mxu0 0
    %859 = vmatprep.mubr.bf16.mxu0 0
    %860 = vmatmul.mubr.bf16.gmra.mxu0 %v822
    %v861 = vpop.f32.mrf.mxu0
    %v862 = vadd.f32 0.0, %v861
    %v863 = vpop.f32.mrf.mxu0
    %v864 = vpop.f32.mrf.mxu0
    %v865 = vadd.f32 0.0, %v864
    %v866 = vpop.f32.mrf.mxu0
    %867 = vmatprep.mubr.bf16.mxu0 0
    %868 = vmatmul.mubr.bf16.gmra.mxu0 %v825
    %v869 = vpop.f32.mrf.mxu0
    %v870 = vadd.f32 0.0, %v869
    %v871 = vpop.f32.mrf.mxu0
    %v872 = vpop.f32.mrf.mxu0
    %v873 = vpop.f32.mrf.mxu0
    %874 = vdwg.mxu0
    %v877 = vunpack.c.l.b16 %v461
    %v878 = vunpack.c.l.b16 %v462
    %v879 = vpack.c.b16 %v878, %v877
    %v882 = vsel %vm473, %v640, 0
    %v885 = vsel %vm473, %v641, 0
    %887 = vmatprep.subr.bf16.mxu0 0
    %888 = vmatpush1.bf16.msra.mxu0 0
    %889 = vmatprep.subr.bf16.mxu0 0
    %890 = vmatpush1.bf16.msra.mxu0 0
    %891 = vmatprep.subr.bf16.mxu0 0
    %892 = vmatpush1.bf16.msra.mxu0 0
    %893 = vmatprep.subr.bf16.mxu0 0
    %894 = vmatpush1.bf16.msra.mxu0 0
    %895 = vmatprep.subr.bf16.mxu0 0
    %896 = vmatpush1.bf16.msra.mxu0 0
    %897 = vmatprep.subr.bf16.mxu0 0
    %898 = vmatpush1.bf16.msra.mxu0 0
    %899 = vmatprep.subr.bf16.mxu0 0
    %900 = vmatpush1.bf16.msra.mxu0 0
    %901 = vmatprep.subr.bf16.mxu0 0
    %902 = vmatpush1.bf16.msra.mxu0 %v879
    %903 = vmatprep.subr.bf16.mxu0 0
    %904 = vmatpush2.bf16.msra.mxu0 0
    %905 = vmatprep.subr.bf16.mxu0 0
    %906 = vmatpush2.bf16.msra.mxu0 0
    %907 = vmatprep.subr.bf16.mxu0 0
    %908 = vmatpush2.bf16.msra.mxu0 0
    %909 = vmatprep.subr.bf16.mxu0 0
    %910 = vmatpush2.bf16.msra.mxu0 0
    %911 = vmatprep.subr.bf16.mxu0 0
    %912 = vmatpush2.bf16.msra.mxu0 0
    %913 = vmatprep.subr.bf16.mxu0 0
    %914 = vmatpush2.bf16.msra.mxu0 0
    %915 = vmatprep.subr.bf16.mxu0 0
    %916 = vmatpush2.bf16.msra.mxu0 0
    %917 = vmatprep.subr.bf16.mxu0 0
    %918 = vmatpush2.bf16.msra.mxu0 0
    %919 = vmatprep.mubr.bf16.mxu0 0
    %920 = vmatmul.mubr.bf16.gmra.mxu0 %v882
    %v921 = vpop.f32.mrf.mxu0
    %v922 = vadd.f32 %v862, %v921
    %v923 = vpop.f32.mrf.mxu0
    %v924 = vpop.f32.mrf.mxu0
    %v925 = vadd.f32 %v865, %v924
    %v926 = vpop.f32.mrf.mxu0
    %927 = vmatprep.mubr.bf16.mxu0 0
    %928 = vmatmul.mubr.bf16.gmra.mxu0 %v885
    %v929 = vpop.f32.mrf.mxu0
    %v930 = vadd.f32 %v870, %v929
    %v931 = vpop.f32.mrf.mxu0
    %v932 = vpop.f32.mrf.mxu0
    %v933 = vpop.f32.mrf.mxu0
    %934 = vdwg.mxu0
    %v935 = vld [vmem:[%s29] sm:$0x1]
    %v937 = vlaneseq
    %v938 = vshrl.u32 %v937, 7
    %v939 = vsub.s32 0, %v938
    %v940 = vrot.slane %v935, %v939
    %v942 = vadd.f32 %v922, %v940
    %v943 = vadd.f32 %v925, %v940
    %v944 = vadd.f32 %v930, %v940
    %v945 = vadd.f32 %v281, %v942
    %v946 = vadd.f32 %v284, %v943
    %v947 = vadd.f32 %v289, %v944
    %v948 = vld [vmem:[%s31] sm:$0x1]
    %v949 = vmul.f32 %v945, %v945
    %v950 = vmul.f32 %v946, %v946
    %v951 = vmul.f32 %v947, %v947
    %v952 = vsel %vm189, %v949, 0.0
    %953 = vadd.xlane.f32.xlu0 %v952
    %v954 = vpop.xlane.xlu0 %953
    %v955 = vsel %vm189, %v950, 0.0
    %956 = vadd.xlane.f32.xlu0 %v955
    %v957 = vpop.xlane.xlu0 %956
    %v958 = vsel %vm196, %v951, 0.0
    %959 = vadd.xlane.f32.xlu0 %v958
    %v960 = vpop.xlane.xlu0 %959
    %v961 = vmul.f32 %v954, %v200
    %v962 = vmul.f32 %v957, %v200
    %v963 = vmul.f32 %v960, %v200
    %v964 = vadd.f32 %v961, 1e-06
    %v965 = vadd.f32 %v962, 1e-06
    %v966 = vadd.f32 %v963, 1e-06
    %v967 = vrsqrt.pop %v964
    %v968 = vrsqrt.pop %v965
    %v969 = vrsqrt.pop %v966
    %v970 = vmul.f32 %v945, %v967
    %v971 = vmul.f32 %v946, %v968
    %v972 = vmul.f32 %v947, %v969
    %v974 = vlaneseq
    %v975 = vshrl.u32 %v974, 7
    %v976 = vsub.s32 0, %v975
    %v977 = vrot.slane %v948, %v976
    %v979 = vmul.f32 %v970, %v977
    %v980 = vmul.f32 %v971, %v977
    %v981 = vmul.f32 %v972, %v977
    %v982 = vpack.c.bf16 %v980, %v979
    %v983 = vpack.c.bf16 %v981, %v981
    %v984 = vld [vmem:[%s33] sm:$0xff]
    %v985 = vld [vmem:[%s33 + $0x8] sm:$0xff]
    %v986 = vld [vmem:[%s33 + $0x10] sm:$0xff]
    %v987 = vld [vmem:[%s33 + $0x18] sm:$0xff]
    %v988 = vld [vmem:[%s33 + $0x20] sm:$0xff]
    %v989 = vld [vmem:[%s33 + $0x28] sm:$0xff]
    %v990 = vld [vmem:[%s33 + $0x30] sm:$0xff]
    %v991 = vld [vmem:[%s33 + $0x38] sm:$0xff]
    %v992 = vld [vmem:[%s33 + $0x40] sm:$0xff]
    %v993 = vld [vmem:[%s33 + $0x48] sm:$0xff]
    %v994 = vld [vmem:[%s33 + $0x50] sm:$0xff]
    %v995 = vld [vmem:[%s33 + $0x58] sm:$0xff]
    %v996 = vld [vmem:[%s33 + $0x60] sm:$0xff]
    %v997 = vld [vmem:[%s33 + $0x68] sm:$0xff]
    %v998 = vld [vmem:[%s33 + $0x70] sm:$0xff]
    %v999 = vld [vmem:[%s33 + $0x78] sm:$0xff]
    %v1000 = vld [vmem:[%s35] sm:$0xff]
    %v1002 = vlaneseq
    %v1003 = vshrl.u32 %v1002, 7
    %v1004 = vsub.s32 0, %v1003
    %v1005 = vrot.slane %v1000, %v1004
    %v1006 = vlaneseq
    %v1007 = vshrl.u32 %v1006, 7
    %v1008 = vsub.s32 1, %v1007
    %v1009 = vrot.slane %v1000, %v1008
    %v1010 = vlaneseq
    %v1011 = vshrl.u32 %v1010, 7
    %v1012 = vsub.s32 2, %v1011
    %v1013 = vrot.slane %v1000, %v1012
    %v1014 = vlaneseq
    %v1015 = vshrl.u32 %v1014, 7
    %v1016 = vsub.s32 3, %v1015
    %v1017 = vrot.slane %v1000, %v1016
    %v1018 = vlaneseq
    %v1019 = vshrl.u32 %v1018, 7
    %v1020 = vsub.s32 4, %v1019
    %v1021 = vrot.slane %v1000, %v1020
    %v1022 = vlaneseq
    %v1023 = vshrl.u32 %v1022, 7
    %v1024 = vsub.s32 5, %v1023
    %v1025 = vrot.slane %v1000, %v1024
    %v1026 = vlaneseq
    %v1027 = vshrl.u32 %v1026, 7
    %v1028 = vsub.s32 6, %v1027
    %v1029 = vrot.slane %v1000, %v1028
    %v1030 = vlaneseq
    %v1031 = vshrl.u32 %v1030, 7
    %v1032 = vsub.s32 7, %v1031
    %v1033 = vrot.slane %v1000, %v1032
    %v1058 = vunpack.c.l.b16 %v984
    %v1059 = vunpack.c.h.b16 %v984
    %v1060 = vunpack.c.l.b16 %v985
    %v1061 = vunpack.c.h.b16 %v985
    %v1062 = vunpack.c.l.b16 %v986
    %v1063 = vunpack.c.h.b16 %v986
    %v1064 = vunpack.c.l.b16 %v987
    %v1065 = vunpack.c.h.b16 %v987
    %v1066 = vunpack.c.l.b16 %v988
    %v1067 = vunpack.c.h.b16 %v988
    %v1068 = vunpack.c.l.b16 %v989
    %v1069 = vunpack.c.h.b16 %v989
    %v1070 = vunpack.c.l.b16 %v990
    %v1071 = vunpack.c.h.b16 %v990
    %v1072 = vunpack.c.l.b16 %v991
    %v1073 = vunpack.c.h.b16 %v991
    %v1074 = vunpack.c.l.b16 %v992
    %v1075 = vunpack.c.h.b16 %v992
    %v1076 = vunpack.c.l.b16 %v993
    %v1077 = vunpack.c.h.b16 %v993
    %v1078 = vunpack.c.l.b16 %v994
    %v1079 = vunpack.c.h.b16 %v994
    %v1080 = vunpack.c.l.b16 %v995
    %v1081 = vunpack.c.h.b16 %v995
    %v1082 = vunpack.c.l.b16 %v996
    %v1083 = vunpack.c.h.b16 %v996
    %v1084 = vunpack.c.l.b16 %v997
    %v1085 = vunpack.c.h.b16 %v997
    %v1086 = vunpack.c.l.b16 %v998
    %v1087 = vunpack.c.h.b16 %v998
    %v1088 = vunpack.c.l.b16 %v999
    %v1089 = vunpack.c.h.b16 %v999
    %v1090 = vpack.c.b16 %v1066, %v1058
    %v1091 = vpack.c.b16 %v1067, %v1059
    %v1092 = vpack.c.b16 %v1068, %v1060
    %v1093 = vpack.c.b16 %v1069, %v1061
    %v1094 = vpack.c.b16 %v1070, %v1062
    %v1095 = vpack.c.b16 %v1071, %v1063
    %v1096 = vpack.c.b16 %v1072, %v1064
    %v1097 = vpack.c.b16 %v1073, %v1065
    %v1098 = vpack.c.b16 %v1082, %v1074
    %v1099 = vpack.c.b16 %v1083, %v1075
    %v1100 = vpack.c.b16 %v1084, %v1076
    %v1101 = vpack.c.b16 %v1085, %v1077
    %v1102 = vpack.c.b16 %v1086, %v1078
    %v1103 = vpack.c.b16 %v1087, %v1079
    %v1104 = vpack.c.b16 %v1088, %v1080
    %v1105 = vpack.c.b16 %v1089, %v1081
    %v1123 = vsel %vm189, %v982, 0
    %v1126 = vsel %vm189, %v983, 0
    %1128 = vmatprep.subr.bf16.mxu0 0
    %1129 = vmatpush1.bf16.msra.mxu0 0
    %1130 = vmatprep.subr.bf16.mxu0 0
    %1131 = vmatpush1.bf16.msra.mxu0 0
    %1132 = vmatprep.subr.bf16.mxu0 0
    %1133 = vmatpush1.bf16.msra.mxu0 0
    %1134 = vmatprep.subr.bf16.mxu0 0
    %1135 = vmatpush1.bf16.msra.mxu0 0
    %1136 = vmatprep.subr.bf16.mxu0 0
    %1137 = vmatpush1.bf16.msra.mxu0 0
    %1138 = vmatprep.subr.bf16.mxu0 0
    %1139 = vmatpush1.bf16.msra.mxu0 0
    %1140 = vmatprep.subr.bf16.mxu0 %v1099
    %1141 = vmatpush1.bf16.msra.mxu0 %v1098
    %1142 = vmatprep.subr.bf16.mxu0 %v1091
    %1143 = vmatpush1.bf16.msra.mxu0 %v1090
    %1144 = vmatprep.subr.bf16.mxu0 0
    %1145 = vmatpush2.bf16.msra.mxu0 0
    %1146 = vmatprep.subr.bf16.mxu0 0
    %1147 = vmatpush2.bf16.msra.mxu0 0
    %1148 = vmatprep.subr.bf16.mxu0 0
    %1149 = vmatpush2.bf16.msra.mxu0 0
    %1150 = vmatprep.subr.bf16.mxu0 0
    %1151 = vmatpush2.bf16.msra.mxu0 0
    %1152 = vmatprep.subr.bf16.mxu0 0
    %1153 = vmatpush2.bf16.msra.mxu0 0
    %1154 = vmatprep.subr.bf16.mxu0 0
    %1155 = vmatpush2.bf16.msra.mxu0 0
    %1156 = vmatprep.subr.bf16.mxu0 0
    %1157 = vmatpush2.bf16.msra.mxu0 0
    %1158 = vmatprep.subr.bf16.mxu0 0
    %1159 = vmatpush2.bf16.msra.mxu0 0
    %1160 = vmatprep.mubr.bf16.mxu0 0
    %1161 = vmatmul.mubr.bf16.gmra.mxu0 %v1123
    %v1162 = vpop.f32.mrf.mxu0
    %v1163 = vadd.f32 %v1005, %v1162
    %v1164 = vpop.f32.mrf.mxu0
    %v1165 = vadd.f32 %v1009, %v1164
    %v1166 = vpop.f32.mrf.mxu0
    %v1167 = vadd.f32 %v1005, %v1166
    %v1168 = vpop.f32.mrf.mxu0
    %v1169 = vadd.f32 %v1009, %v1168
    %1170 = vmatprep.mubr.bf16.mxu0 0
    %1171 = vmatmul.mubr.bf16.gmra.mxu0 %v1126
    %v1172 = vpop.f32.mrf.mxu0
    %v1173 = vadd.f32 %v1005, %v1172
    %v1174 = vpop.f32.mrf.mxu0
    %v1175 = vadd.f32 %v1009, %v1174
    %v1176 = vpop.f32.mrf.mxu0
    %v1177 = vpop.f32.mrf.mxu0
    %1178 = vdwg.mxu0
    %1179 = vmatprep.subr.bf16.mxu0 0
    %1180 = vmatpush1.bf16.msra.mxu0 0
    %1181 = vmatprep.subr.bf16.mxu0 0
    %1182 = vmatpush1.bf16.msra.mxu0 0
    %1183 = vmatprep.subr.bf16.mxu0 0
    %1184 = vmatpush1.bf16.msra.mxu0 0
    %1185 = vmatprep.subr.bf16.mxu0 0
    %1186 = vmatpush1.bf16.msra.mxu0 0
    %1187 = vmatprep.subr.bf16.mxu0 0
    %1188 = vmatpush1.bf16.msra.mxu0 0
    %1189 = vmatprep.subr.bf16.mxu0 0
    %1190 = vmatpush1.bf16.msra.mxu0 0
    %1191 = vmatprep.subr.bf16.mxu0 %v1101
    %1192 = vmatpush1.bf16.msra.mxu0 %v1100
    %1193 = vmatprep.subr.bf16.mxu0 %v1093
    %1194 = vmatpush1.bf16.msra.mxu0 %v1092
    %1195 = vmatprep.subr.bf16.mxu0 0
    %1196 = vmatpush2.bf16.msra.mxu0 0
    %1197 = vmatprep.subr.bf16.mxu0 0
    %1198 = vmatpush2.bf16.msra.mxu0 0
    %1199 = vmatprep.subr.bf16.mxu0 0
    %1200 = vmatpush2.bf16.msra.mxu0 0
    %1201 = vmatprep.subr.bf16.mxu0 0
    %1202 = vmatpush2.bf16.msra.mxu0 0
    %1203 = vmatprep.subr.bf16.mxu0 0
    %1204 = vmatpush2.bf16.msra.mxu0 0
    %1205 = vmatprep.subr.bf16.mxu0 0
    %1206 = vmatpush2.bf16.msra.mxu0 0
    %1207 = vmatprep.subr.bf16.mxu0 0
    %1208 = vmatpush2.bf16.msra.mxu0 0
    %1209 = vmatprep.subr.bf16.mxu0 0
    %1210 = vmatpush2.bf16.msra.mxu0 0
    %1211 = vmatprep.mubr.bf16.mxu0 0
    %1212 = vmatmul.mubr.bf16.gmra.mxu0 %v1123
    %v1213 = vpop.f32.mrf.mxu0
    %v1214 = vadd.f32 %v1013, %v1213
    %v1215 = vpop.f32.mrf.mxu0
    %v1216 = vadd.f32 %v1017, %v1215
    %v1217 = vpop.f32.mrf.mxu0
    %v1218 = vadd.f32 %v1013, %v1217
    %v1219 = vpop.f32.mrf.mxu0
    %v1220 = vadd.f32 %v1017, %v1219
    %1221 = vmatprep.mubr.bf16.mxu0 0
    %1222 = vmatmul.mubr.bf16.gmra.mxu0 %v1126
    %v1223 = vpop.f32.mrf.mxu0
    %v1224 = vadd.f32 %v1013, %v1223
    %v1225 = vpop.f32.mrf.mxu0
    %v1226 = vadd.f32 %v1017, %v1225
    %v1227 = vpop.f32.mrf.mxu0
    %v1228 = vpop.f32.mrf.mxu0
    %1229 = vdwg.mxu0
    %1230 = vmatprep.subr.bf16.mxu0 0
    %1231 = vmatpush1.bf16.msra.mxu0 0
    %1232 = vmatprep.subr.bf16.mxu0 0
    %1233 = vmatpush1.bf16.msra.mxu0 0
    %1234 = vmatprep.subr.bf16.mxu0 0
    %1235 = vmatpush1.bf16.msra.mxu0 0
    %1236 = vmatprep.subr.bf16.mxu0 0
    %1237 = vmatpush1.bf16.msra.mxu0 0
    %1238 = vmatprep.subr.bf16.mxu0 0
    %1239 = vmatpush1.bf16.msra.mxu0 0
    %1240 = vmatprep.subr.bf16.mxu0 0
    %1241 = vmatpush1.bf16.msra.mxu0 0
    %1242 = vmatprep.subr.bf16.mxu0 %v1103
    %1243 = vmatpush1.bf16.msra.mxu0 %v1102
    %1244 = vmatprep.subr.bf16.mxu0 %v1095
    %1245 = vmatpush1.bf16.msra.mxu0 %v1094
    %1246 = vmatprep.subr.bf16.mxu0 0
    %1247 = vmatpush2.bf16.msra.mxu0 0
    %1248 = vmatprep.subr.bf16.mxu0 0
    %1249 = vmatpush2.bf16.msra.mxu0 0
    %1250 = vmatprep.subr.bf16.mxu0 0
    %1251 = vmatpush2.bf16.msra.mxu0 0
    %1252 = vmatprep.subr.bf16.mxu0 0
    %1253 = vmatpush2.bf16.msra.mxu0 0
    %1254 = vmatprep.subr.bf16.mxu0 0
    %1255 = vmatpush2.bf16.msra.mxu0 0
    %1256 = vmatprep.subr.bf16.mxu0 0
    %1257 = vmatpush2.bf16.msra.mxu0 0
    %1258 = vmatprep.subr.bf16.mxu0 0
    %1259 = vmatpush2.bf16.msra.mxu0 0
    %1260 = vmatprep.subr.bf16.mxu0 0
    %1261 = vmatpush2.bf16.msra.mxu0 0
    %1262 = vmatprep.mubr.bf16.mxu0 0
    %1263 = vmatmul.mubr.bf16.gmra.mxu0 %v1123
    %v1264 = vpop.f32.mrf.mxu0
    %v1265 = vadd.f32 %v1021, %v1264
    %v1266 = vpop.f32.mrf.mxu0
    %v1267 = vadd.f32 %v1025, %v1266
    %v1268 = vpop.f32.mrf.mxu0
    %v1269 = vadd.f32 %v1021, %v1268
    %v1270 = vpop.f32.mrf.mxu0
    %v1271 = vadd.f32 %v1025, %v1270
    %1272 = vmatprep.mubr.bf16.mxu0 0
    %1273 = vmatmul.mubr.bf16.gmra.mxu0 %v1126
    %v1274 = vpop.f32.mrf.mxu0
    %v1275 = vadd.f32 %v1021, %v1274
    %v1276 = vpop.f32.mrf.mxu0
    %v1277 = vadd.f32 %v1025, %v1276
    %v1278 = vpop.f32.mrf.mxu0
    %v1279 = vpop.f32.mrf.mxu0
    %1280 = vdwg.mxu0
    %1281 = vmatprep.subr.bf16.mxu0 0
    %1282 = vmatpush1.bf16.msra.mxu0 0
    %1283 = vmatprep.subr.bf16.mxu0 0
    %1284 = vmatpush1.bf16.msra.mxu0 0
    %1285 = vmatprep.subr.bf16.mxu0 0
    %1286 = vmatpush1.bf16.msra.mxu0 0
    %1287 = vmatprep.subr.bf16.mxu0 0
    %1288 = vmatpush1.bf16.msra.mxu0 0
    %1289 = vmatprep.subr.bf16.mxu0 0
    %1290 = vmatpush1.bf16.msra.mxu0 0
    %1291 = vmatprep.subr.bf16.mxu0 0
    %1292 = vmatpush1.bf16.msra.mxu0 0
    %1293 = vmatprep.subr.bf16.mxu0 %v1105
    %1294 = vmatpush1.bf16.msra.mxu0 %v1104
    %1295 = vmatprep.subr.bf16.mxu0 %v1097
    %1296 = vmatpush1.bf16.msra.mxu0 %v1096
    %1297 = vmatprep.subr.bf16.mxu0 0
    %1298 = vmatpush2.bf16.msra.mxu0 0
    %1299 = vmatprep.subr.bf16.mxu0 0
    %1300 = vmatpush2.bf16.msra.mxu0 0
    %1301 = vmatprep.subr.bf16.mxu0 0
    %1302 = vmatpush2.bf16.msra.mxu0 0
    %1303 = vmatprep.subr.bf16.mxu0 0
    %1304 = vmatpush2.bf16.msra.mxu0 0
    %1305 = vmatprep.subr.bf16.mxu0 0
    %1306 = vmatpush2.bf16.msra.mxu0 0
    %1307 = vmatprep.subr.bf16.mxu0 0
    %1308 = vmatpush2.bf16.msra.mxu0 0
    %1309 = vmatprep.subr.bf16.mxu0 0
    %1310 = vmatpush2.bf16.msra.mxu0 0
    %1311 = vmatprep.subr.bf16.mxu0 0
    %1312 = vmatpush2.bf16.msra.mxu0 0
    %1313 = vmatprep.mubr.bf16.mxu0 0
    %1314 = vmatmul.mubr.bf16.gmra.mxu0 %v1123
    %v1315 = vpop.f32.mrf.mxu0
    %v1316 = vadd.f32 %v1029, %v1315
    %v1317 = vpop.f32.mrf.mxu0
    %v1318 = vadd.f32 %v1033, %v1317
    %v1319 = vpop.f32.mrf.mxu0
    %v1320 = vadd.f32 %v1029, %v1319
    %v1321 = vpop.f32.mrf.mxu0
    %v1322 = vadd.f32 %v1033, %v1321
    %1323 = vmatprep.mubr.bf16.mxu0 0
    %1324 = vmatmul.mubr.bf16.gmra.mxu0 %v1126
    %v1325 = vpop.f32.mrf.mxu0
    %v1326 = vadd.f32 %v1029, %v1325
    %v1327 = vpop.f32.mrf.mxu0
    %v1328 = vadd.f32 %v1033, %v1327
    %v1329 = vpop.f32.mrf.mxu0
    %v1330 = vpop.f32.mrf.mxu0
    %1331 = vdwg.mxu0
    %v1332 = vmax.f32 %v1163, 0.0
    %v1333 = vmax.f32 %v1165, 0.0
    %v1334 = vmax.f32 %v1214, 0.0
    %v1335 = vmax.f32 %v1216, 0.0
    %v1336 = vmax.f32 %v1265, 0.0
    %v1337 = vmax.f32 %v1267, 0.0
    %v1338 = vmax.f32 %v1316, 0.0
    %v1339 = vmax.f32 %v1318, 0.0
    %v1340 = vmax.f32 %v1167, 0.0
    %v1341 = vmax.f32 %v1169, 0.0
    %v1342 = vmax.f32 %v1218, 0.0
    %v1343 = vmax.f32 %v1220, 0.0
    %v1344 = vmax.f32 %v1269, 0.0
    %v1345 = vmax.f32 %v1271, 0.0
    %v1346 = vmax.f32 %v1320, 0.0
    %v1347 = vmax.f32 %v1322, 0.0
    %v1348 = vmax.f32 %v1173, 0.0
    %v1349 = vmax.f32 %v1175, 0.0
    %v1350 = vmax.f32 %v1224, 0.0
    %v1351 = vmax.f32 %v1226, 0.0
    %v1352 = vmax.f32 %v1275, 0.0
    %v1353 = vmax.f32 %v1277, 0.0
    %v1354 = vmax.f32 %v1326, 0.0
    %v1355 = vmax.f32 %v1328, 0.0
    %v1356 = vpack.c.bf16 %v1340, %v1332
    %v1357 = vpack.c.bf16 %v1341, %v1333
    %v1358 = vpack.c.bf16 %v1342, %v1334
    %v1359 = vpack.c.bf16 %v1343, %v1335
    %v1360 = vpack.c.bf16 %v1344, %v1336
    %v1361 = vpack.c.bf16 %v1345, %v1337
    %v1362 = vpack.c.bf16 %v1346, %v1338
    %v1363 = vpack.c.bf16 %v1347, %v1339
    %v1364 = vpack.c.bf16 %v1348, %v1348
    %v1365 = vpack.c.bf16 %v1349, %v1349
    %v1366 = vpack.c.bf16 %v1350, %v1350
    %v1367 = vpack.c.bf16 %v1351, %v1351
    %v1368 = vpack.c.bf16 %v1352, %v1352
    %v1369 = vpack.c.bf16 %v1353, %v1353
    %v1370 = vpack.c.bf16 %v1354, %v1354
    %v1371 = vpack.c.bf16 %v1355, %v1355
    %v1372 = vld [vmem:[%s37] sm:$0xf]
    %v1373 = vld [vmem:[%s37 + $0x4] sm:$0xf]
    %v1374 = vld [vmem:[%s37 + $0x8] sm:$0xf]
    %v1375 = vld [vmem:[%s37 + $0xc] sm:$0xf]
    %v1376 = vld [vmem:[%s37 + $0x10] sm:$0xf]
    %v1377 = vld [vmem:[%s37 + $0x14] sm:$0xf]
    %v1378 = vld [vmem:[%s37 + $0x18] sm:$0xf]
    %v1379 = vld [vmem:[%s37 + $0x1c] sm:$0xf]
    %v1380 = vld [vmem:[%s37 + $0x20] sm:$0xf]
    %v1381 = vld [vmem:[%s37 + $0x24] sm:$0xf]
    %v1382 = vld [vmem:[%s37 + $0x28] sm:$0xf]
    %v1383 = vld [vmem:[%s37 + $0x2c] sm:$0xf]
    %v1384 = vld [vmem:[%s37 + $0x30] sm:$0xf]
    %v1385 = vld [vmem:[%s37 + $0x34] sm:$0xf]
    %v1386 = vld [vmem:[%s37 + $0x38] sm:$0xf]
    %v1387 = vld [vmem:[%s37 + $0x3c] sm:$0xf]
    %v1388 = vld [vmem:[%s37 + $0x40] sm:$0xf]
    %v1389 = vld [vmem:[%s37 + $0x44] sm:$0xf]
    %v1390 = vld [vmem:[%s37 + $0x48] sm:$0xf]
    %v1391 = vld [vmem:[%s37 + $0x4c] sm:$0xf]
    %v1392 = vld [vmem:[%s37 + $0x50] sm:$0xf]
    %v1393 = vld [vmem:[%s37 + $0x54] sm:$0xf]
    %v1394 = vld [vmem:[%s37 + $0x58] sm:$0xf]
    %v1395 = vld [vmem:[%s37 + $0x5c] sm:$0xf]
    %v1396 = vld [vmem:[%s37 + $0x60] sm:$0xf]
    %v1397 = vld [vmem:[%s37 + $0x64] sm:$0xf]
    %v1398 = vld [vmem:[%s37 + $0x68] sm:$0xf]
    %v1399 = vld [vmem:[%s37 + $0x6c] sm:$0xf]
    %v1400 = vld [vmem:[%s37 + $0x70] sm:$0xf]
    %v1401 = vld [vmem:[%s37 + $0x74] sm:$0xf]
    %v1402 = vld [vmem:[%s37 + $0x78] sm:$0xf]
    %v1403 = vld [vmem:[%s37 + $0x7c] sm:$0xf]
    %v1404 = vld [vmem:[%s37 + $0x80] sm:$0xf]
    %v1405 = vld [vmem:[%s37 + $0x84] sm:$0xf]
    %v1406 = vld [vmem:[%s37 + $0x88] sm:$0xf]
    %v1407 = vld [vmem:[%s37 + $0x8c] sm:$0xf]
    %v1408 = vld [vmem:[%s37 + $0x90] sm:$0xf]
    %v1409 = vld [vmem:[%s37 + $0x94] sm:$0xf]
    %v1410 = vld [vmem:[%s37 + $0x98] sm:$0xf]
    %v1411 = vld [vmem:[%s37 + $0x9c] sm:$0xf]
    %v1412 = vld [vmem:[%s37 + $0xa0] sm:$0xf]
    %v1413 = vld [vmem:[%s37 + $0xa4] sm:$0xf]
    %v1414 = vld [vmem:[%s37 + $0xa8] sm:$0xf]
    %v1415 = vld [vmem:[%s37 + $0xac] sm:$0xf]
    %v1416 = vld [vmem:[%s37 + $0xb0] sm:$0xf]
    %v1417 = vld [vmem:[%s37 + $0xb4] sm:$0xf]
    %v1418 = vld [vmem:[%s37 + $0xb8] sm:$0xf]
    %v1419 = vld [vmem:[%s37 + $0xbc] sm:$0xf]
    %v1420 = vld [vmem:[%s37 + $0xc0] sm:$0xf]
    %v1421 = vld [vmem:[%s37 + $0xc4] sm:$0xf]
    %v1422 = vld [vmem:[%s37 + $0xc8] sm:$0xf]
    %v1423 = vld [vmem:[%s37 + $0xcc] sm:$0xf]
    %v1424 = vld [vmem:[%s37 + $0xd0] sm:$0xf]
    %v1425 = vld [vmem:[%s37 + $0xd4] sm:$0xf]
    %v1426 = vld [vmem:[%s37 + $0xd8] sm:$0xf]
    %v1427 = vld [vmem:[%s37 + $0xdc] sm:$0xf]
    %v1428 = vld [vmem:[%s37 + $0xe0] sm:$0xf]
    %v1429 = vld [vmem:[%s37 + $0xe4] sm:$0xf]
    %v1430 = vld [vmem:[%s37 + $0xe8] sm:$0xf]
    %v1431 = vld [vmem:[%s37 + $0xec] sm:$0xf]
    %v1432 = vld [vmem:[%s37 + $0xf0] sm:$0xf]
    %v1433 = vld [vmem:[%s37 + $0xf4] sm:$0xf]
    %v1434 = vld [vmem:[%s37 + $0xf8] sm:$0xf]
    %v1435 = vld [vmem:[%s37 + $0xfc] sm:$0xf]
    %v1436 = vld [vmem:[%s37 + $0x100] sm:$0xf]
    %v1437 = vld [vmem:[%s37 + $0x104] sm:$0xf]
    %v1438 = vld [vmem:[%s37 + $0x108] sm:$0xf]
    %v1439 = vld [vmem:[%s37 + $0x10c] sm:$0xf]
    %v1440 = vld [vmem:[%s37 + $0x110] sm:$0xf]
    %v1441 = vld [vmem:[%s37 + $0x114] sm:$0xf]
    %v1442 = vld [vmem:[%s37 + $0x118] sm:$0xf]
    %v1443 = vld [vmem:[%s37 + $0x11c] sm:$0xf]
    %v1444 = vld [vmem:[%s37 + $0x120] sm:$0xf]
    %v1445 = vld [vmem:[%s37 + $0x124] sm:$0xf]
    %v1446 = vld [vmem:[%s37 + $0x128] sm:$0xf]
    %v1447 = vld [vmem:[%s37 + $0x12c] sm:$0xf]
    %v1448 = vld [vmem:[%s37 + $0x130] sm:$0xf]
    %v1449 = vld [vmem:[%s37 + $0x134] sm:$0xf]
    %v1450 = vld [vmem:[%s37 + $0x138] sm:$0xf]
    %v1451 = vld [vmem:[%s37 + $0x13c] sm:$0xf]
    %v1452 = vld [vmem:[%s37 + $0x140] sm:$0xf]
    %v1453 = vld [vmem:[%s37 + $0x144] sm:$0xf]
    %v1454 = vld [vmem:[%s37 + $0x148] sm:$0xf]
    %v1455 = vld [vmem:[%s37 + $0x14c] sm:$0xf]
    %v1456 = vld [vmem:[%s37 + $0x150] sm:$0xf]
    %v1457 = vld [vmem:[%s37 + $0x154] sm:$0xf]
    %v1458 = vld [vmem:[%s37 + $0x158] sm:$0xf]
    %v1459 = vld [vmem:[%s37 + $0x15c] sm:$0xf]
    %v1460 = vld [vmem:[%s37 + $0x160] sm:$0xf]
    %v1461 = vld [vmem:[%s37 + $0x164] sm:$0xf]
    %v1462 = vld [vmem:[%s37 + $0x168] sm:$0xf]
    %v1463 = vld [vmem:[%s37 + $0x16c] sm:$0xf]
    %v1464 = vld [vmem:[%s37 + $0x170] sm:$0xf]
    %v1465 = vld [vmem:[%s37 + $0x174] sm:$0xf]
    %v1466 = vld [vmem:[%s37 + $0x178] sm:$0xf]
    %v1467 = vld [vmem:[%s37 + $0x17c] sm:$0xf]
    %v1468 = vld [vmem:[%s37 + $0x180] sm:$0xf]
    %v1469 = vld [vmem:[%s37 + $0x184] sm:$0xf]
    %v1470 = vld [vmem:[%s37 + $0x188] sm:$0xf]
    %v1471 = vld [vmem:[%s37 + $0x18c] sm:$0xf]
    %v1472 = vld [vmem:[%s37 + $0x190] sm:$0xf]
    %v1473 = vld [vmem:[%s37 + $0x194] sm:$0xf]
    %v1474 = vld [vmem:[%s37 + $0x198] sm:$0xf]
    %v1475 = vld [vmem:[%s37 + $0x19c] sm:$0xf]
    %v1476 = vld [vmem:[%s37 + $0x1a0] sm:$0xf]
    %v1477 = vld [vmem:[%s37 + $0x1a4] sm:$0xf]
    %v1478 = vld [vmem:[%s37 + $0x1a8] sm:$0xf]
    %v1479 = vld [vmem:[%s37 + $0x1ac] sm:$0xf]
    %v1480 = vld [vmem:[%s37 + $0x1b0] sm:$0xf]
    %v1481 = vld [vmem:[%s37 + $0x1b4] sm:$0xf]
    %v1482 = vld [vmem:[%s37 + $0x1b8] sm:$0xf]
    %v1483 = vld [vmem:[%s37 + $0x1bc] sm:$0xf]
    %v1484 = vld [vmem:[%s37 + $0x1c0] sm:$0xf]
    %v1485 = vld [vmem:[%s37 + $0x1c4] sm:$0xf]
    %v1486 = vld [vmem:[%s37 + $0x1c8] sm:$0xf]
    %v1487 = vld [vmem:[%s37 + $0x1cc] sm:$0xf]
    %v1488 = vld [vmem:[%s37 + $0x1d0] sm:$0xf]
    %v1489 = vld [vmem:[%s37 + $0x1d4] sm:$0xf]
    %v1490 = vld [vmem:[%s37 + $0x1d8] sm:$0xf]
    %v1491 = vld [vmem:[%s37 + $0x1dc] sm:$0xf]
    %v1492 = vld [vmem:[%s37 + $0x1e0] sm:$0xf]
    %v1493 = vld [vmem:[%s37 + $0x1e4] sm:$0xf]
    %v1494 = vld [vmem:[%s37 + $0x1e8] sm:$0xf]
    %v1495 = vld [vmem:[%s37 + $0x1ec] sm:$0xf]
    %v1496 = vld [vmem:[%s37 + $0x1f0] sm:$0xf]
    %v1497 = vld [vmem:[%s37 + $0x1f4] sm:$0xf]
    %v1498 = vld [vmem:[%s37 + $0x1f8] sm:$0xf]
    %v1499 = vld [vmem:[%s37 + $0x1fc] sm:$0xf]
    %v1500 = vld [vmem:[%s39] sm:$0x1]
    %v1502 = vlaneseq
    %v1503 = vshrl.u32 %v1502, 7
    %v1504 = vsub.s32 0, %v1503
    %v1505 = vrot.slane %v1500, %v1504
    %v1635 = vunpack.c.l.b16 %v1372
    %v1636 = vunpack.c.l.b16 %v1373
    %v1637 = vunpack.c.l.b16 %v1374
    %v1638 = vunpack.c.l.b16 %v1375
    %v1639 = vunpack.c.l.b16 %v1376
    %v1640 = vunpack.c.l.b16 %v1377
    %v1641 = vunpack.c.l.b16 %v1378
    %v1642 = vunpack.c.l.b16 %v1379
    %v1643 = vunpack.c.l.b16 %v1380
    %v1644 = vunpack.c.l.b16 %v1381
    %v1645 = vunpack.c.l.b16 %v1382
    %v1646 = vunpack.c.l.b16 %v1383
    %v1647 = vunpack.c.l.b16 %v1384
    %v1648 = vunpack.c.l.b16 %v1385
    %v1649 = vunpack.c.l.b16 %v1386
    %v1650 = vunpack.c.l.b16 %v1387
    %v1651 = vunpack.c.l.b16 %v1388
    %v1652 = vunpack.c.l.b16 %v1389
    %v1653 = vunpack.c.l.b16 %v1390
    %v1654 = vunpack.c.l.b16 %v1391
    %v1655 = vunpack.c.l.b16 %v1392
    %v1656 = vunpack.c.l.b16 %v1393
    %v1657 = vunpack.c.l.b16 %v1394
    %v1658 = vunpack.c.l.b16 %v1395
    %v1659 = vunpack.c.l.b16 %v1396
    %v1660 = vunpack.c.l.b16 %v1397
    %v1661 = vunpack.c.l.b16 %v1398
    %v1662 = vunpack.c.l.b16 %v1399
    %v1663 = vunpack.c.l.b16 %v1400
    %v1664 = vunpack.c.l.b16 %v1401
    %v1665 = vunpack.c.l.b16 %v1402
    %v1666 = vunpack.c.l.b16 %v1403
    %v1667 = vunpack.c.l.b16 %v1404
    %v1668 = vunpack.c.l.b16 %v1405
    %v1669 = vunpack.c.l.b16 %v1406
    %v1670 = vunpack.c.l.b16 %v1407
    %v1671 = vunpack.c.l.b16 %v1408
    %v1672 = vunpack.c.l.b16 %v1409
    %v1673 = vunpack.c.l.b16 %v1410
    %v1674 = vunpack.c.l.b16 %v1411
    %v1675 = vunpack.c.l.b16 %v1412
    %v1676 = vunpack.c.l.b16 %v1413
    %v1677 = vunpack.c.l.b16 %v1414
    %v1678 = vunpack.c.l.b16 %v1415
    %v1679 = vunpack.c.l.b16 %v1416
    %v1680 = vunpack.c.l.b16 %v1417
    %v1681 = vunpack.c.l.b16 %v1418
    %v1682 = vunpack.c.l.b16 %v1419
    %v1683 = vunpack.c.l.b16 %v1420
    %v1684 = vunpack.c.l.b16 %v1421
    %v1685 = vunpack.c.l.b16 %v1422
    %v1686 = vunpack.c.l.b16 %v1423
    %v1687 = vunpack.c.l.b16 %v1424
    %v1688 = vunpack.c.l.b16 %v1425
    %v1689 = vunpack.c.l.b16 %v1426
    %v1690 = vunpack.c.l.b16 %v1427
    %v1691 = vunpack.c.l.b16 %v1428
    %v1692 = vunpack.c.l.b16 %v1429
    %v1693 = vunpack.c.l.b16 %v1430
    %v1694 = vunpack.c.l.b16 %v1431
    %v1695 = vunpack.c.l.b16 %v1432
    %v1696 = vunpack.c.l.b16 %v1433
    %v1697 = vunpack.c.l.b16 %v1434
    %v1698 = vunpack.c.l.b16 %v1435
    %v1699 = vunpack.c.l.b16 %v1436
    %v1700 = vunpack.c.l.b16 %v1437
    %v1701 = vunpack.c.l.b16 %v1438
    %v1702 = vunpack.c.l.b16 %v1439
    %v1703 = vunpack.c.l.b16 %v1440
    %v1704 = vunpack.c.l.b16 %v1441
    %v1705 = vunpack.c.l.b16 %v1442
    %v1706 = vunpack.c.l.b16 %v1443
    %v1707 = vunpack.c.l.b16 %v1444
    %v1708 = vunpack.c.l.b16 %v1445
    %v1709 = vunpack.c.l.b16 %v1446
    %v1710 = vunpack.c.l.b16 %v1447
    %v1711 = vunpack.c.l.b16 %v1448
    %v1712 = vunpack.c.l.b16 %v1449
    %v1713 = vunpack.c.l.b16 %v1450
    %v1714 = vunpack.c.l.b16 %v1451
    %v1715 = vunpack.c.l.b16 %v1452
    %v1716 = vunpack.c.l.b16 %v1453
    %v1717 = vunpack.c.l.b16 %v1454
    %v1718 = vunpack.c.l.b16 %v1455
    %v1719 = vunpack.c.l.b16 %v1456
    %v1720 = vunpack.c.l.b16 %v1457
    %v1721 = vunpack.c.l.b16 %v1458
    %v1722 = vunpack.c.l.b16 %v1459
    %v1723 = vunpack.c.l.b16 %v1460
    %v1724 = vunpack.c.l.b16 %v1461
    %v1725 = vunpack.c.l.b16 %v1462
    %v1726 = vunpack.c.l.b16 %v1463
    %v1727 = vunpack.c.l.b16 %v1464
    %v1728 = vunpack.c.l.b16 %v1465
    %v1729 = vunpack.c.l.b16 %v1466
    %v1730 = vunpack.c.l.b16 %v1467
    %v1731 = vunpack.c.l.b16 %v1468
    %v1732 = vunpack.c.l.b16 %v1469
    %v1733 = vunpack.c.l.b16 %v1470
    %v1734 = vunpack.c.l.b16 %v1471
    %v1735 = vunpack.c.l.b16 %v1472
    %v1736 = vunpack.c.l.b16 %v1473
    %v1737 = vunpack.c.l.b16 %v1474
    %v1738 = vunpack.c.l.b16 %v1475
    %v1739 = vunpack.c.l.b16 %v1476
    %v1740 = vunpack.c.l.b16 %v1477
    %v1741 = vunpack.c.l.b16 %v1478
    %v1742 = vunpack.c.l.b16 %v1479
    %v1743 = vunpack.c.l.b16 %v1480
    %v1744 = vunpack.c.l.b16 %v1481
    %v1745 = vunpack.c.l.b16 %v1482
    %v1746 = vunpack.c.l.b16 %v1483
    %v1747 = vunpack.c.l.b16 %v1484
    %v1748 = vunpack.c.l.b16 %v1485
    %v1749 = vunpack.c.l.b16 %v1486
    %v1750 = vunpack.c.l.b16 %v1487
    %v1751 = vunpack.c.l.b16 %v1488
    %v1752 = vunpack.c.l.b16 %v1489
    %v1753 = vunpack.c.l.b16 %v1490
    %v1754 = vunpack.c.l.b16 %v1491
    %v1755 = vunpack.c.l.b16 %v1492
    %v1756 = vunpack.c.l.b16 %v1493
    %v1757 = vunpack.c.l.b16 %v1494
    %v1758 = vunpack.c.l.b16 %v1495
    %v1759 = vunpack.c.l.b16 %v1496
    %v1760 = vunpack.c.l.b16 %v1497
    %v1761 = vunpack.c.l.b16 %v1498
    %v1762 = vunpack.c.l.b16 %v1499
    %v1763 = vpack.c.b16 %v1636, %v1635
    %v1764 = vpack.c.b16 %v1638, %v1637
    %v1765 = vpack.c.b16 %v1640, %v1639
    %v1766 = vpack.c.b16 %v1642, %v1641
    %v1767 = vpack.c.b16 %v1644, %v1643
    %v1768 = vpack.c.b16 %v1646, %v1645
    %v1769 = vpack.c.b16 %v1648, %v1647
    %v1770 = vpack.c.b16 %v1650, %v1649
    %v1771 = vpack.c.b16 %v1652, %v1651
    %v1772 = vpack.c.b16 %v1654, %v1653
    %v1773 = vpack.c.b16 %v1656, %v1655
    %v1774 = vpack.c.b16 %v1658, %v1657
    %v1775 = vpack.c.b16 %v1660, %v1659
    %v1776 = vpack.c.b16 %v1662, %v1661
    %v1777 = vpack.c.b16 %v1664, %v1663
    %v1778 = vpack.c.b16 %v1666, %v1665
    %v1779 = vpack.c.b16 %v1668, %v1667
    %v1780 = vpack.c.b16 %v1670, %v1669
    %v1781 = vpack.c.b16 %v1672, %v1671
    %v1782 = vpack.c.b16 %v1674, %v1673
    %v1783 = vpack.c.b16 %v1676, %v1675
    %v1784 = vpack.c.b16 %v1678, %v1677
    %v1785 = vpack.c.b16 %v1680, %v1679
    %v1786 = vpack.c.b16 %v1682, %v1681
    %v1787 = vpack.c.b16 %v1684, %v1683
    %v1788 = vpack.c.b16 %v1686, %v1685
    %v1789 = vpack.c.b16 %v1688, %v1687
    %v1790 = vpack.c.b16 %v1690, %v1689
    %v1791 = vpack.c.b16 %v1692, %v1691
    %v1792 = vpack.c.b16 %v1694, %v1693
    %v1793 = vpack.c.b16 %v1696, %v1695
    %v1794 = vpack.c.b16 %v1698, %v1697
    %v1795 = vpack.c.b16 %v1700, %v1699
    %v1796 = vpack.c.b16 %v1702, %v1701
    %v1797 = vpack.c.b16 %v1704, %v1703
    %v1798 = vpack.c.b16 %v1706, %v1705
    %v1799 = vpack.c.b16 %v1708, %v1707
    %v1800 = vpack.c.b16 %v1710, %v1709
    %v1801 = vpack.c.b16 %v1712, %v1711
    %v1802 = vpack.c.b16 %v1714, %v1713
    %v1803 = vpack.c.b16 %v1716, %v1715
    %v1804 = vpack.c.b16 %v1718, %v1717
    %v1805 = vpack.c.b16 %v1720, %v1719
    %v1806 = vpack.c.b16 %v1722, %v1721
    %v1807 = vpack.c.b16 %v1724, %v1723
    %v1808 = vpack.c.b16 %v1726, %v1725
    %v1809 = vpack.c.b16 %v1728, %v1727
    %v1810 = vpack.c.b16 %v1730, %v1729
    %v1811 = vpack.c.b16 %v1732, %v1731
    %v1812 = vpack.c.b16 %v1734, %v1733
    %v1813 = vpack.c.b16 %v1736, %v1735
    %v1814 = vpack.c.b16 %v1738, %v1737
    %v1815 = vpack.c.b16 %v1740, %v1739
    %v1816 = vpack.c.b16 %v1742, %v1741
    %v1817 = vpack.c.b16 %v1744, %v1743
    %v1818 = vpack.c.b16 %v1746, %v1745
    %v1819 = vpack.c.b16 %v1748, %v1747
    %v1820 = vpack.c.b16 %v1750, %v1749
    %v1821 = vpack.c.b16 %v1752, %v1751
    %v1822 = vpack.c.b16 %v1754, %v1753
    %v1823 = vpack.c.b16 %v1756, %v1755
    %v1824 = vpack.c.b16 %v1758, %v1757
    %v1825 = vpack.c.b16 %v1760, %v1759
    %v1826 = vpack.c.b16 %v1762, %v1761
    %1891 = vmatprep.subr.bf16.mxu0 0
    %1892 = vmatpush1.bf16.msra.mxu0 %v1770
    %1893 = vmatprep.subr.bf16.mxu0 0
    %1894 = vmatpush1.bf16.msra.mxu0 %v1769
    %1895 = vmatprep.subr.bf16.mxu0 0
    %1896 = vmatpush1.bf16.msra.mxu0 %v1768
    %1897 = vmatprep.subr.bf16.mxu0 0
    %1898 = vmatpush1.bf16.msra.mxu0 %v1767
    %1899 = vmatprep.subr.bf16.mxu0 0
    %1900 = vmatpush1.bf16.msra.mxu0 %v1766
    %1901 = vmatprep.subr.bf16.mxu0 0
    %1902 = vmatpush1.bf16.msra.mxu0 %v1765
    %1903 = vmatprep.subr.bf16.mxu0 0
    %1904 = vmatpush1.bf16.msra.mxu0 %v1764
    %1905 = vmatprep.subr.bf16.mxu0 0
    %1906 = vmatpush1.bf16.msra.mxu0 %v1763
    %1907 = vmatprep.subr.bf16.mxu0 0
    %1908 = vmatpush2.bf16.msra.mxu0 %v1778
    %1909 = vmatprep.subr.bf16.mxu0 0
    %1910 = vmatpush2.bf16.msra.mxu0 %v1777
    %1911 = vmatprep.subr.bf16.mxu0 0
    %1912 = vmatpush2.bf16.msra.mxu0 %v1776
    %1913 = vmatprep.subr.bf16.mxu0 0
    %1914 = vmatpush2.bf16.msra.mxu0 %v1775
    %1915 = vmatprep.subr.bf16.mxu0 0
    %1916 = vmatpush2.bf16.msra.mxu0 %v1774
    %1917 = vmatprep.subr.bf16.mxu0 0
    %1918 = vmatpush2.bf16.msra.mxu0 %v1773
    %1919 = vmatprep.subr.bf16.mxu0 0
    %1920 = vmatpush2.bf16.msra.mxu0 %v1772
    %1921 = vmatprep.subr.bf16.mxu0 0
    %1922 = vmatpush2.bf16.msra.mxu0 %v1771
    %1923 = vmatprep.mubr.bf16.mxu0 %v1357
    %1924 = vmatmul.mubr.bf16.gmra.mxu0 %v1356
    %v1925 = vpop.f32.mrf.mxu0
    %v1926 = vadd.f32 %v1505, %v1925
    %v1927 = vpop.f32.mrf.mxu0
    %v1928 = vpop.f32.mrf.mxu0
    %v1929 = vadd.f32 %v1505, %v1928
    %v1930 = vpop.f32.mrf.mxu0
    %1931 = vmatprep.mubr.bf16.mxu0 %v1365
    %1932 = vmatmul.mubr.bf16.gmra.mxu0 %v1364
    %v1933 = vpop.f32.mrf.mxu0
    %v1934 = vadd.f32 %v1505, %v1933
    %v1935 = vpop.f32.mrf.mxu0
    %v1936 = vpop.f32.mrf.mxu0
    %v1937 = vpop.f32.mrf.mxu0
    %1938 = vdwg.mxu0
    %1939 = vmatprep.subr.bf16.mxu0 0
    %1940 = vmatpush1.bf16.msra.mxu0 %v1786
    %1941 = vmatprep.subr.bf16.mxu0 0
    %1942 = vmatpush1.bf16.msra.mxu0 %v1785
    %1943 = vmatprep.subr.bf16.mxu0 0
    %1944 = vmatpush1.bf16.msra.mxu0 %v1784
    %1945 = vmatprep.subr.bf16.mxu0 0
    %1946 = vmatpush1.bf16.msra.mxu0 %v1783
    %1947 = vmatprep.subr.bf16.mxu0 0
    %1948 = vmatpush1.bf16.msra.mxu0 %v1782
    %1949 = vmatprep.subr.bf16.mxu0 0
    %1950 = vmatpush1.bf16.msra.mxu0 %v1781
    %1951 = vmatprep.subr.bf16.mxu0 0
    %1952 = vmatpush1.bf16.msra.mxu0 %v1780
    %1953 = vmatprep.subr.bf16.mxu0 0
    %1954 = vmatpush1.bf16.msra.mxu0 %v1779
    %1955 = vmatprep.subr.bf16.mxu0 0
    %1956 = vmatpush2.bf16.msra.mxu0 %v1794
    %1957 = vmatprep.subr.bf16.mxu0 0
    %1958 = vmatpush2.bf16.msra.mxu0 %v1793
    %1959 = vmatprep.subr.bf16.mxu0 0
    %1960 = vmatpush2.bf16.msra.mxu0 %v1792
    %1961 = vmatprep.subr.bf16.mxu0 0
    %1962 = vmatpush2.bf16.msra.mxu0 %v1791
    %1963 = vmatprep.subr.bf16.mxu0 0
    %1964 = vmatpush2.bf16.msra.mxu0 %v1790
    %1965 = vmatprep.subr.bf16.mxu0 0
    %1966 = vmatpush2.bf16.msra.mxu0 %v1789
    %1967 = vmatprep.subr.bf16.mxu0 0
    %1968 = vmatpush2.bf16.msra.mxu0 %v1788
    %1969 = vmatprep.subr.bf16.mxu0 0
    %1970 = vmatpush2.bf16.msra.mxu0 %v1787
    %1971 = vmatprep.mubr.bf16.mxu0 %v1359
    %1972 = vmatmul.mubr.bf16.gmra.mxu0 %v1358
    %v1973 = vpop.f32.mrf.mxu0
    %v1974 = vadd.f32 %v1926, %v1973
    %v1975 = vpop.f32.mrf.mxu0
    %v1976 = vpop.f32.mrf.mxu0
    %v1977 = vadd.f32 %v1929, %v1976
    %v1978 = vpop.f32.mrf.mxu0
    %1979 = vmatprep.mubr.bf16.mxu0 %v1367
    %1980 = vmatmul.mubr.bf16.gmra.mxu0 %v1366
    %v1981 = vpop.f32.mrf.mxu0
    %v1982 = vadd.f32 %v1934, %v1981
    %v1983 = vpop.f32.mrf.mxu0
    %v1984 = vpop.f32.mrf.mxu0
    %v1985 = vpop.f32.mrf.mxu0
    %1986 = vdwg.mxu0
    %1987 = vmatprep.subr.bf16.mxu0 0
    %1988 = vmatpush1.bf16.msra.mxu0 %v1802
    %1989 = vmatprep.subr.bf16.mxu0 0
    %1990 = vmatpush1.bf16.msra.mxu0 %v1801
    %1991 = vmatprep.subr.bf16.mxu0 0
    %1992 = vmatpush1.bf16.msra.mxu0 %v1800
    %1993 = vmatprep.subr.bf16.mxu0 0
    %1994 = vmatpush1.bf16.msra.mxu0 %v1799
    %1995 = vmatprep.subr.bf16.mxu0 0
    %1996 = vmatpush1.bf16.msra.mxu0 %v1798
    %1997 = vmatprep.subr.bf16.mxu0 0
    %1998 = vmatpush1.bf16.msra.mxu0 %v1797
    %1999 = vmatprep.subr.bf16.mxu0 0
    %2000 = vmatpush1.bf16.msra.mxu0 %v1796
    %2001 = vmatprep.subr.bf16.mxu0 0
    %2002 = vmatpush1.bf16.msra.mxu0 %v1795
    %2003 = vmatprep.subr.bf16.mxu0 0
    %2004 = vmatpush2.bf16.msra.mxu0 %v1810
    %2005 = vmatprep.subr.bf16.mxu0 0
    %2006 = vmatpush2.bf16.msra.mxu0 %v1809
    %2007 = vmatprep.subr.bf16.mxu0 0
    %2008 = vmatpush2.bf16.msra.mxu0 %v1808
    %2009 = vmatprep.subr.bf16.mxu0 0
    %2010 = vmatpush2.bf16.msra.mxu0 %v1807
    %2011 = vmatprep.subr.bf16.mxu0 0
    %2012 = vmatpush2.bf16.msra.mxu0 %v1806
    %2013 = vmatprep.subr.bf16.mxu0 0
    %2014 = vmatpush2.bf16.msra.mxu0 %v1805
    %2015 = vmatprep.subr.bf16.mxu0 0
    %2016 = vmatpush2.bf16.msra.mxu0 %v1804
    %2017 = vmatprep.subr.bf16.mxu0 0
    %2018 = vmatpush2.bf16.msra.mxu0 %v1803
    %2019 = vmatprep.mubr.bf16.mxu0 %v1361
    %2020 = vmatmul.mubr.bf16.gmra.mxu0 %v1360
    %v2021 = vpop.f32.mrf.mxu0
    %v2022 = vadd.f32 %v1974, %v2021
    %v2023 = vpop.f32.mrf.mxu0
    %v2024 = vpop.f32.mrf.mxu0
    %v2025 = vadd.f32 %v1977, %v2024
    %v2026 = vpop.f32.mrf.mxu0
    %2027 = vmatprep.mubr.bf16.mxu0 %v1369
    %2028 = vmatmul.mubr.bf16.gmra.mxu0 %v1368
    %v2029 = vpop.f32.mrf.mxu0
    %v2030 = vadd.f32 %v1982, %v2029
    %v2031 = vpop.f32.mrf.mxu0
    %v2032 = vpop.f32.mrf.mxu0
    %v2033 = vpop.f32.mrf.mxu0
    %2034 = vdwg.mxu0
    %2035 = vmatprep.subr.bf16.mxu0 0
    %2036 = vmatpush1.bf16.msra.mxu0 %v1818
    %2037 = vmatprep.subr.bf16.mxu0 0
    %2038 = vmatpush1.bf16.msra.mxu0 %v1817
    %2039 = vmatprep.subr.bf16.mxu0 0
    %2040 = vmatpush1.bf16.msra.mxu0 %v1816
    %2041 = vmatprep.subr.bf16.mxu0 0
    %2042 = vmatpush1.bf16.msra.mxu0 %v1815
    %2043 = vmatprep.subr.bf16.mxu0 0
    %2044 = vmatpush1.bf16.msra.mxu0 %v1814
    %2045 = vmatprep.subr.bf16.mxu0 0
    %2046 = vmatpush1.bf16.msra.mxu0 %v1813
    %2047 = vmatprep.subr.bf16.mxu0 0
    %2048 = vmatpush1.bf16.msra.mxu0 %v1812
    %2049 = vmatprep.subr.bf16.mxu0 0
    %2050 = vmatpush1.bf16.msra.mxu0 %v1811
    %2051 = vmatprep.subr.bf16.mxu0 0
    %2052 = vmatpush2.bf16.msra.mxu0 %v1826
    %2053 = vmatprep.subr.bf16.mxu0 0
    %2054 = vmatpush2.bf16.msra.mxu0 %v1825
    %2055 = vmatprep.subr.bf16.mxu0 0
    %2056 = vmatpush2.bf16.msra.mxu0 %v1824
    %2057 = vmatprep.subr.bf16.mxu0 0
    %2058 = vmatpush2.bf16.msra.mxu0 %v1823
    %2059 = vmatprep.subr.bf16.mxu0 0
    %2060 = vmatpush2.bf16.msra.mxu0 %v1822
    %2061 = vmatprep.subr.bf16.mxu0 0
    %2062 = vmatpush2.bf16.msra.mxu0 %v1821
    %2063 = vmatprep.subr.bf16.mxu0 0
    %2064 = vmatpush2.bf16.msra.mxu0 %v1820
    %2065 = vmatprep.subr.bf16.mxu0 0
    %2066 = vmatpush2.bf16.msra.mxu0 %v1819
    %2067 = vmatprep.mubr.bf16.mxu0 %v1363
    %2068 = vmatmul.mubr.bf16.gmra.mxu0 %v1362
    %v2069 = vpop.f32.mrf.mxu0
    %v2070 = vadd.f32 %v2022, %v2069
    %v2071 = vpop.f32.mrf.mxu0
    %v2072 = vpop.f32.mrf.mxu0
    %v2073 = vadd.f32 %v2025, %v2072
    %v2074 = vpop.f32.mrf.mxu0
    %2075 = vmatprep.mubr.bf16.mxu0 %v1371
    %2076 = vmatmul.mubr.bf16.gmra.mxu0 %v1370
    %v2077 = vpop.f32.mrf.mxu0
    %v2078 = vadd.f32 %v2030, %v2077
    %v2079 = vpop.f32.mrf.mxu0
    %v2080 = vpop.f32.mrf.mxu0
    %v2081 = vpop.f32.mrf.mxu0
    %2082 = vdwg.mxu0
    %v2083 = vadd.f32 %v979, %v2070
    %v2084 = vadd.f32 %v980, %v2073
    %v2085 = vadd.f32 %v981, %v2078
    %v2086 = vld [vmem:[%s41] sm:$0x1]
    %v2087 = vmul.f32 %v2083, %v2083
    %v2088 = vmul.f32 %v2084, %v2084
    %v2089 = vmul.f32 %v2085, %v2085
    %v2090 = vsel %vm189, %v2087, 0.0
    %2091 = vadd.xlane.f32.xlu0 %v2090
    %v2092 = vpop.xlane.xlu0 %2091
    %v2093 = vsel %vm189, %v2088, 0.0
    %2094 = vadd.xlane.f32.xlu0 %v2093
    %v2095 = vpop.xlane.xlu0 %2094
    %v2096 = vsel %vm196, %v2089, 0.0
    %2097 = vadd.xlane.f32.xlu0 %v2096
    %v2098 = vpop.xlane.xlu0 %2097
    %v2099 = vmul.f32 %v2092, %v200
    %v2100 = vmul.f32 %v2095, %v200
    %v2101 = vmul.f32 %v2098, %v200
    %v2102 = vadd.f32 %v2099, 1e-06
    %v2103 = vadd.f32 %v2100, 1e-06
    %v2104 = vadd.f32 %v2101, 1e-06
    %v2105 = vrsqrt.pop %v2102
    %v2106 = vrsqrt.pop %v2103
    %v2107 = vrsqrt.pop %v2104
    %v2108 = vmul.f32 %v2083, %v2105
    %v2109 = vmul.f32 %v2084, %v2106
    %v2110 = vmul.f32 %v2085, %v2107
    %v2112 = vlaneseq
    %v2113 = vshrl.u32 %v2112, 7
    %v2114 = vsub.s32 0, %v2113
    %v2115 = vrot.slane %v2086, %v2114
    %v2117 = vmul.f32 %v2108, %v2115
    %v2118 = vmul.f32 %v2109, %v2115
    %v2119 = vmul.f32 %v2110, %v2115
    %v2120 = vld [vmem:[%s43] sm:$0x1]
    %v2121 = vmul.f32 %v2117, %v2117
    %v2122 = vmul.f32 %v2118, %v2118
    %v2123 = vmul.f32 %v2119, %v2119
    %v2124 = vsel %vm189, %v2121, 0.0
    %2125 = vadd.xlane.f32.xlu0 %v2124
    %v2126 = vpop.xlane.xlu0 %2125
    %v2127 = vsel %vm189, %v2122, 0.0
    %2128 = vadd.xlane.f32.xlu0 %v2127
    %v2129 = vpop.xlane.xlu0 %2128
    %v2130 = vsel %vm196, %v2123, 0.0
    %2131 = vadd.xlane.f32.xlu0 %v2130
    %v2132 = vpop.xlane.xlu0 %2131
    %v2133 = vmul.f32 %v2126, %v200
    %v2134 = vmul.f32 %v2129, %v200
    %v2135 = vmul.f32 %v2132, %v200
    %v2136 = vadd.f32 %v2133, 1e-06
    %v2137 = vadd.f32 %v2134, 1e-06
    %v2138 = vadd.f32 %v2135, 1e-06
    %v2139 = vrsqrt.pop %v2136
    %v2140 = vrsqrt.pop %v2137
    %v2141 = vrsqrt.pop %v2138
    %v2142 = vmul.f32 %v2117, %v2139
    %v2143 = vmul.f32 %v2118, %v2140
    %v2144 = vmul.f32 %v2119, %v2141
    %v2146 = vlaneseq
    %v2147 = vshrl.u32 %v2146, 7
    %v2148 = vsub.s32 0, %v2147
    %v2149 = vrot.slane %v2120, %v2148
    %v2151 = vmul.f32 %v2142, %v2149
    %v2152 = vmul.f32 %v2143, %v2149
    %v2153 = vmul.f32 %v2144, %v2149
    %v2154 = vpack.c.bf16 %v2152, %v2151
    %v2155 = vpack.c.bf16 %v2153, %v2153
    %v2156 = vpack.c.bf16 %v379, %v376
    %v2157 = vld [vmem:[%s45] sm:$0xf]
    %v2158 = vld [vmem:[%s45 + $0x4] sm:$0xf]
    %v2159 = vld [vmem:[%s45 + $0x8] sm:$0xf]
    %v2160 = vld [vmem:[%s45 + $0xc] sm:$0xf]
    %v2161 = vld [vmem:[%s47] sm:$0x1]
    %v2163 = vlaneseq
    %v2164 = vshrl.u32 %v2163, 7
    %v2165 = vsub.s32 0, %v2164
    %v2166 = vrot.slane %v2161, %v2165
    %v2172 = vunpack.c.l.b16 %v2157
    %v2173 = vunpack.c.l.b16 %v2158
    %v2174 = vunpack.c.l.b16 %v2159
    %v2175 = vunpack.c.l.b16 %v2160
    %v2176 = vpack.c.b16 %v2173, %v2172
    %v2177 = vpack.c.b16 %v2175, %v2174
    %v2181 = vsel %vm189, %v2156, 0
    %2183 = vmatprep.subr.bf16.mxu0 0
    %2184 = vmatpush1.bf16.msra.mxu0 0
    %2185 = vmatprep.subr.bf16.mxu0 0
    %2186 = vmatpush1.bf16.msra.mxu0 0
    %2187 = vmatprep.subr.bf16.mxu0 0
    %2188 = vmatpush1.bf16.msra.mxu0 0
    %2189 = vmatprep.subr.bf16.mxu0 0
    %2190 = vmatpush1.bf16.msra.mxu0 0
    %2191 = vmatprep.subr.bf16.mxu0 0
    %2192 = vmatpush1.bf16.msra.mxu0 0
    %2193 = vmatprep.subr.bf16.mxu0 0
    %2194 = vmatpush1.bf16.msra.mxu0 0
    %2195 = vmatprep.subr.bf16.mxu0 0
    %2196 = vmatpush1.bf16.msra.mxu0 %v2177
    %2197 = vmatprep.subr.bf16.mxu0 0
    %2198 = vmatpush1.bf16.msra.mxu0 %v2176
    %2199 = vmatprep.subr.bf16.mxu0 0
    %2200 = vmatpush2.bf16.msra.mxu0 0
    %2201 = vmatprep.subr.bf16.mxu0 0
    %2202 = vmatpush2.bf16.msra.mxu0 0
    %2203 = vmatprep.subr.bf16.mxu0 0
    %2204 = vmatpush2.bf16.msra.mxu0 0
    %2205 = vmatprep.subr.bf16.mxu0 0
    %2206 = vmatpush2.bf16.msra.mxu0 0
    %2207 = vmatprep.subr.bf16.mxu0 0
    %2208 = vmatpush2.bf16.msra.mxu0 0
    %2209 = vmatprep.subr.bf16.mxu0 0
    %2210 = vmatpush2.bf16.msra.mxu0 0
    %2211 = vmatprep.subr.bf16.mxu0 0
    %2212 = vmatpush2.bf16.msra.mxu0 0
    %2213 = vmatprep.subr.bf16.mxu0 0
    %2214 = vmatpush2.bf16.msra.mxu0 0
    %2215 = vmatprep.mubr.bf16.mxu0 0
    %2216 = vmatmul.mubr.bf16.gmra.mxu0 %v2181
    %v2217 = vpop.f32.mrf.mxu0
    %v2218 = vadd.f32 %v2166, %v2217
    %v2219 = vpop.f32.mrf.mxu0
    %v2220 = vpop.f32.mrf.mxu0
    %v2221 = vadd.f32 %v2166, %v2220
    %v2222 = vpop.f32.mrf.mxu0
    %2223 = vdwg.mxu0
    %v2224 = vld [vmem:[%s49] sm:$0xf]
    %v2225 = vld [vmem:[%s49 + $0x4] sm:$0xf]
    %v2226 = vld [vmem:[%s49 + $0x8] sm:$0xf]
    %v2227 = vld [vmem:[%s49 + $0xc] sm:$0xf]
    %v2228 = vpack.c.bf16 %v2221, %v2218
    %2230 = vrot.lane.b32.xlu0 %v2228, 96
    %v2231 = vpop.permute.xlu0 %2230
    %v2233 = vsel %vm473, %v2228, 0
    %v2236 = vsel %vm473, %v2231, 0
    %2238 = vmatprep.subr.bf16.mxu0 0
    %2239 = vmatpush1.bf16.xpose.msra.mxu0 0
    %2240 = vmatprep.subr.bf16.mxu0 0
    %2241 = vmatpush1.bf16.xpose.msra.mxu0 0
    %2242 = vmatprep.subr.bf16.mxu0 0
    %2243 = vmatpush1.bf16.xpose.msra.mxu0 0
    %2244 = vmatprep.subr.bf16.mxu0 0
    %2245 = vmatpush1.bf16.xpose.msra.mxu0 0
    %2246 = vmatprep.subr.bf16.mxu0 0
    %2247 = vmatpush1.bf16.xpose.msra.mxu0 0
    %2248 = vmatprep.subr.bf16.mxu0 0
    %2249 = vmatpush1.bf16.xpose.msra.mxu0 0
    %2250 = vmatprep.subr.bf16.mxu0 0
    %2251 = vmatpush1.bf16.xpose.msra.mxu0 0
    %2252 = vmatprep.subr.bf16.mxu0 0
    %2253 = vmatpush1.bf16.xpose.msra.mxu0 %v2236
    %2254 = vmatprep.subr.bf16.mxu0 0
    %2255 = vmatpush2.bf16.xpose.msra.mxu0 0
    %2256 = vmatprep.subr.bf16.mxu0 0
    %2257 = vmatpush2.bf16.xpose.msra.mxu0 0
    %2258 = vmatprep.subr.bf16.mxu0 0
    %2259 = vmatpush2.bf16.xpose.msra.mxu0 0
    %2260 = vmatprep.subr.bf16.mxu0 0
    %2261 = vmatpush2.bf16.xpose.msra.mxu0 0
    %2262 = vmatprep.subr.bf16.mxu0 0
    %2263 = vmatpush2.bf16.xpose.msra.mxu0 0
    %2264 = vmatprep.subr.bf16.mxu0 0
    %2265 = vmatpush2.bf16.xpose.msra.mxu0 0
    %2266 = vmatprep.subr.bf16.mxu0 0
    %2267 = vmatpush2.bf16.xpose.msra.mxu0 0
    %2268 = vmatprep.subr.bf16.mxu0 0
    %2269 = vmatpush2.bf16.xpose.msra.mxu0 0
    %2270 = vmatprep.mubr.bf16.mxu0 0
    %2271 = vmatmul.mubr.bf16.gmra.mxu0 %v2233
    %v2272 = vpop.f32.mrf.mxu0
    %v2273 = vadd.f32 0.0, %v2272
    %v2274 = vpop.f32.mrf.mxu0
    %v2275 = vpop.f32.mrf.mxu0
    %v2276 = vadd.f32 0.0, %v2275
    %v2277 = vpop.f32.mrf.mxu0
    %2278 = vdwg.mxu0
    %v2279 = vmul.f32 %v2273, 0.25
    %v2280 = vmul.f32 %v2276, 0.25
    %v2281 = vadd.f32 %v2279, %v178
    %v2282 = vadd.f32 %v2280, %v179
    %vm2283 = vcmask 80896
    %v2284 = vsel %vm2283, %v2281, -inf
    %2285 = vmax.xlane.f32.xlu0 %v2284
    %v2286 = vpop.xlane.xlu0 %2285
    %vm2287 = vcmask 74752
    %v2288 = vsel %vm2287, %v2282, -inf
    %2289 = vmax.xlane.f32.xlu0 %v2288
    %v2290 = vpop.xlane.xlu0 %2289
    %v2291 = vsub.f32 %v2281, %v2286
    %v2292 = vsub.f32 %v2282, %v2290
    %v2293 = vmul.f32 %v2291, 1.442695
    %v2294 = vpow.pop %v2293
    %v2295 = vmul.f32 %v2292, 1.442695
    %v2296 = vpow.pop %v2295
    %v2297 = vsel %vm2283, %v2294, 0.0
    %2298 = vadd.xlane.f32.xlu0 %v2297
    %v2299 = vpop.xlane.xlu0 %2298
    %v2300 = vsel %vm2287, %v2296, 0.0
    %2301 = vadd.xlane.f32.xlu0 %v2300
    %v2302 = vpop.xlane.xlu0 %2301
    %v2303 = vrcp.pop %v2299
    %v2304 = vmul.f32 %v2294, %v2303
    %v2305 = vrcp.pop %v2302
    %v2306 = vmul.f32 %v2296, %v2305
    %v2307 = vpack.c.bf16 %v2306, %v2304
    %2308 = vrot.lane.b32.xlu0 %v2228, 64
    %v2309 = vpop.permute.xlu0 %2308
    %v2311 = vsel %vm2283, %v2307, 0
    %vm2313 = vcmask 1044480
    %v2315 = vsel %vm2313, %v2309, 0
    %2317 = vmatprep.subr.bf16.mxu0 0
    %2318 = vmatpush1.bf16.msra.mxu0 0
    %2319 = vmatprep.subr.bf16.mxu0 0
    %2320 = vmatpush1.bf16.msra.mxu0 0
    %2321 = vmatprep.subr.bf16.mxu0 0
    %2322 = vmatpush1.bf16.msra.mxu0 0
    %2323 = vmatprep.subr.bf16.mxu0 0
    %2324 = vmatpush1.bf16.msra.mxu0 0
    %2325 = vmatprep.subr.bf16.mxu0 0
    %2326 = vmatpush1.bf16.msra.mxu0 0
    %2327 = vmatprep.subr.bf16.mxu0 0
    %2328 = vmatpush1.bf16.msra.mxu0 0
    %2329 = vmatprep.subr.bf16.mxu0 0
    %2330 = vmatpush1.bf16.msra.mxu0 0
    %2331 = vmatprep.subr.bf16.mxu0 0
    %2332 = vmatpush1.bf16.msra.mxu0 %v2315
    %2333 = vmatprep.subr.bf16.mxu0 0
    %2334 = vmatpush2.bf16.msra.mxu0 0
    %2335 = vmatprep.subr.bf16.mxu0 0
    %2336 = vmatpush2.bf16.msra.mxu0 0
    %2337 = vmatprep.subr.bf16.mxu0 0
    %2338 = vmatpush2.bf16.msra.mxu0 0
    %2339 = vmatprep.subr.bf16.mxu0 0
    %2340 = vmatpush2.bf16.msra.mxu0 0
    %2341 = vmatprep.subr.bf16.mxu0 0
    %2342 = vmatpush2.bf16.msra.mxu0 0
    %2343 = vmatprep.subr.bf16.mxu0 0
    %2344 = vmatpush2.bf16.msra.mxu0 0
    %2345 = vmatprep.subr.bf16.mxu0 0
    %2346 = vmatpush2.bf16.msra.mxu0 0
    %2347 = vmatprep.subr.bf16.mxu0 0
    %2348 = vmatpush2.bf16.msra.mxu0 0
    %2349 = vmatprep.mubr.bf16.mxu0 0
    %2350 = vmatmul.mubr.bf16.gmra.mxu0 %v2311
    %v2351 = vpop.f32.mrf.mxu0
    %v2352 = vadd.f32 0.0, %v2351
    %v2353 = vpop.f32.mrf.mxu0
    %v2354 = vpop.f32.mrf.mxu0
    %v2355 = vadd.f32 0.0, %v2354
    %v2356 = vpop.f32.mrf.mxu0
    %2357 = vdwg.mxu0
    %v2358 = vpack.c.bf16 %v2355, %v2352
    %2359 = vrot.lane.b32.xlu0 %v2228, 112
    %v2360 = vpop.permute.xlu0 %2359
    %2361 = vrot.lane.b32.xlu0 %v2228, 80
    %v2362 = vpop.permute.xlu0 %2361
    %v2364 = vsel %vm473, %v2360, 0
    %v2367 = vsel %vm473, %v2362, 0
    %2369 = vmatprep.subr.bf16.mxu0 0
    %2370 = vmatpush1.bf16.xpose.msra.mxu0 0
    %2371 = vmatprep.subr.bf16.mxu0 0
    %2372 = vmatpush1.bf16.xpose.msra.mxu0 0
    %2373 = vmatprep.subr.bf16.mxu0 0
    %2374 = vmatpush1.bf16.xpose.msra.mxu0 0
    %2375 = vmatprep.subr.bf16.mxu0 0
    %2376 = vmatpush1.bf16.xpose.msra.mxu0 0
    %2377 = vmatprep.subr.bf16.mxu0 0
    %2378 = vmatpush1.bf16.xpose.msra.mxu0 0
    %2379 = vmatprep.subr.bf16.mxu0 0
    %2380 = vmatpush1.bf16.xpose.msra.mxu0 0
    %2381 = vmatprep.subr.bf16.mxu0 0
    %2382 = vmatpush1.bf16.xpose.msra.mxu0 0
    %2383 = vmatprep.subr.bf16.mxu0 0
    %2384 = vmatpush1.bf16.xpose.msra.mxu0 %v2367
    %2385 = vmatprep.subr.bf16.mxu0 0
    %2386 = vmatpush2.bf16.xpose.msra.mxu0 0
    %2387 = vmatprep.subr.bf16.mxu0 0
    %2388 = vmatpush2.bf16.xpose.msra.mxu0 0
    %2389 = vmatprep.subr.bf16.mxu0 0
    %2390 = vmatpush2.bf16.xpose.msra.mxu0 0
    %2391 = vmatprep.subr.bf16.mxu0 0
    %2392 = vmatpush2.bf16.xpose.msra.mxu0 0
    %2393 = vmatprep.subr.bf16.mxu0 0
    %2394 = vmatpush2.bf16.xpose.msra.mxu0 0
    %2395 = vmatprep.subr.bf16.mxu0 0
    %2396 = vmatpush2.bf16.xpose.msra.mxu0 0
    %2397 = vmatprep.subr.bf16.mxu0 0
    %2398 = vmatpush2.bf16.xpose.msra.mxu0 0
    %2399 = vmatprep.subr.bf16.mxu0 0
    %2400 = vmatpush2.bf16.xpose.msra.mxu0 0
    %2401 = vmatprep.mubr.bf16.mxu0 0
    %2402 = vmatmul.mubr.bf16.gmra.mxu0 %v2364
    %v2403 = vpop.f32.mrf.mxu0
    %v2404 = vadd.f32 0.0, %v2403
    %v2405 = vpop.f32.mrf.mxu0
    %v2406 = vpop.f32.mrf.mxu0
    %v2407 = vadd.f32 0.0, %v2406
    %v2408 = vpop.f32.mrf.mxu0
    %2409 = vdwg.mxu0
    %v2410 = vmul.f32 %v2404, 0.25
    %v2411 = vmul.f32 %v2407, 0.25
    %v2412 = vadd.f32 %v2410, %v178
    %v2413 = vadd.f32 %v2411, %v179
    %v2414 = vsel %vm2283, %v2412, -inf
    %2415 = vmax.xlane.f32.xlu0 %v2414
    %v2416 = vpop.xlane.xlu0 %2415
    %v2417 = vsel %vm2287, %v2413, -inf
    %2418 = vmax.xlane.f32.xlu0 %v2417
    %v2419 = vpop.xlane.xlu0 %2418
    %v2420 = vsub.f32 %v2412, %v2416
    %v2421 = vsub.f32 %v2413, %v2419
    %v2422 = vmul.f32 %v2420, 1.442695
    %v2423 = vpow.pop %v2422
    %v2424 = vmul.f32 %v2421, 1.442695
    %v2425 = vpow.pop %v2424
    %v2426 = vsel %vm2283, %v2423, 0.0
    %2427 = vadd.xlane.f32.xlu0 %v2426
    %v2428 = vpop.xlane.xlu0 %2427
    %v2429 = vsel %vm2287, %v2425, 0.0
    %2430 = vadd.xlane.f32.xlu0 %v2429
    %v2431 = vpop.xlane.xlu0 %2430
    %v2432 = vrcp.pop %v2428
    %v2433 = vmul.f32 %v2423, %v2432
    %v2434 = vrcp.pop %v2431
    %v2435 = vmul.f32 %v2425, %v2434
    %v2436 = vpack.c.bf16 %v2435, %v2433
    %2437 = vrot.lane.b32.xlu0 %v2228, 48
    %v2438 = vpop.permute.xlu0 %2437
    %v2440 = vsel %vm2283, %v2436, 0
    %v2443 = vsel %vm2313, %v2438, 0
    %2445 = vmatprep.subr.bf16.mxu0 0
    %2446 = vmatpush1.bf16.msra.mxu0 0
    %2447 = vmatprep.subr.bf16.mxu0 0
    %2448 = vmatpush1.bf16.msra.mxu0 0
    %2449 = vmatprep.subr.bf16.mxu0 0
    %2450 = vmatpush1.bf16.msra.mxu0 0
    %2451 = vmatprep.subr.bf16.mxu0 0
    %2452 = vmatpush1.bf16.msra.mxu0 0
    %2453 = vmatprep.subr.bf16.mxu0 0
    %2454 = vmatpush1.bf16.msra.mxu0 0
    %2455 = vmatprep.subr.bf16.mxu0 0
    %2456 = vmatpush1.bf16.msra.mxu0 0
    %2457 = vmatprep.subr.bf16.mxu0 0
    %2458 = vmatpush1.bf16.msra.mxu0 0
    %2459 = vmatprep.subr.bf16.mxu0 0
    %2460 = vmatpush1.bf16.msra.mxu0 %v2443
    %2461 = vmatprep.subr.bf16.mxu0 0
    %2462 = vmatpush2.bf16.msra.mxu0 0
    %2463 = vmatprep.subr.bf16.mxu0 0
    %2464 = vmatpush2.bf16.msra.mxu0 0
    %2465 = vmatprep.subr.bf16.mxu0 0
    %2466 = vmatpush2.bf16.msra.mxu0 0
    %2467 = vmatprep.subr.bf16.mxu0 0
    %2468 = vmatpush2.bf16.msra.mxu0 0
    %2469 = vmatprep.subr.bf16.mxu0 0
    %2470 = vmatpush2.bf16.msra.mxu0 0
    %2471 = vmatprep.subr.bf16.mxu0 0
    %2472 = vmatpush2.bf16.msra.mxu0 0
    %2473 = vmatprep.subr.bf16.mxu0 0
    %2474 = vmatpush2.bf16.msra.mxu0 0
    %2475 = vmatprep.subr.bf16.mxu0 0
    %2476 = vmatpush2.bf16.msra.mxu0 0
    %2477 = vmatprep.mubr.bf16.mxu0 0
    %2478 = vmatmul.mubr.bf16.gmra.mxu0 %v2440
    %v2479 = vpop.f32.mrf.mxu0
    %v2480 = vadd.f32 0.0, %v2479
    %v2481 = vpop.f32.mrf.mxu0
    %v2482 = vpop.f32.mrf.mxu0
    %v2483 = vadd.f32 0.0, %v2482
    %v2484 = vpop.f32.mrf.mxu0
    %2485 = vdwg.mxu0
    %v2486 = vpack.c.bf16 %v2483, %v2480
    %v2489 = vunpack.c.l.b16 %v2226
    %v2490 = vunpack.c.l.b16 %v2227
    %v2491 = vpack.c.b16 %v2490, %v2489
    %v2494 = vsel %vm473, %v2486, 0
    %2496 = vmatprep.subr.bf16.mxu0 0
    %2497 = vmatpush1.bf16.msra.mxu0 0
    %2498 = vmatprep.subr.bf16.mxu0 0
    %2499 = vmatpush1.bf16.msra.mxu0 0
    %2500 = vmatprep.subr.bf16.mxu0 0
    %2501 = vmatpush1.bf16.msra.mxu0 0
    %2502 = vmatprep.subr.bf16.mxu0 0
    %2503 = vmatpush1.bf16.msra.mxu0 0
    %2504 = vmatprep.subr.bf16.mxu0 0
    %2505 = vmatpush1.bf16.msra.mxu0 0
    %2506 = vmatprep.subr.bf16.mxu0 0
    %2507 = vmatpush1.bf16.msra.mxu0 0
    %2508 = vmatprep.subr.bf16.mxu0 0
    %2509 = vmatpush1.bf16.msra.mxu0 0
    %2510 = vmatprep.subr.bf16.mxu0 0
    %2511 = vmatpush1.bf16.msra.mxu0 %v2491
    %2512 = vmatprep.subr.bf16.mxu0 0
    %2513 = vmatpush2.bf16.msra.mxu0 0
    %2514 = vmatprep.subr.bf16.mxu0 0
    %2515 = vmatpush2.bf16.msra.mxu0 0
    %2516 = vmatprep.subr.bf16.mxu0 0
    %2517 = vmatpush2.bf16.msra.mxu0 0
    %2518 = vmatprep.subr.bf16.mxu0 0
    %2519 = vmatpush2.bf16.msra.mxu0 0
    %2520 = vmatprep.subr.bf16.mxu0 0
    %2521 = vmatpush2.bf16.msra.mxu0 0
    %2522 = vmatprep.subr.bf16.mxu0 0
    %2523 = vmatpush2.bf16.msra.mxu0 0
    %2524 = vmatprep.subr.bf16.mxu0 0
    %2525 = vmatpush2.bf16.msra.mxu0 0
    %2526 = vmatprep.subr.bf16.mxu0 0
    %2527 = vmatpush2.bf16.msra.mxu0 0
    %2528 = vmatprep.mubr.bf16.mxu0 0
    %2529 = vmatmul.mubr.bf16.gmra.mxu0 %v2494
    %v2530 = vpop.f32.mrf.mxu0
    %v2531 = vadd.f32 0.0, %v2530
    %v2532 = vpop.f32.mrf.mxu0
    %v2533 = vpop.f32.mrf.mxu0
    %v2534 = vadd.f32 0.0, %v2533
    %v2535 = vpop.f32.mrf.mxu0
    %2536 = vdwg.mxu0
    %v2539 = vunpack.c.l.b16 %v2224
    %v2540 = vunpack.c.l.b16 %v2225
    %v2541 = vpack.c.b16 %v2540, %v2539
    %v2544 = vsel %vm473, %v2358, 0
    %2546 = vmatprep.subr.bf16.mxu0 0
    %2547 = vmatpush1.bf16.msra.mxu0 0
    %2548 = vmatprep.subr.bf16.mxu0 0
    %2549 = vmatpush1.bf16.msra.mxu0 0
    %2550 = vmatprep.subr.bf16.mxu0 0
    %2551 = vmatpush1.bf16.msra.mxu0 0
    %2552 = vmatprep.subr.bf16.mxu0 0
    %2553 = vmatpush1.bf16.msra.mxu0 0
    %2554 = vmatprep.subr.bf16.mxu0 0
    %2555 = vmatpush1.bf16.msra.mxu0 0
    %2556 = vmatprep.subr.bf16.mxu0 0
    %2557 = vmatpush1.bf16.msra.mxu0 0
    %2558 = vmatprep.subr.bf16.mxu0 0
    %2559 = vmatpush1.bf16.msra.mxu0 0
    %2560 = vmatprep.subr.bf16.mxu0 0
    %2561 = vmatpush1.bf16.msra.mxu0 %v2541
    %2562 = vmatprep.subr.bf16.mxu0 0
    %2563 = vmatpush2.bf16.msra.mxu0 0
    %2564 = vmatprep.subr.bf16.mxu0 0
    %2565 = vmatpush2.bf16.msra.mxu0 0
    %2566 = vmatprep.subr.bf16.mxu0 0
    %2567 = vmatpush2.bf16.msra.mxu0 0
    %2568 = vmatprep.subr.bf16.mxu0 0
    %2569 = vmatpush2.bf16.msra.mxu0 0
    %2570 = vmatprep.subr.bf16.mxu0 0
    %2571 = vmatpush2.bf16.msra.mxu0 0
    %2572 = vmatprep.subr.bf16.mxu0 0
    %2573 = vmatpush2.bf16.msra.mxu0 0
    %2574 = vmatprep.subr.bf16.mxu0 0
    %2575 = vmatpush2.bf16.msra.mxu0 0
    %2576 = vmatprep.subr.bf16.mxu0 0
    %2577 = vmatpush2.bf16.msra.mxu0 0
    %2578 = vmatprep.mubr.bf16.mxu0 0
    %2579 = vmatmul.mubr.bf16.gmra.mxu0 %v2544
    %v2580 = vpop.f32.mrf.mxu0
    %v2581 = vadd.f32 %v2531, %v2580
    %v2582 = vpop.f32.mrf.mxu0
    %v2583 = vpop.f32.mrf.mxu0
    %v2584 = vadd.f32 %v2534, %v2583
    %v2585 = vpop.f32.mrf.mxu0
    %2586 = vdwg.mxu0
    %v2587 = vld [vmem:[%s51] sm:$0x1]
    %v2589 = vlaneseq
    %v2590 = vshrl.u32 %v2589, 7
    %v2591 = vsub.s32 0, %v2590
    %v2592 = vrot.slane %v2587, %v2591
    %v2594 = vadd.f32 %v2581, %v2592
    %v2595 = vadd.f32 %v2584, %v2592
    %v2596 = vadd.f32 %v376, %v2594
    %v2597 = vadd.f32 %v379, %v2595
    %v2598 = vld [vmem:[%s53] sm:$0x1]
    %v2599 = vmul.f32 %v2596, %v2596
    %v2600 = vmul.f32 %v2597, %v2597
    %v2601 = vsel %vm189, %v2599, 0.0
    %2602 = vadd.xlane.f32.xlu0 %v2601
    %v2603 = vpop.xlane.xlu0 %2602
    %v2604 = vsel %vm196, %v2600, 0.0
    %2605 = vadd.xlane.f32.xlu0 %v2604
    %v2606 = vpop.xlane.xlu0 %2605
    %v2607 = vmul.f32 %v2603, %v200
    %v2608 = vmul.f32 %v2606, %v200
    %v2609 = vadd.f32 %v2607, 1e-06
    %v2610 = vadd.f32 %v2608, 1e-06
    %v2611 = vrsqrt.pop %v2609
    %v2612 = vrsqrt.pop %v2610
    %v2613 = vmul.f32 %v2596, %v2611
    %v2614 = vmul.f32 %v2597, %v2612
    %v2616 = vlaneseq
    %v2617 = vshrl.u32 %v2616, 7
    %v2618 = vsub.s32 0, %v2617
    %v2619 = vrot.slane %v2598, %v2618
    %v2621 = vmul.f32 %v2613, %v2619
    %v2622 = vmul.f32 %v2614, %v2619
    %v2623 = vpack.c.bf16 %v2622, %v2621
    %v2624 = vld [vmem:[%s55] sm:$0xf]
    %v2625 = vld [vmem:[%s55 + $0x4] sm:$0xf]
    %v2626 = vld [vmem:[%s55 + $0x8] sm:$0xf]
    %v2627 = vld [vmem:[%s55 + $0xc] sm:$0xf]
    %v2628 = vld [vmem:[%s57] sm:$0x1]
    %v2630 = vlaneseq
    %v2631 = vshrl.u32 %v2630, 7
    %v2632 = vsub.s32 0, %v2631
    %v2633 = vrot.slane %v2628, %v2632
    %v2639 = vunpack.c.l.b16 %v2624
    %v2640 = vunpack.c.l.b16 %v2625
    %v2641 = vunpack.c.l.b16 %v2626
    %v2642 = vunpack.c.l.b16 %v2627
    %v2643 = vpack.c.b16 %v2640, %v2639
    %v2644 = vpack.c.b16 %v2642, %v2641
    %v2648 = vsel %vm189, %v2623, 0
    %2650 = vmatprep.subr.bf16.mxu0 0
    %2651 = vmatpush1.bf16.msra.mxu0 0
    %2652 = vmatprep.subr.bf16.mxu0 0
    %2653 = vmatpush1.bf16.msra.mxu0 0
    %2654 = vmatprep.subr.bf16.mxu0 0
    %2655 = vmatpush1.bf16.msra.mxu0 0
    %2656 = vmatprep.subr.bf16.mxu0 0
    %2657 = vmatpush1.bf16.msra.mxu0 0
    %2658 = vmatprep.subr.bf16.mxu0 0
    %2659 = vmatpush1.bf16.msra.mxu0 0
    %2660 = vmatprep.subr.bf16.mxu0 0
    %2661 = vmatpush1.bf16.msra.mxu0 0
    %2662 = vmatprep.subr.bf16.mxu0 0
    %2663 = vmatpush1.bf16.msra.mxu0 %v2644
    %2664 = vmatprep.subr.bf16.mxu0 0
    %2665 = vmatpush1.bf16.msra.mxu0 %v2643
    %2666 = vmatprep.subr.bf16.mxu0 0
    %2667 = vmatpush2.bf16.msra.mxu0 0
    %2668 = vmatprep.subr.bf16.mxu0 0
    %2669 = vmatpush2.bf16.msra.mxu0 0
    %2670 = vmatprep.subr.bf16.mxu0 0
    %2671 = vmatpush2.bf16.msra.mxu0 0
    %2672 = vmatprep.subr.bf16.mxu0 0
    %2673 = vmatpush2.bf16.msra.mxu0 0
    %2674 = vmatprep.subr.bf16.mxu0 0
    %2675 = vmatpush2.bf16.msra.mxu0 0
    %2676 = vmatprep.subr.bf16.mxu0 0
    %2677 = vmatpush2.bf16.msra.mxu0 0
    %2678 = vmatprep.subr.bf16.mxu0 0
    %2679 = vmatpush2.bf16.msra.mxu0 0
    %2680 = vmatprep.subr.bf16.mxu0 0
    %2681 = vmatpush2.bf16.msra.mxu0 0
    %2682 = vmatprep.mubr.bf16.mxu0 0
    %2683 = vmatmul.mubr.bf16.gmra.mxu0 %v2648
    %v2684 = vpop.f32.mrf.mxu0
    %v2685 = vadd.f32 %v2633, %v2684
    %v2686 = vpop.f32.mrf.mxu0
    %v2687 = vpop.f32.mrf.mxu0
    %v2688 = vadd.f32 %v2633, %v2687
    %v2689 = vpop.f32.mrf.mxu0
    %2690 = vdwg.mxu0
    %v2691 = vld [vmem:[%s59] sm:$0xf]
    %v2692 = vld [vmem:[%s59 + $0x4] sm:$0xf]
    %v2693 = vld [vmem:[%s59 + $0x8] sm:$0xf]
    %v2694 = vld [vmem:[%s59 + $0xc] sm:$0xf]
    %v2695 = vld [vmem:[%s61] sm:$0x1]
    %v2697 = vlaneseq
    %v2698 = vshrl.u32 %v2697, 7
    %v2699 = vsub.s32 0, %v2698
    %v2700 = vrot.slane %v2695, %v2699
    %v2706 = vunpack.c.l.b16 %v2691
    %v2707 = vunpack.c.l.b16 %v2692
    %v2708 = vunpack.c.l.b16 %v2693
    %v2709 = vunpack.c.l.b16 %v2694
    %v2710 = vpack.c.b16 %v2707, %v2706
    %v2711 = vpack.c.b16 %v2709, %v2708
    %v2715 = vsel %vm189, %v2154, 0
    %v2718 = vsel %vm189, %v2155, 0
    %2720 = vmatprep.subr.bf16.mxu0 0
    %2721 = vmatpush1.bf16.msra.mxu0 0
    %2722 = vmatprep.subr.bf16.mxu0 0
    %2723 = vmatpush1.bf16.msra.mxu0 0
    %2724 = vmatprep.subr.bf16.mxu0 0
    %2725 = vmatpush1.bf16.msra.mxu0 0
    %2726 = vmatprep.subr.bf16.mxu0 0
    %2727 = vmatpush1.bf16.msra.mxu0 0
    %2728 = vmatprep.subr.bf16.mxu0 0
    %2729 = vmatpush1.bf16.msra.mxu0 0
    %2730 = vmatprep.subr.bf16.mxu0 0
    %2731 = vmatpush1.bf16.msra.mxu0 0
    %2732 = vmatprep.subr.bf16.mxu0 0
    %2733 = vmatpush1.bf16.msra.mxu0 %v2711
    %2734 = vmatprep.subr.bf16.mxu0 0
    %2735 = vmatpush1.bf16.msra.mxu0 %v2710
    %2736 = vmatprep.subr.bf16.mxu0 0
    %2737 = vmatpush2.bf16.msra.mxu0 0
    %2738 = vmatprep.subr.bf16.mxu0 0
    %2739 = vmatpush2.bf16.msra.mxu0 0
    %2740 = vmatprep.subr.bf16.mxu0 0
    %2741 = vmatpush2.bf16.msra.mxu0 0
    %2742 = vmatprep.subr.bf16.mxu0 0
    %2743 = vmatpush2.bf16.msra.mxu0 0
    %2744 = vmatprep.subr.bf16.mxu0 0
    %2745 = vmatpush2.bf16.msra.mxu0 0
    %2746 = vmatprep.subr.bf16.mxu0 0
    %2747 = vmatpush2.bf16.msra.mxu0 0
    %2748 = vmatprep.subr.bf16.mxu0 0
    %2749 = vmatpush2.bf16.msra.mxu0 0
    %2750 = vmatprep.subr.bf16.mxu0 0
    %2751 = vmatpush2.bf16.msra.mxu0 0
    %2752 = vmatprep.mubr.bf16.mxu0 0
    %2753 = vmatmul.mubr.bf16.gmra.mxu0 %v2715
    %v2754 = vpop.f32.mrf.mxu0
    %v2755 = vadd.f32 %v2700, %v2754
    %v2756 = vpop.f32.mrf.mxu0
    %v2757 = vpop.f32.mrf.mxu0
    %v2758 = vadd.f32 %v2700, %v2757
    %v2759 = vpop.f32.mrf.mxu0
    %2760 = vmatprep.mubr.bf16.mxu0 0
    %2761 = vmatmul.mubr.bf16.gmra.mxu0 %v2718
    %v2762 = vpop.f32.mrf.mxu0
    %v2763 = vadd.f32 %v2700, %v2762
    %v2764 = vpop.f32.mrf.mxu0
    %v2765 = vpop.f32.mrf.mxu0
    %v2766 = vpop.f32.mrf.mxu0
    %2767 = vdwg.mxu0
    %v2768 = vld [vmem:[%s63] sm:$0xf]
    %v2769 = vld [vmem:[%s63 + $0x4] sm:$0xf]
    %v2770 = vld [vmem:[%s63 + $0x8] sm:$0xf]
    %v2771 = vld [vmem:[%s63 + $0xc] sm:$0xf]
    %v2772 = vpack.c.bf16 %v2688, %v2685
    %v2773 = vpack.c.bf16 %v2758, %v2755
    %v2774 = vpack.c.bf16 %v2763, %v2763
    %v2776 = vsel %vm473, %v2772, 0
    %v2779 = vsel %vm473, %v2773, 0
    %v2782 = vsel %vm473, %v2774, 0
    %2784 = vmatprep.subr.bf16.mxu0 0
    %2785 = vmatpush1.bf16.xpose.msra.mxu0 0
    %2786 = vmatprep.subr.bf16.mxu0 0
    %2787 = vmatpush1.bf16.xpose.msra.mxu0 0
    %2788 = vmatprep.subr.bf16.mxu0 0
    %2789 = vmatpush1.bf16.xpose.msra.mxu0 0
    %2790 = vmatprep.subr.bf16.mxu0 0
    %2791 = vmatpush1.bf16.xpose.msra.mxu0 0
    %2792 = vmatprep.subr.bf16.mxu0 0
    %2793 = vmatpush1.bf16.xpose.msra.mxu0 0
    %2794 = vmatprep.subr.bf16.mxu0 0
    %2795 = vmatpush1.bf16.xpose.msra.mxu0 0
    %2796 = vmatprep.subr.bf16.mxu0 0
    %2797 = vmatpush1.bf16.xpose.msra.mxu0 %v2782
    %2798 = vmatprep.subr.bf16.mxu0 0
    %2799 = vmatpush1.bf16.xpose.msra.mxu0 %v2779
    %2800 = vmatprep.subr.bf16.mxu0 0
    %2801 = vmatpush2.bf16.xpose.msra.mxu0 0
    %2802 = vmatprep.subr.bf16.mxu0 0
    %2803 = vmatpush2.bf16.xpose.msra.mxu0 0
    %2804 = vmatprep.subr.bf16.mxu0 0
    %2805 = vmatpush2.bf16.xpose.msra.mxu0 0
    %2806 = vmatprep.subr.bf16.mxu0 0
    %2807 = vmatpush2.bf16.xpose.msra.mxu0 0
    %2808 = vmatprep.subr.bf16.mxu0 0
    %2809 = vmatpush2.bf16.xpose.msra.mxu0 0
    %2810 = vmatprep.subr.bf16.mxu0 0
    %2811 = vmatpush2.bf16.xpose.msra.mxu0 0
    %2812 = vmatprep.subr.bf16.mxu0 0
    %2813 = vmatpush2.bf16.xpose.msra.mxu0 0
    %2814 = vmatprep.subr.bf16.mxu0 0
    %2815 = vmatpush2.bf16.xpose.msra.mxu0 0
    %2816 = vmatprep.mubr.bf16.mxu0 0
    %2817 = vmatmul.mubr.bf16.gmra.mxu0 %v2776
    %v2818 = vpop.f32.mrf.mxu0
    %v2819 = vadd.f32 0.0, %v2818
    %v2820 = vpop.f32.mrf.mxu0
    %v2821 = vpop.f32.mrf.mxu0
    %v2822 = vadd.f32 0.0, %v2821
    %v2823 = vpop.f32.mrf.mxu0
    %2824 = vdwg.mxu0
    %v2825 = vmul.f32 %v2819, 0.25
    %v2826 = vmul.f32 %v2822, 0.25
    %v2827 = vadd.f32 %v2825, %v180
    %v2828 = vadd.f32 %v2826, %v181
    %v2829 = vsel %vm540, %v2827, -inf
    %2830 = vmax.xlane.f32.xlu0 %v2829
    %v2831 = vpop.xlane.xlu0 %2830
    %v2832 = vsel %vm547, %v2828, -inf
    %2833 = vmax.xlane.f32.xlu0 %v2832
    %v2834 = vpop.xlane.xlu0 %2833
    %v2835 = vsub.f32 %v2827, %v2831
    %v2836 = vsub.f32 %v2828, %v2834
    %v2837 = vmul.f32 %v2835, 1.442695
    %v2838 = vpow.pop %v2837
    %v2839 = vmul.f32 %v2836, 1.442695
    %v2840 = vpow.pop %v2839
    %v2841 = vsel %vm540, %v2838, 0.0
    %2842 = vadd.xlane.f32.xlu0 %v2841
    %v2843 = vpop.xlane.xlu0 %2842
    %v2844 = vsel %vm547, %v2840, 0.0
    %2845 = vadd.xlane.f32.xlu0 %v2844
    %v2846 = vpop.xlane.xlu0 %2845
    %v2847 = vrcp.pop %v2843
    %v2848 = vmul.f32 %v2838, %v2847
    %v2849 = vrcp.pop %v2846
    %v2850 = vmul.f32 %v2840, %v2849
    %v2851 = vpack.c.bf16 %v2850, %v2848
    %2854 = vrot.lane.b32.xlu0 %v2773, 96
    %v2855 = vpop.permute.xlu0 %2854
    %2856 = vrot.lane.b32.xlu0 %v2774, 96
    %v2857 = vpop.permute.xlu0 %2856
    %v2860 = vsel %vm540, %v2851, 0
    %v2863 = vsel %vm588, %v2857, 0
    %2865 = vmatprep.subr.bf16.mxu0 0
    %2866 = vmatpush1.bf16.msra.mxu0 0
    %2867 = vmatprep.subr.bf16.mxu0 0
    %2868 = vmatpush1.bf16.msra.mxu0 0
    %2869 = vmatprep.subr.bf16.mxu0 0
    %2870 = vmatpush1.bf16.msra.mxu0 0
    %2871 = vmatprep.subr.bf16.mxu0 0
    %2872 = vmatpush1.bf16.msra.mxu0 0
    %2873 = vmatprep.subr.bf16.mxu0 0
    %2874 = vmatpush1.bf16.msra.mxu0 0
    %2875 = vmatprep.subr.bf16.mxu0 0
    %2876 = vmatpush1.bf16.msra.mxu0 0
    %2877 = vmatprep.subr.bf16.mxu0 0
    %2878 = vmatpush1.bf16.msra.mxu0 %v2863
    %2879 = vmatprep.subr.bf16.mxu0 0
    %2880 = vmatpush1.bf16.msra.mxu0 %v2855
    %2881 = vmatprep.subr.bf16.mxu0 0
    %2882 = vmatpush2.bf16.msra.mxu0 0
    %2883 = vmatprep.subr.bf16.mxu0 0
    %2884 = vmatpush2.bf16.msra.mxu0 0
    %2885 = vmatprep.subr.bf16.mxu0 0
    %2886 = vmatpush2.bf16.msra.mxu0 0
    %2887 = vmatprep.subr.bf16.mxu0 0
    %2888 = vmatpush2.bf16.msra.mxu0 0
    %2889 = vmatprep.subr.bf16.mxu0 0
    %2890 = vmatpush2.bf16.msra.mxu0 0
    %2891 = vmatprep.subr.bf16.mxu0 0
    %2892 = vmatpush2.bf16.msra.mxu0 0
    %2893 = vmatprep.subr.bf16.mxu0 0
    %2894 = vmatpush2.bf16.msra.mxu0 0
    %2895 = vmatprep.subr.bf16.mxu0 0
    %2896 = vmatpush2.bf16.msra.mxu0 0
    %2897 = vmatprep.mubr.bf16.mxu0 0
    %2898 = vmatmul.mubr.bf16.gmra.mxu0 %v2860
    %v2899 = vpop.f32.mrf.mxu0
    %v2900 = vadd.f32 0.0, %v2899
    %v2901 = vpop.f32.mrf.mxu0
    %v2902 = vpop.f32.mrf.mxu0
    %v2903 = vadd.f32 0.0, %v2902
    %v2904 = vpop.f32.mrf.mxu0
    %2905 = vdwg.mxu0
    %v2906 = vpack.c.bf16 %v2903, %v2900
    %2908 = vrot.lane.b32.xlu0 %v2772, 112
    %v2909 = vpop.permute.xlu0 %2908
    %2910 = vrot.lane.b32.xlu0 %v2773, 112
    %v2911 = vpop.permute.xlu0 %2910
    %2912 = vrot.lane.b32.xlu0 %v2774, 112
    %v2913 = vpop.permute.xlu0 %2912
    %v2915 = vsel %vm473, %v2909, 0
    %v2918 = vsel %vm473, %v2911, 0
    %v2921 = vsel %vm473, %v2913, 0
    %2923 = vmatprep.subr.bf16.mxu0 0
    %2924 = vmatpush1.bf16.xpose.msra.mxu0 0
    %2925 = vmatprep.subr.bf16.mxu0 0
    %2926 = vmatpush1.bf16.xpose.msra.mxu0 0
    %2927 = vmatprep.subr.bf16.mxu0 0
    %2928 = vmatpush1.bf16.xpose.msra.mxu0 0
    %2929 = vmatprep.subr.bf16.mxu0 0
    %2930 = vmatpush1.bf16.xpose.msra.mxu0 0
    %2931 = vmatprep.subr.bf16.mxu0 0
    %2932 = vmatpush1.bf16.xpose.msra.mxu0 0
    %2933 = vmatprep.subr.bf16.mxu0 0
    %2934 = vmatpush1.bf16.xpose.msra.mxu0 0
    %2935 = vmatprep.subr.bf16.mxu0 0
    %2936 = vmatpush1.bf16.xpose.msra.mxu0 %v2921
    %2937 = vmatprep.subr.bf16.mxu0 0
    %2938 = vmatpush1.bf16.xpose.msra.mxu0 %v2918
    %2939 = vmatprep.subr.bf16.mxu0 0
    %2940 = vmatpush2.bf16.xpose.msra.mxu0 0
    %2941 = vmatprep.subr.bf16.mxu0 0
    %2942 = vmatpush2.bf16.xpose.msra.mxu0 0
    %2943 = vmatprep.subr.bf16.mxu0 0
    %2944 = vmatpush2.bf16.xpose.msra.mxu0 0
    %2945 = vmatprep.subr.bf16.mxu0 0
    %2946 = vmatpush2.bf16.xpose.msra.mxu0 0
    %2947 = vmatprep.subr.bf16.mxu0 0
    %2948 = vmatpush2.bf16.xpose.msra.mxu0 0
    %2949 = vmatprep.subr.bf16.mxu0 0
    %2950 = vmatpush2.bf16.xpose.msra.mxu0 0
    %2951 = vmatprep.subr.bf16.mxu0 0
    %2952 = vmatpush2.bf16.xpose.msra.mxu0 0
    %2953 = vmatprep.subr.bf16.mxu0 0
    %2954 = vmatpush2.bf16.xpose.msra.mxu0 0
    %2955 = vmatprep.mubr.bf16.mxu0 0
    %2956 = vmatmul.mubr.bf16.gmra.mxu0 %v2915
    %v2957 = vpop.f32.mrf.mxu0
    %v2958 = vadd.f32 0.0, %v2957
    %v2959 = vpop.f32.mrf.mxu0
    %v2960 = vpop.f32.mrf.mxu0
    %v2961 = vadd.f32 0.0, %v2960
    %v2962 = vpop.f32.mrf.mxu0
    %2963 = vdwg.mxu0
    %v2964 = vmul.f32 %v2958, 0.25
    %v2965 = vmul.f32 %v2961, 0.25
    %v2966 = vadd.f32 %v2964, %v180
    %v2967 = vadd.f32 %v2965, %v181
    %v2968 = vsel %vm540, %v2966, -inf
    %2969 = vmax.xlane.f32.xlu0 %v2968
    %v2970 = vpop.xlane.xlu0 %2969
    %v2971 = vsel %vm547, %v2967, -inf
    %2972 = vmax.xlane.f32.xlu0 %v2971
    %v2973 = vpop.xlane.xlu0 %2972
    %v2974 = vsub.f32 %v2966, %v2970
    %v2975 = vsub.f32 %v2967, %v2973
    %v2976 = vmul.f32 %v2974, 1.442695
    %v2977 = vpow.pop %v2976
    %v2978 = vmul.f32 %v2975, 1.442695
    %v2979 = vpow.pop %v2978
    %v2980 = vsel %vm540, %v2977, 0.0
    %2981 = vadd.xlane.f32.xlu0 %v2980
    %v2982 = vpop.xlane.xlu0 %2981
    %v2983 = vsel %vm547, %v2979, 0.0
    %2984 = vadd.xlane.f32.xlu0 %v2983
    %v2985 = vpop.xlane.xlu0 %2984
    %v2986 = vrcp.pop %v2982
    %v2987 = vmul.f32 %v2977, %v2986
    %v2988 = vrcp.pop %v2985
    %v2989 = vmul.f32 %v2979, %v2988
    %v2990 = vpack.c.bf16 %v2989, %v2987
    %2991 = vrot.lane.b32.xlu0 %v2773, 80
    %v2992 = vpop.permute.xlu0 %2991
    %2993 = vrot.lane.b32.xlu0 %v2774, 80
    %v2994 = vpop.permute.xlu0 %2993
    %v2997 = vsel %vm540, %v2990, 0
    %v3000 = vsel %vm588, %v2994, 0
    %3002 = vmatprep.subr.bf16.mxu0 0
    %3003 = vmatpush1.bf16.msra.mxu0 0
    %3004 = vmatprep.subr.bf16.mxu0 0
    %3005 = vmatpush1.bf16.msra.mxu0 0
    %3006 = vmatprep.subr.bf16.mxu0 0
    %3007 = vmatpush1.bf16.msra.mxu0 0
    %3008 = vmatprep.subr.bf16.mxu0 0
    %3009 = vmatpush1.bf16.msra.mxu0 0
    %3010 = vmatprep.subr.bf16.mxu0 0
    %3011 = vmatpush1.bf16.msra.mxu0 0
    %3012 = vmatprep.subr.bf16.mxu0 0
    %3013 = vmatpush1.bf16.msra.mxu0 0
    %3014 = vmatprep.subr.bf16.mxu0 0
    %3015 = vmatpush1.bf16.msra.mxu0 %v3000
    %3016 = vmatprep.subr.bf16.mxu0 0
    %3017 = vmatpush1.bf16.msra.mxu0 %v2992
    %3018 = vmatprep.subr.bf16.mxu0 0
    %3019 = vmatpush2.bf16.msra.mxu0 0
    %3020 = vmatprep.subr.bf16.mxu0 0
    %3021 = vmatpush2.bf16.msra.mxu0 0
    %3022 = vmatprep.subr.bf16.mxu0 0
    %3023 = vmatpush2.bf16.msra.mxu0 0
    %3024 = vmatprep.subr.bf16.mxu0 0
    %3025 = vmatpush2.bf16.msra.mxu0 0
    %3026 = vmatprep.subr.bf16.mxu0 0
    %3027 = vmatpush2.bf16.msra.mxu0 0
    %3028 = vmatprep.subr.bf16.mxu0 0
    %3029 = vmatpush2.bf16.msra.mxu0 0
    %3030 = vmatprep.subr.bf16.mxu0 0
    %3031 = vmatpush2.bf16.msra.mxu0 0
    %3032 = vmatprep.subr.bf16.mxu0 0
    %3033 = vmatpush2.bf16.msra.mxu0 0
    %3034 = vmatprep.mubr.bf16.mxu0 0
    %3035 = vmatmul.mubr.bf16.gmra.mxu0 %v2997
    %v3036 = vpop.f32.mrf.mxu0
    %v3037 = vadd.f32 0.0, %v3036
    %v3038 = vpop.f32.mrf.mxu0
    %v3039 = vpop.f32.mrf.mxu0
    %v3040 = vadd.f32 0.0, %v3039
    %v3041 = vpop.f32.mrf.mxu0
    %3042 = vdwg.mxu0
    %v3043 = vpack.c.bf16 %v3040, %v3037
    %v3046 = vunpack.c.l.b16 %v2770
    %v3047 = vunpack.c.l.b16 %v2771
    %v3048 = vpack.c.b16 %v3047, %v3046
    %v3051 = vsel %vm473, %v3043, 0
    %3053 = vmatprep.subr.bf16.mxu0 0
    %3054 = vmatpush1.bf16.msra.mxu0 0
    %3055 = vmatprep.subr.bf16.mxu0 0
    %3056 = vmatpush1.bf16.msra.mxu0 0
    %3057 = vmatprep.subr.bf16.mxu0 0
    %3058 = vmatpush1.bf16.msra.mxu0 0
    %3059 = vmatprep.subr.bf16.mxu0 0
    %3060 = vmatpush1.bf16.msra.mxu0 0
    %3061 = vmatprep.subr.bf16.mxu0 0
    %3062 = vmatpush1.bf16.msra.mxu0 0
    %3063 = vmatprep.subr.bf16.mxu0 0
    %3064 = vmatpush1.bf16.msra.mxu0 0
    %3065 = vmatprep.subr.bf16.mxu0 0
    %3066 = vmatpush1.bf16.msra.mxu0 0
    %3067 = vmatprep.subr.bf16.mxu0 0
    %3068 = vmatpush1.bf16.msra.mxu0 %v3048
    %3069 = vmatprep.subr.bf16.mxu0 0
    %3070 = vmatpush2.bf16.msra.mxu0 0
    %3071 = vmatprep.subr.bf16.mxu0 0
    %3072 = vmatpush2.bf16.msra.mxu0 0
    %3073 = vmatprep.subr.bf16.mxu0 0
    %3074 = vmatpush2.bf16.msra.mxu0 0
    %3075 = vmatprep.subr.bf16.mxu0 0
    %3076 = vmatpush2.bf16.msra.mxu0 0
    %3077 = vmatprep.subr.bf16.mxu0 0
    %3078 = vmatpush2.bf16.msra.mxu0 0
    %3079 = vmatprep.subr.bf16.mxu0 0
    %3080 = vmatpush2.bf16.msra.mxu0 0
    %3081 = vmatprep.subr.bf16.mxu0 0
    %3082 = vmatpush2.bf16.msra.mxu0 0
    %3083 = vmatprep.subr.bf16.mxu0 0
    %3084 = vmatpush2.bf16.msra.mxu0 0
    %3085 = vmatprep.mubr.bf16.mxu0 0
    %3086 = vmatmul.mubr.bf16.gmra.mxu0 %v3051
    %v3087 = vpop.f32.mrf.mxu0
    %v3088 = vadd.f32 0.0, %v3087
    %v3089 = vpop.f32.mrf.mxu0
    %v3090 = vpop.f32.mrf.mxu0
    %v3091 = vadd.f32 0.0, %v3090
    %v3092 = vpop.f32.mrf.mxu0
    %3093 = vdwg.mxu0
    %v3096 = vunpack.c.l.b16 %v2768
    %v3097 = vunpack.c.l.b16 %v2769
    %v3098 = vpack.c.b16 %v3097, %v3096
    %v3101 = vsel %vm473, %v2906, 0
    %3103 = vmatprep.subr.bf16.mxu0 0
    %3104 = vmatpush1.bf16.msra.mxu0 0
    %3105 = vmatprep.subr.bf16.mxu0 0
    %3106 = vmatpush1.bf16.msra.mxu0 0
    %3107 = vmatprep.subr.bf16.mxu0 0
    %3108 = vmatpush1.bf16.msra.mxu0 0
    %3109 = vmatprep.subr.bf16.mxu0 0
    %3110 = vmatpush1.bf16.msra.mxu0 0
    %3111 = vmatprep.subr.bf16.mxu0 0
    %3112 = vmatpush1.bf16.msra.mxu0 0
    %3113 = vmatprep.subr.bf16.mxu0 0
    %3114 = vmatpush1.bf16.msra.mxu0 0
    %3115 = vmatprep.subr.bf16.mxu0 0
    %3116 = vmatpush1.bf16.msra.mxu0 0
    %3117 = vmatprep.subr.bf16.mxu0 0
    %3118 = vmatpush1.bf16.msra.mxu0 %v3098
    %3119 = vmatprep.subr.bf16.mxu0 0
    %3120 = vmatpush2.bf16.msra.mxu0 0
    %3121 = vmatprep.subr.bf16.mxu0 0
    %3122 = vmatpush2.bf16.msra.mxu0 0
    %3123 = vmatprep.subr.bf16.mxu0 0
    %3124 = vmatpush2.bf16.msra.mxu0 0
    %3125 = vmatprep.subr.bf16.mxu0 0
    %3126 = vmatpush2.bf16.msra.mxu0 0
    %3127 = vmatprep.subr.bf16.mxu0 0
    %3128 = vmatpush2.bf16.msra.mxu0 0
    %3129 = vmatprep.subr.bf16.mxu0 0
    %3130 = vmatpush2.bf16.msra.mxu0 0
    %3131 = vmatprep.subr.bf16.mxu0 0
    %3132 = vmatpush2.bf16.msra.mxu0 0
    %3133 = vmatprep.subr.bf16.mxu0 0
    %3134 = vmatpush2.bf16.msra.mxu0 0
    %3135 = vmatprep.mubr.bf16.mxu0 0
    %3136 = vmatmul.mubr.bf16.gmra.mxu0 %v3101
    %v3137 = vpop.f32.mrf.mxu0
    %v3138 = vadd.f32 %v3088, %v3137
    %v3139 = vpop.f32.mrf.mxu0
    %v3140 = vpop.f32.mrf.mxu0
    %v3141 = vadd.f32 %v3091, %v3140
    %v3142 = vpop.f32.mrf.mxu0
    %3143 = vdwg.mxu0
    %v3144 = vld [vmem:[%s65] sm:$0x1]
    %v3146 = vlaneseq
    %v3147 = vshrl.u32 %v3146, 7
    %v3148 = vsub.s32 0, %v3147
    %v3149 = vrot.slane %v3144, %v3148
    %v3151 = vadd.f32 %v3138, %v3149
    %v3152 = vadd.f32 %v3141, %v3149
    %v3153 = vadd.f32 %v2621, %v3151
    %v3154 = vadd.f32 %v2622, %v3152
    %v3155 = vld [vmem:[%s67] sm:$0x1]
    %v3156 = vmul.f32 %v3153, %v3153
    %v3157 = vmul.f32 %v3154, %v3154
    %v3158 = vsel %vm189, %v3156, 0.0
    %3159 = vadd.xlane.f32.xlu0 %v3158
    %v3160 = vpop.xlane.xlu0 %3159
    %v3161 = vsel %vm196, %v3157, 0.0
    %3162 = vadd.xlane.f32.xlu0 %v3161
    %v3163 = vpop.xlane.xlu0 %3162
    %v3164 = vmul.f32 %v3160, %v200
    %v3165 = vmul.f32 %v3163, %v200
    %v3166 = vadd.f32 %v3164, 1e-06
    %v3167 = vadd.f32 %v3165, 1e-06
    %v3168 = vrsqrt.pop %v3166
    %v3169 = vrsqrt.pop %v3167
    %v3170 = vmul.f32 %v3153, %v3168
    %v3171 = vmul.f32 %v3154, %v3169
    %v3173 = vlaneseq
    %v3174 = vshrl.u32 %v3173, 7
    %v3175 = vsub.s32 0, %v3174
    %v3176 = vrot.slane %v3155, %v3175
    %v3178 = vmul.f32 %v3170, %v3176
    %v3179 = vmul.f32 %v3171, %v3176
    %v3180 = vpack.c.bf16 %v3179, %v3178
    %v3181 = vld [vmem:[%s69] sm:$0xff]
    %v3182 = vld [vmem:[%s69 + $0x8] sm:$0xff]
    %v3183 = vld [vmem:[%s69 + $0x10] sm:$0xff]
    %v3184 = vld [vmem:[%s69 + $0x18] sm:$0xff]
    %v3185 = vld [vmem:[%s69 + $0x20] sm:$0xff]
    %v3186 = vld [vmem:[%s69 + $0x28] sm:$0xff]
    %v3187 = vld [vmem:[%s69 + $0x30] sm:$0xff]
    %v3188 = vld [vmem:[%s69 + $0x38] sm:$0xff]
    %v3189 = vld [vmem:[%s69 + $0x40] sm:$0xff]
    %v3190 = vld [vmem:[%s69 + $0x48] sm:$0xff]
    %v3191 = vld [vmem:[%s69 + $0x50] sm:$0xff]
    %v3192 = vld [vmem:[%s69 + $0x58] sm:$0xff]
    %v3193 = vld [vmem:[%s69 + $0x60] sm:$0xff]
    %v3194 = vld [vmem:[%s69 + $0x68] sm:$0xff]
    %v3195 = vld [vmem:[%s69 + $0x70] sm:$0xff]
    %v3196 = vld [vmem:[%s69 + $0x78] sm:$0xff]
    %v3197 = vld [vmem:[%s71] sm:$0xff]
    %v3199 = vlaneseq
    %v3200 = vshrl.u32 %v3199, 7
    %v3201 = vsub.s32 0, %v3200
    %v3202 = vrot.slane %v3197, %v3201
    %v3203 = vlaneseq
    %v3204 = vshrl.u32 %v3203, 7
    %v3205 = vsub.s32 1, %v3204
    %v3206 = vrot.slane %v3197, %v3205
    %v3207 = vlaneseq
    %v3208 = vshrl.u32 %v3207, 7
    %v3209 = vsub.s32 2, %v3208
    %v3210 = vrot.slane %v3197, %v3209
    %v3211 = vlaneseq
    %v3212 = vshrl.u32 %v3211, 7
    %v3213 = vsub.s32 3, %v3212
    %v3214 = vrot.slane %v3197, %v3213
    %v3215 = vlaneseq
    %v3216 = vshrl.u32 %v3215, 7
    %v3217 = vsub.s32 4, %v3216
    %v3218 = vrot.slane %v3197, %v3217
    %v3219 = vlaneseq
    %v3220 = vshrl.u32 %v3219, 7
    %v3221 = vsub.s32 5, %v3220
    %v3222 = vrot.slane %v3197, %v3221
    %v3223 = vlaneseq
    %v3224 = vshrl.u32 %v3223, 7
    %v3225 = vsub.s32 6, %v3224
    %v3226 = vrot.slane %v3197, %v3225
    %v3227 = vlaneseq
    %v3228 = vshrl.u32 %v3227, 7
    %v3229 = vsub.s32 7, %v3228
    %v3230 = vrot.slane %v3197, %v3229
    %v3255 = vunpack.c.l.b16 %v3181
    %v3256 = vunpack.c.h.b16 %v3181
    %v3257 = vunpack.c.l.b16 %v3182
    %v3258 = vunpack.c.h.b16 %v3182
    %v3259 = vunpack.c.l.b16 %v3183
    %v3260 = vunpack.c.h.b16 %v3183
    %v3261 = vunpack.c.l.b16 %v3184
    %v3262 = vunpack.c.h.b16 %v3184
    %v3263 = vunpack.c.l.b16 %v3185
    %v3264 = vunpack.c.h.b16 %v3185
    %v3265 = vunpack.c.l.b16 %v3186
    %v3266 = vunpack.c.h.b16 %v3186
    %v3267 = vunpack.c.l.b16 %v3187
    %v3268 = vunpack.c.h.b16 %v3187
    %v3269 = vunpack.c.l.b16 %v3188
    %v3270 = vunpack.c.h.b16 %v3188
    %v3271 = vunpack.c.l.b16 %v3189
    %v3272 = vunpack.c.h.b16 %v3189
    %v3273 = vunpack.c.l.b16 %v3190
    %v3274 = vunpack.c.h.b16 %v3190
    %v3275 = vunpack.c.l.b16 %v3191
    %v3276 = vunpack.c.h.b16 %v3191
    %v3277 = vunpack.c.l.b16 %v3192
    %v3278 = vunpack.c.h.b16 %v3192
    %v3279 = vunpack.c.l.b16 %v3193
    %v3280 = vunpack.c.h.b16 %v3193
    %v3281 = vunpack.c.l.b16 %v3194
    %v3282 = vunpack.c.h.b16 %v3194
    %v3283 = vunpack.c.l.b16 %v3195
    %v3284 = vunpack.c.h.b16 %v3195
    %v3285 = vunpack.c.l.b16 %v3196
    %v3286 = vunpack.c.h.b16 %v3196
    %v3287 = vpack.c.b16 %v3263, %v3255
    %v3288 = vpack.c.b16 %v3264, %v3256
    %v3289 = vpack.c.b16 %v3265, %v3257
    %v3290 = vpack.c.b16 %v3266, %v3258
    %v3291 = vpack.c.b16 %v3267, %v3259
    %v3292 = vpack.c.b16 %v3268, %v3260
    %v3293 = vpack.c.b16 %v3269, %v3261
    %v3294 = vpack.c.b16 %v3270, %v3262
    %v3295 = vpack.c.b16 %v3279, %v3271
    %v3296 = vpack.c.b16 %v3280, %v3272
    %v3297 = vpack.c.b16 %v3281, %v3273
    %v3298 = vpack.c.b16 %v3282, %v3274
    %v3299 = vpack.c.b16 %v3283, %v3275
    %v3300 = vpack.c.b16 %v3284, %v3276
    %v3301 = vpack.c.b16 %v3285, %v3277
    %v3302 = vpack.c.b16 %v3286, %v3278
    %v3320 = vsel %vm189, %v3180, 0
    %3322 = vmatprep.subr.bf16.mxu0 0
    %3323 = vmatpush1.bf16.msra.mxu0 0
    %3324 = vmatprep.subr.bf16.mxu0 0
    %3325 = vmatpush1.bf16.msra.mxu0 0
    %3326 = vmatprep.subr.bf16.mxu0 0
    %3327 = vmatpush1.bf16.msra.mxu0 0
    %3328 = vmatprep.subr.bf16.mxu0 0
    %3329 = vmatpush1.bf16.msra.mxu0 0
    %3330 = vmatprep.subr.bf16.mxu0 0
    %3331 = vmatpush1.bf16.msra.mxu0 0
    %3332 = vmatprep.subr.bf16.mxu0 0
    %3333 = vmatpush1.bf16.msra.mxu0 0
    %3334 = vmatprep.subr.bf16.mxu0 %v3296
    %3335 = vmatpush1.bf16.msra.mxu0 %v3295
    %3336 = vmatprep.subr.bf16.mxu0 %v3288
    %3337 = vmatpush1.bf16.msra.mxu0 %v3287
    %3338 = vmatprep.subr.bf16.mxu0 0
    %3339 = vmatpush2.bf16.msra.mxu0 0
    %3340 = vmatprep.subr.bf16.mxu0 0
    %3341 = vmatpush2.bf16.msra.mxu0 0
    %3342 = vmatprep.subr.bf16.mxu0 0
    %3343 = vmatpush2.bf16.msra.mxu0 0
    %3344 = vmatprep.subr.bf16.mxu0 0
    %3345 = vmatpush2.bf16.msra.mxu0 0
    %3346 = vmatprep.subr.bf16.mxu0 0
    %3347 = vmatpush2.bf16.msra.mxu0 0
    %3348 = vmatprep.subr.bf16.mxu0 0
    %3349 = vmatpush2.bf16.msra.mxu0 0
    %3350 = vmatprep.subr.bf16.mxu0 0
    %3351 = vmatpush2.bf16.msra.mxu0 0
    %3352 = vmatprep.subr.bf16.mxu0 0
    %3353 = vmatpush2.bf16.msra.mxu0 0
    %3354 = vmatprep.mubr.bf16.mxu0 0
    %3355 = vmatmul.mubr.bf16.gmra.mxu0 %v3320
    %v3356 = vpop.f32.mrf.mxu0
    %v3357 = vadd.f32 %v3202, %v3356
    %v3358 = vpop.f32.mrf.mxu0
    %v3359 = vadd.f32 %v3206, %v3358
    %v3360 = vpop.f32.mrf.mxu0
    %v3361 = vadd.f32 %v3202, %v3360
    %v3362 = vpop.f32.mrf.mxu0
    %v3363 = vadd.f32 %v3206, %v3362
    %3364 = vdwg.mxu0
    %3365 = vmatprep.subr.bf16.mxu0 0
    %3366 = vmatpush1.bf16.msra.mxu0 0
    %3367 = vmatprep.subr.bf16.mxu0 0
    %3368 = vmatpush1.bf16.msra.mxu0 0
    %3369 = vmatprep.subr.bf16.mxu0 0
    %3370 = vmatpush1.bf16.msra.mxu0 0
    %3371 = vmatprep.subr.bf16.mxu0 0
    %3372 = vmatpush1.bf16.msra.mxu0 0
    %3373 = vmatprep.subr.bf16.mxu0 0
    %3374 = vmatpush1.bf16.msra.mxu0 0
    %3375 = vmatprep.subr.bf16.mxu0 0
    %3376 = vmatpush1.bf16.msra.mxu0 0
    %3377 = vmatprep.subr.bf16.mxu0 %v3298
    %3378 = vmatpush1.bf16.msra.mxu0 %v3297
    %3379 = vmatprep.subr.bf16.mxu0 %v3290
    %3380 = vmatpush1.bf16.msra.mxu0 %v3289
    %3381 = vmatprep.subr.bf16.mxu0 0
    %3382 = vmatpush2.bf16.msra.mxu0 0
    %3383 = vmatprep.subr.bf16.mxu0 0
    %3384 = vmatpush2.bf16.msra.mxu0 0
    %3385 = vmatprep.subr.bf16.mxu0 0
    %3386 = vmatpush2.bf16.msra.mxu0 0
    %3387 = vmatprep.subr.bf16.mxu0 0
    %3388 = vmatpush2.bf16.msra.mxu0 0
    %3389 = vmatprep.subr.bf16.mxu0 0
    %3390 = vmatpush2.bf16.msra.mxu0 0
    %3391 = vmatprep.subr.bf16.mxu0 0
    %3392 = vmatpush2.bf16.msra.mxu0 0
    %3393 = vmatprep.subr.bf16.mxu0 0
    %3394 = vmatpush2.bf16.msra.mxu0 0
    %3395 = vmatprep.subr.bf16.mxu0 0
    %3396 = vmatpush2.bf16.msra.mxu0 0
    %3397 = vmatprep.mubr.bf16.mxu0 0
    %3398 = vmatmul.mubr.bf16.gmra.mxu0 %v3320
    %v3399 = vpop.f32.mrf.mxu0
    %v3400 = vadd.f32 %v3210, %v3399
    %v3401 = vpop.f32.mrf.mxu0
    %v3402 = vadd.f32 %v3214, %v3401
    %v3403 = vpop.f32.mrf.mxu0
    %v3404 = vadd.f32 %v3210, %v3403
    %v3405 = vpop.f32.mrf.mxu0
    %v3406 = vadd.f32 %v3214, %v3405
    %3407 = vdwg.mxu0
    %3408 = vmatprep.subr.bf16.mxu0 0
    %3409 = vmatpush1.bf16.msra.mxu0 0
    %3410 = vmatprep.subr.bf16.mxu0 0
    %3411 = vmatpush1.bf16.msra.mxu0 0
    %3412 = vmatprep.subr.bf16.mxu0 0
    %3413 = vmatpush1.bf16.msra.mxu0 0
    %3414 = vmatprep.subr.bf16.mxu0 0
    %3415 = vmatpush1.bf16.msra.mxu0 0
    %3416 = vmatprep.subr.bf16.mxu0 0
    %3417 = vmatpush1.bf16.msra.mxu0 0
    %3418 = vmatprep.subr.bf16.mxu0 0
    %3419 = vmatpush1.bf16.msra.mxu0 0
    %3420 = vmatprep.subr.bf16.mxu0 %v3300
    %3421 = vmatpush1.bf16.msra.mxu0 %v3299
    %3422 = vmatprep.subr.bf16.mxu0 %v3292
    %3423 = vmatpush1.bf16.msra.mxu0 %v3291
    %3424 = vmatprep.subr.bf16.mxu0 0
    %3425 = vmatpush2.bf16.msra.mxu0 0
    %3426 = vmatprep.subr.bf16.mxu0 0
    %3427 = vmatpush2.bf16.msra.mxu0 0
    %3428 = vmatprep.subr.bf16.mxu0 0
    %3429 = vmatpush2.bf16.msra.mxu0 0
    %3430 = vmatprep.subr.bf16.mxu0 0
    %3431 = vmatpush2.bf16.msra.mxu0 0
    %3432 = vmatprep.subr.bf16.mxu0 0
    %3433 = vmatpush2.bf16.msra.mxu0 0
    %3434 = vmatprep.subr.bf16.mxu0 0
    %3435 = vmatpush2.bf16.msra.mxu0 0
    %3436 = vmatprep.subr.bf16.mxu0 0
    %3437 = vmatpush2.bf16.msra.mxu0 0
    %3438 = vmatprep.subr.bf16.mxu0 0
    %3439 = vmatpush2.bf16.msra.mxu0 0
    %3440 = vmatprep.mubr.bf16.mxu0 0
    %3441 = vmatmul.mubr.bf16.gmra.mxu0 %v3320
    %v3442 = vpop.f32.mrf.mxu0
    %v3443 = vadd.f32 %v3218, %v3442
    %v3444 = vpop.f32.mrf.mxu0
    %v3445 = vadd.f32 %v3222, %v3444
    %v3446 = vpop.f32.mrf.mxu0
    %v3447 = vadd.f32 %v3218, %v3446
    %v3448 = vpop.f32.mrf.mxu0
    %v3449 = vadd.f32 %v3222, %v3448
    %3450 = vdwg.mxu0
    %3451 = vmatprep.subr.bf16.mxu0 0
    %3452 = vmatpush1.bf16.msra.mxu0 0
    %3453 = vmatprep.subr.bf16.mxu0 0
    %3454 = vmatpush1.bf16.msra.mxu0 0
    %3455 = vmatprep.subr.bf16.mxu0 0
    %3456 = vmatpush1.bf16.msra.mxu0 0
    %3457 = vmatprep.subr.bf16.mxu0 0
    %3458 = vmatpush1.bf16.msra.mxu0 0
    %3459 = vmatprep.subr.bf16.mxu0 0
    %3460 = vmatpush1.bf16.msra.mxu0 0
    %3461 = vmatprep.subr.bf16.mxu0 0
    %3462 = vmatpush1.bf16.msra.mxu0 0
    %3463 = vmatprep.subr.bf16.mxu0 %v3302
    %3464 = vmatpush1.bf16.msra.mxu0 %v3301
    %3465 = vmatprep.subr.bf16.mxu0 %v3294
    %3466 = vmatpush1.bf16.msra.mxu0 %v3293
    %3467 = vmatprep.subr.bf16.mxu0 0
    %3468 = vmatpush2.bf16.msra.mxu0 0
    %3469 = vmatprep.subr.bf16.mxu0 0
    %3470 = vmatpush2.bf16.msra.mxu0 0
    %3471 = vmatprep.subr.bf16.mxu0 0
    %3472 = vmatpush2.bf16.msra.mxu0 0
    %3473 = vmatprep.subr.bf16.mxu0 0
    %3474 = vmatpush2.bf16.msra.mxu0 0
    %3475 = vmatprep.subr.bf16.mxu0 0
    %3476 = vmatpush2.bf16.msra.mxu0 0
    %3477 = vmatprep.subr.bf16.mxu0 0
    %3478 = vmatpush2.bf16.msra.mxu0 0
    %3479 = vmatprep.subr.bf16.mxu0 0
    %3480 = vmatpush2.bf16.msra.mxu0 0
    %3481 = vmatprep.subr.bf16.mxu0 0
    %3482 = vmatpush2.bf16.msra.mxu0 0
    %3483 = vmatprep.mubr.bf16.mxu0 0
    %3484 = vmatmul.mubr.bf16.gmra.mxu0 %v3320
    %v3485 = vpop.f32.mrf.mxu0
    %v3486 = vadd.f32 %v3226, %v3485
    %v3487 = vpop.f32.mrf.mxu0
    %v3488 = vadd.f32 %v3230, %v3487
    %v3489 = vpop.f32.mrf.mxu0
    %v3490 = vadd.f32 %v3226, %v3489
    %v3491 = vpop.f32.mrf.mxu0
    %v3492 = vadd.f32 %v3230, %v3491
    %3493 = vdwg.mxu0
    %v3494 = vmax.f32 %v3357, 0.0
    %v3495 = vmax.f32 %v3359, 0.0
    %v3496 = vmax.f32 %v3400, 0.0
    %v3497 = vmax.f32 %v3402, 0.0
    %v3498 = vmax.f32 %v3443, 0.0
    %v3499 = vmax.f32 %v3445, 0.0
    %v3500 = vmax.f32 %v3486, 0.0
    %v3501 = vmax.f32 %v3488, 0.0
    %v3502 = vmax.f32 %v3361, 0.0
    %v3503 = vmax.f32 %v3363, 0.0
    %v3504 = vmax.f32 %v3404, 0.0
    %v3505 = vmax.f32 %v3406, 0.0
    %v3506 = vmax.f32 %v3447, 0.0
    %v3507 = vmax.f32 %v3449, 0.0
    %v3508 = vmax.f32 %v3490, 0.0
    %v3509 = vmax.f32 %v3492, 0.0
    %v3510 = vpack.c.bf16 %v3502, %v3494
    %v3511 = vpack.c.bf16 %v3503, %v3495
    %v3512 = vpack.c.bf16 %v3504, %v3496
    %v3513 = vpack.c.bf16 %v3505, %v3497
    %v3514 = vpack.c.bf16 %v3506, %v3498
    %v3515 = vpack.c.bf16 %v3507, %v3499
    %v3516 = vpack.c.bf16 %v3508, %v3500
    %v3517 = vpack.c.bf16 %v3509, %v3501
    %v3518 = vld [vmem:[%s73] sm:$0xf]
    %v3519 = vld [vmem:[%s73 + $0x4] sm:$0xf]
    %v3520 = vld [vmem:[%s73 + $0x8] sm:$0xf]
    %v3521 = vld [vmem:[%s73 + $0xc] sm:$0xf]
    %v3522 = vld [vmem:[%s73 + $0x10] sm:$0xf]
    %v3523 = vld [vmem:[%s73 + $0x14] sm:$0xf]
    %v3524 = vld [vmem:[%s73 + $0x18] sm:$0xf]
    %v3525 = vld [vmem:[%s73 + $0x1c] sm:$0xf]
    %v3526 = vld [vmem:[%s73 + $0x20] sm:$0xf]
    %v3527 = vld [vmem:[%s73 + $0x24] sm:$0xf]
    %v3528 = vld [vmem:[%s73 + $0x28] sm:$0xf]
    %v3529 = vld [vmem:[%s73 + $0x2c] sm:$0xf]
    %v3530 = vld [vmem:[%s73 + $0x30] sm:$0xf]
    %v3531 = vld [vmem:[%s73 + $0x34] sm:$0xf]
    %v3532 = vld [vmem:[%s73 + $0x38] sm:$0xf]
    %v3533 = vld [vmem:[%s73 + $0x3c] sm:$0xf]
    %v3534 = vld [vmem:[%s73 + $0x40] sm:$0xf]
    %v3535 = vld [vmem:[%s73 + $0x44] sm:$0xf]
    %v3536 = vld [vmem:[%s73 + $0x48] sm:$0xf]
    %v3537 = vld [vmem:[%s73 + $0x4c] sm:$0xf]
    %v3538 = vld [vmem:[%s73 + $0x50] sm:$0xf]
    %v3539 = vld [vmem:[%s73 + $0x54] sm:$0xf]
    %v3540 = vld [vmem:[%s73 + $0x58] sm:$0xf]
    %v3541 = vld [vmem:[%s73 + $0x5c] sm:$0xf]
    %v3542 = vld [vmem:[%s73 + $0x60] sm:$0xf]
    %v3543 = vld [vmem:[%s73 + $0x64] sm:$0xf]
    %v3544 = vld [vmem:[%s73 + $0x68] sm:$0xf]
    %v3545 = vld [vmem:[%s73 + $0x6c] sm:$0xf]
    %v3546 = vld [vmem:[%s73 + $0x70] sm:$0xf]
    %v3547 = vld [vmem:[%s73 + $0x74] sm:$0xf]
    %v3548 = vld [vmem:[%s73 + $0x78] sm:$0xf]
    %v3549 = vld [vmem:[%s73 + $0x7c] sm:$0xf]
    %v3550 = vld [vmem:[%s73 + $0x80] sm:$0xf]
    %v3551 = vld [vmem:[%s73 + $0x84] sm:$0xf]
    %v3552 = vld [vmem:[%s73 + $0x88] sm:$0xf]
    %v3553 = vld [vmem:[%s73 + $0x8c] sm:$0xf]
    %v3554 = vld [vmem:[%s73 + $0x90] sm:$0xf]
    %v3555 = vld [vmem:[%s73 + $0x94] sm:$0xf]
    %v3556 = vld [vmem:[%s73 + $0x98] sm:$0xf]
    %v3557 = vld [vmem:[%s73 + $0x9c] sm:$0xf]
    %v3558 = vld [vmem:[%s73 + $0xa0] sm:$0xf]
    %v3559 = vld [vmem:[%s73 + $0xa4] sm:$0xf]
    %v3560 = vld [vmem:[%s73 + $0xa8] sm:$0xf]
    %v3561 = vld [vmem:[%s73 + $0xac] sm:$0xf]
    %v3562 = vld [vmem:[%s73 + $0xb0] sm:$0xf]
    %v3563 = vld [vmem:[%s73 + $0xb4] sm:$0xf]
    %v3564 = vld [vmem:[%s73 + $0xb8] sm:$0xf]
    %v3565 = vld [vmem:[%s73 + $0xbc] sm:$0xf]
    %v3566 = vld [vmem:[%s73 + $0xc0] sm:$0xf]
    %v3567 = vld [vmem:[%s73 + $0xc4] sm:$0xf]
    %v3568 = vld [vmem:[%s73 + $0xc8] sm:$0xf]
    %v3569 = vld [vmem:[%s73 + $0xcc] sm:$0xf]
    %v3570 = vld [vmem:[%s73 + $0xd0] sm:$0xf]
    %v3571 = vld [vmem:[%s73 + $0xd4] sm:$0xf]
    %v3572 = vld [vmem:[%s73 + $0xd8] sm:$0xf]
    %v3573 = vld [vmem:[%s73 + $0xdc] sm:$0xf]
    %v3574 = vld [vmem:[%s73 + $0xe0] sm:$0xf]
    %v3575 = vld [vmem:[%s73 + $0xe4] sm:$0xf]
    %v3576 = vld [vmem:[%s73 + $0xe8] sm:$0xf]
    %v3577 = vld [vmem:[%s73 + $0xec] sm:$0xf]
    %v3578 = vld [vmem:[%s73 + $0xf0] sm:$0xf]
    %v3579 = vld [vmem:[%s73 + $0xf4] sm:$0xf]
    %v3580 = vld [vmem:[%s73 + $0xf8] sm:$0xf]
    %v3581 = vld [vmem:[%s73 + $0xfc] sm:$0xf]
    %v3582 = vld [vmem:[%s73 + $0x100] sm:$0xf]
    %v3583 = vld [vmem:[%s73 + $0x104] sm:$0xf]
    %v3584 = vld [vmem:[%s73 + $0x108] sm:$0xf]
    %v3585 = vld [vmem:[%s73 + $0x10c] sm:$0xf]
    %v3586 = vld [vmem:[%s73 + $0x110] sm:$0xf]
    %v3587 = vld [vmem:[%s73 + $0x114] sm:$0xf]
    %v3588 = vld [vmem:[%s73 + $0x118] sm:$0xf]
    %v3589 = vld [vmem:[%s73 + $0x11c] sm:$0xf]
    %v3590 = vld [vmem:[%s73 + $0x120] sm:$0xf]
    %v3591 = vld [vmem:[%s73 + $0x124] sm:$0xf]
    %v3592 = vld [vmem:[%s73 + $0x128] sm:$0xf]
    %v3593 = vld [vmem:[%s73 + $0x12c] sm:$0xf]
    %v3594 = vld [vmem:[%s73 + $0x130] sm:$0xf]
    %v3595 = vld [vmem:[%s73 + $0x134] sm:$0xf]
    %v3596 = vld [vmem:[%s73 + $0x138] sm:$0xf]
    %v3597 = vld [vmem:[%s73 + $0x13c] sm:$0xf]
    %v3598 = vld [vmem:[%s73 + $0x140] sm:$0xf]
    %v3599 = vld [vmem:[%s73 + $0x144] sm:$0xf]
    %v3600 = vld [vmem:[%s73 + $0x148] sm:$0xf]
    %v3601 = vld [vmem:[%s73 + $0x14c] sm:$0xf]
    %v3602 = vld [vmem:[%s73 + $0x150] sm:$0xf]
    %v3603 = vld [vmem:[%s73 + $0x154] sm:$0xf]
    %v3604 = vld [vmem:[%s73 + $0x158] sm:$0xf]
    %v3605 = vld [vmem:[%s73 + $0x15c] sm:$0xf]
    %v3606 = vld [vmem:[%s73 + $0x160] sm:$0xf]
    %v3607 = vld [vmem:[%s73 + $0x164] sm:$0xf]
    %v3608 = vld [vmem:[%s73 + $0x168] sm:$0xf]
    %v3609 = vld [vmem:[%s73 + $0x16c] sm:$0xf]
    %v3610 = vld [vmem:[%s73 + $0x170] sm:$0xf]
    %v3611 = vld [vmem:[%s73 + $0x174] sm:$0xf]
    %v3612 = vld [vmem:[%s73 + $0x178] sm:$0xf]
    %v3613 = vld [vmem:[%s73 + $0x17c] sm:$0xf]
    %v3614 = vld [vmem:[%s73 + $0x180] sm:$0xf]
    %v3615 = vld [vmem:[%s73 + $0x184] sm:$0xf]
    %v3616 = vld [vmem:[%s73 + $0x188] sm:$0xf]
    %v3617 = vld [vmem:[%s73 + $0x18c] sm:$0xf]
    %v3618 = vld [vmem:[%s73 + $0x190] sm:$0xf]
    %v3619 = vld [vmem:[%s73 + $0x194] sm:$0xf]
    %v3620 = vld [vmem:[%s73 + $0x198] sm:$0xf]
    %v3621 = vld [vmem:[%s73 + $0x19c] sm:$0xf]
    %v3622 = vld [vmem:[%s73 + $0x1a0] sm:$0xf]
    %v3623 = vld [vmem:[%s73 + $0x1a4] sm:$0xf]
    %v3624 = vld [vmem:[%s73 + $0x1a8] sm:$0xf]
    %v3625 = vld [vmem:[%s73 + $0x1ac] sm:$0xf]
    %v3626 = vld [vmem:[%s73 + $0x1b0] sm:$0xf]
    %v3627 = vld [vmem:[%s73 + $0x1b4] sm:$0xf]
    %v3628 = vld [vmem:[%s73 + $0x1b8] sm:$0xf]
    %v3629 = vld [vmem:[%s73 + $0x1bc] sm:$0xf]
    %v3630 = vld [vmem:[%s73 + $0x1c0] sm:$0xf]
    %v3631 = vld [vmem:[%s73 + $0x1c4] sm:$0xf]
    %v3632 = vld [vmem:[%s73 + $0x1c8] sm:$0xf]
    %v3633 = vld [vmem:[%s73 + $0x1cc] sm:$0xf]
    %v3634 = vld [vmem:[%s73 + $0x1d0] sm:$0xf]
    %v3635 = vld [vmem:[%s73 + $0x1d4] sm:$0xf]
    %v3636 = vld [vmem:[%s73 + $0x1d8] sm:$0xf]
    %v3637 = vld [vmem:[%s73 + $0x1dc] sm:$0xf]
    %v3638 = vld [vmem:[%s73 + $0x1e0] sm:$0xf]
    %v3639 = vld [vmem:[%s73 + $0x1e4] sm:$0xf]
    %v3640 = vld [vmem:[%s73 + $0x1e8] sm:$0xf]
    %v3641 = vld [vmem:[%s73 + $0x1ec] sm:$0xf]
    %v3642 = vld [vmem:[%s73 + $0x1f0] sm:$0xf]
    %v3643 = vld [vmem:[%s73 + $0x1f4] sm:$0xf]
    %v3644 = vld [vmem:[%s73 + $0x1f8] sm:$0xf]
    %v3645 = vld [vmem:[%s73 + $0x1fc] sm:$0xf]
    %v3646 = vld [vmem:[%s75] sm:$0x1]
    %v3648 = vlaneseq
    %v3649 = vshrl.u32 %v3648, 7
    %v3650 = vsub.s32 0, %v3649
    %v3651 = vrot.slane %v3646, %v3650
    %v3781 = vunpack.c.l.b16 %v3518
    %v3782 = vunpack.c.l.b16 %v3519
    %v3783 = vunpack.c.l.b16 %v3520
    %v3784 = vunpack.c.l.b16 %v3521
    %v3785 = vunpack.c.l.b16 %v3522
    %v3786 = vunpack.c.l.b16 %v3523
    %v3787 = vunpack.c.l.b16 %v3524
    %v3788 = vunpack.c.l.b16 %v3525
    %v3789 = vunpack.c.l.b16 %v3526
    %v3790 = vunpack.c.l.b16 %v3527
    %v3791 = vunpack.c.l.b16 %v3528
    %v3792 = vunpack.c.l.b16 %v3529
    %v3793 = vunpack.c.l.b16 %v3530
    %v3794 = vunpack.c.l.b16 %v3531
    %v3795 = vunpack.c.l.b16 %v3532
    %v3796 = vunpack.c.l.b16 %v3533
    %v3797 = vunpack.c.l.b16 %v3534
    %v3798 = vunpack.c.l.b16 %v3535
    %v3799 = vunpack.c.l.b16 %v3536
    %v3800 = vunpack.c.l.b16 %v3537
    %v3801 = vunpack.c.l.b16 %v3538
    %v3802 = vunpack.c.l.b16 %v3539
    %v3803 = vunpack.c.l.b16 %v3540
    %v3804 = vunpack.c.l.b16 %v3541
    %v3805 = vunpack.c.l.b16 %v3542
    %v3806 = vunpack.c.l.b16 %v3543
    %v3807 = vunpack.c.l.b16 %v3544
    %v3808 = vunpack.c.l.b16 %v3545
    %v3809 = vunpack.c.l.b16 %v3546
    %v3810 = vunpack.c.l.b16 %v3547
    %v3811 = vunpack.c.l.b16 %v3548
    %v3812 = vunpack.c.l.b16 %v3549
    %v3813 = vunpack.c.l.b16 %v3550
    %v3814 = vunpack.c.l.b16 %v3551
    %v3815 = vunpack.c.l.b16 %v3552
    %v3816 = vunpack.c.l.b16 %v3553
    %v3817 = vunpack.c.l.b16 %v3554
    %v3818 = vunpack.c.l.b16 %v3555
    %v3819 = vunpack.c.l.b16 %v3556
    %v3820 = vunpack.c.l.b16 %v3557
    %v3821 = vunpack.c.l.b16 %v3558
    %v3822 = vunpack.c.l.b16 %v3559
    %v3823 = vunpack.c.l.b16 %v3560
    %v3824 = vunpack.c.l.b16 %v3561
    %v3825 = vunpack.c.l.b16 %v3562
    %v3826 = vunpack.c.l.b16 %v3563
    %v3827 = vunpack.c.l.b16 %v3564
    %v3828 = vunpack.c.l.b16 %v3565
    %v3829 = vunpack.c.l.b16 %v3566
    %v3830 = vunpack.c.l.b16 %v3567
    %v3831 = vunpack.c.l.b16 %v3568
    %v3832 = vunpack.c.l.b16 %v3569
    %v3833 = vunpack.c.l.b16 %v3570
    %v3834 = vunpack.c.l.b16 %v3571
    %v3835 = vunpack.c.l.b16 %v3572
    %v3836 = vunpack.c.l.b16 %v3573
    %v3837 = vunpack.c.l.b16 %v3574
    %v3838 = vunpack.c.l.b16 %v3575
    %v3839 = vunpack.c.l.b16 %v3576
    %v3840 = vunpack.c.l.b16 %v3577
    %v3841 = vunpack.c.l.b16 %v3578
    %v3842 = vunpack.c.l.b16 %v3579
    %v3843 = vunpack.c.l.b16 %v3580
    %v3844 = vunpack.c.l.b16 %v3581
    %v3845 = vunpack.c.l.b16 %v3582
    %v3846 = vunpack.c.l.b16 %v3583
    %v3847 = vunpack.c.l.b16 %v3584
    %v3848 = vunpack.c.l.b16 %v3585
    %v3849 = vunpack.c.l.b16 %v3586
    %v3850 = vunpack.c.l.b16 %v3587
    %v3851 = vunpack.c.l.b16 %v3588
    %v3852 = vunpack.c.l.b16 %v3589
    %v3853 = vunpack.c.l.b16 %v3590
    %v3854 = vunpack.c.l.b16 %v3591
    %v3855 = vunpack.c.l.b16 %v3592
    %v3856 = vunpack.c.l.b16 %v3593
    %v3857 = vunpack.c.l.b16 %v3594
    %v3858 = vunpack.c.l.b16 %v3595
    %v3859 = vunpack.c.l.b16 %v3596
    %v3860 = vunpack.c.l.b16 %v3597
    %v3861 = vunpack.c.l.b16 %v3598
    %v3862 = vunpack.c.l.b16 %v3599
    %v3863 = vunpack.c.l.b16 %v3600
    %v3864 = vunpack.c.l.b16 %v3601
    %v3865 = vunpack.c.l.b16 %v3602
    %v3866 = vunpack.c.l.b16 %v3603
    %v3867 = vunpack.c.l.b16 %v3604
    %v3868 = vunpack.c.l.b16 %v3605
    %v3869 = vunpack.c.l.b16 %v3606
    %v3870 = vunpack.c.l.b16 %v3607
    %v3871 = vunpack.c.l.b16 %v3608
    %v3872 = vunpack.c.l.b16 %v3609
    %v3873 = vunpack.c.l.b16 %v3610
    %v3874 = vunpack.c.l.b16 %v3611
    %v3875 = vunpack.c.l.b16 %v3612
    %v3876 = vunpack.c.l.b16 %v3613
    %v3877 = vunpack.c.l.b16 %v3614
    %v3878 = vunpack.c.l.b16 %v3615
    %v3879 = vunpack.c.l.b16 %v3616
    %v3880 = vunpack.c.l.b16 %v3617
    %v3881 = vunpack.c.l.b16 %v3618
    %v3882 = vunpack.c.l.b16 %v3619
    %v3883 = vunpack.c.l.b16 %v3620
    %v3884 = vunpack.c.l.b16 %v3621
    %v3885 = vunpack.c.l.b16 %v3622
    %v3886 = vunpack.c.l.b16 %v3623
    %v3887 = vunpack.c.l.b16 %v3624
    %v3888 = vunpack.c.l.b16 %v3625
    %v3889 = vunpack.c.l.b16 %v3626
    %v3890 = vunpack.c.l.b16 %v3627
    %v3891 = vunpack.c.l.b16 %v3628
    %v3892 = vunpack.c.l.b16 %v3629
    %v3893 = vunpack.c.l.b16 %v3630
    %v3894 = vunpack.c.l.b16 %v3631
    %v3895 = vunpack.c.l.b16 %v3632
    %v3896 = vunpack.c.l.b16 %v3633
    %v3897 = vunpack.c.l.b16 %v3634
    %v3898 = vunpack.c.l.b16 %v3635
    %v3899 = vunpack.c.l.b16 %v3636
    %v3900 = vunpack.c.l.b16 %v3637
    %v3901 = vunpack.c.l.b16 %v3638
    %v3902 = vunpack.c.l.b16 %v3639
    %v3903 = vunpack.c.l.b16 %v3640
    %v3904 = vunpack.c.l.b16 %v3641
    %v3905 = vunpack.c.l.b16 %v3642
    %v3906 = vunpack.c.l.b16 %v3643
    %v3907 = vunpack.c.l.b16 %v3644
    %v3908 = vunpack.c.l.b16 %v3645
    %v3909 = vpack.c.b16 %v3782, %v3781
    %v3910 = vpack.c.b16 %v3784, %v3783
    %v3911 = vpack.c.b16 %v3786, %v3785
    %v3912 = vpack.c.b16 %v3788, %v3787
    %v3913 = vpack.c.b16 %v3790, %v3789
    %v3914 = vpack.c.b16 %v3792, %v3791
    %v3915 = vpack.c.b16 %v3794, %v3793
    %v3916 = vpack.c.b16 %v3796, %v3795
    %v3917 = vpack.c.b16 %v3798, %v3797
    %v3918 = vpack.c.b16 %v3800, %v3799
    %v3919 = vpack.c.b16 %v3802, %v3801
    %v3920 = vpack.c.b16 %v3804, %v3803
    %v3921 = vpack.c.b16 %v3806, %v3805
    %v3922 = vpack.c.b16 %v3808, %v3807
    %v3923 = vpack.c.b16 %v3810, %v3809
    %v3924 = vpack.c.b16 %v3812, %v3811
    %v3925 = vpack.c.b16 %v3814, %v3813
    %v3926 = vpack.c.b16 %v3816, %v3815
    %v3927 = vpack.c.b16 %v3818, %v3817
    %v3928 = vpack.c.b16 %v3820, %v3819
    %v3929 = vpack.c.b16 %v3822, %v3821
    %v3930 = vpack.c.b16 %v3824, %v3823
    %v3931 = vpack.c.b16 %v3826, %v3825
    %v3932 = vpack.c.b16 %v3828, %v3827
    %v3933 = vpack.c.b16 %v3830, %v3829
    %v3934 = vpack.c.b16 %v3832, %v3831
    %v3935 = vpack.c.b16 %v3834, %v3833
    %v3936 = vpack.c.b16 %v3836, %v3835
    %v3937 = vpack.c.b16 %v3838, %v3837
    %v3938 = vpack.c.b16 %v3840, %v3839
    %v3939 = vpack.c.b16 %v3842, %v3841
    %v3940 = vpack.c.b16 %v3844, %v3843
    %v3941 = vpack.c.b16 %v3846, %v3845
    %v3942 = vpack.c.b16 %v3848, %v3847
    %v3943 = vpack.c.b16 %v3850, %v3849
    %v3944 = vpack.c.b16 %v3852, %v3851
    %v3945 = vpack.c.b16 %v3854, %v3853
    %v3946 = vpack.c.b16 %v3856, %v3855
    %v3947 = vpack.c.b16 %v3858, %v3857
    %v3948 = vpack.c.b16 %v3860, %v3859
    %v3949 = vpack.c.b16 %v3862, %v3861
    %v3950 = vpack.c.b16 %v3864, %v3863
    %v3951 = vpack.c.b16 %v3866, %v3865
    %v3952 = vpack.c.b16 %v3868, %v3867
    %v3953 = vpack.c.b16 %v3870, %v3869
    %v3954 = vpack.c.b16 %v3872, %v3871
    %v3955 = vpack.c.b16 %v3874, %v3873
    %v3956 = vpack.c.b16 %v3876, %v3875
    %v3957 = vpack.c.b16 %v3878, %v3877
    %v3958 = vpack.c.b16 %v3880, %v3879
    %v3959 = vpack.c.b16 %v3882, %v3881
    %v3960 = vpack.c.b16 %v3884, %v3883
    %v3961 = vpack.c.b16 %v3886, %v3885
    %v3962 = vpack.c.b16 %v3888, %v3887
    %v3963 = vpack.c.b16 %v3890, %v3889
    %v3964 = vpack.c.b16 %v3892, %v3891
    %v3965 = vpack.c.b16 %v3894, %v3893
    %v3966 = vpack.c.b16 %v3896, %v3895
    %v3967 = vpack.c.b16 %v3898, %v3897
    %v3968 = vpack.c.b16 %v3900, %v3899
    %v3969 = vpack.c.b16 %v3902, %v3901
    %v3970 = vpack.c.b16 %v3904, %v3903
    %v3971 = vpack.c.b16 %v3906, %v3905
    %v3972 = vpack.c.b16 %v3908, %v3907
    %4037 = vmatprep.subr.bf16.mxu0 0
    %4038 = vmatpush1.bf16.msra.mxu0 %v3916
    %4039 = vmatprep.subr.bf16.mxu0 0
    %4040 = vmatpush1.bf16.msra.mxu0 %v3915
    %4041 = vmatprep.subr.bf16.mxu0 0
    %4042 = vmatpush1.bf16.msra.mxu0 %v3914
    %4043 = vmatprep.subr.bf16.mxu0 0
    %4044 = vmatpush1.bf16.msra.mxu0 %v3913
    %4045 = vmatprep.subr.bf16.mxu0 0
    %4046 = vmatpush1.bf16.msra.mxu0 %v3912
    %4047 = vmatprep.subr.bf16.mxu0 0
    %4048 = vmatpush1.bf16.msra.mxu0 %v3911
    %4049 = vmatprep.subr.bf16.mxu0 0
    %4050 = vmatpush1.bf16.msra.mxu0 %v3910
    %4051 = vmatprep.subr.bf16.mxu0 0
    %4052 = vmatpush1.bf16.msra.mxu0 %v3909
    %4053 = vmatprep.subr.bf16.mxu0 0
    %4054 = vmatpush2.bf16.msra.mxu0 %v3924
    %4055 = vmatprep.subr.bf16.mxu0 0
    %4056 = vmatpush2.bf16.msra.mxu0 %v3923
    %4057 = vmatprep.subr.bf16.mxu0 0
    %4058 = vmatpush2.bf16.msra.mxu0 %v3922
    %4059 = vmatprep.subr.bf16.mxu0 0
    %4060 = vmatpush2.bf16.msra.mxu0 %v3921
    %4061 = vmatprep.subr.bf16.mxu0 0
    %4062 = vmatpush2.bf16.msra.mxu0 %v3920
    %4063 = vmatprep.subr.bf16.mxu0 0
    %4064 = vmatpush2.bf16.msra.mxu0 %v3919
    %4065 = vmatprep.subr.bf16.mxu0 0
    %4066 = vmatpush2.bf16.msra.mxu0 %v3918
    %4067 = vmatprep.subr.bf16.mxu0 0
    %4068 = vmatpush2.bf16.msra.mxu0 %v3917
    %4069 = vmatprep.mubr.bf16.mxu0 %v3511
    %4070 = vmatmul.mubr.bf16.gmra.mxu0 %v3510
    %v4071 = vpop.f32.mrf.mxu0
    %v4072 = vadd.f32 %v3651, %v4071
    %v4073 = vpop.f32.mrf.mxu0
    %v4074 = vpop.f32.mrf.mxu0
    %v4075 = vadd.f32 %v3651, %v4074
    %v4076 = vpop.f32.mrf.mxu0
    %4077 = vdwg.mxu0
    %4078 = vmatprep.subr.bf16.mxu0 0
    %4079 = vmatpush1.bf16.msra.mxu0 %v3932
    %4080 = vmatprep.subr.bf16.mxu0 0
    %4081 = vmatpush1.bf16.msra.mxu0 %v3931
    %4082 = vmatprep.subr.bf16.mxu0 0
    %4083 = vmatpush1.bf16.msra.mxu0 %v3930
    %4084 = vmatprep.subr.bf16.mxu0 0
    %4085 = vmatpush1.bf16.msra.mxu0 %v3929
    %4086 = vmatprep.subr.bf16.mxu0 0
    %4087 = vmatpush1.bf16.msra.mxu0 %v3928
    %4088 = vmatprep.subr.bf16.mxu0 0
    %4089 = vmatpush1.bf16.msra.mxu0 %v3927
    %4090 = vmatprep.subr.bf16.mxu0 0
    %4091 = vmatpush1.bf16.msra.mxu0 %v3926
    %4092 = vmatprep.subr.bf16.mxu0 0
    %4093 = vmatpush1.bf16.msra.mxu0 %v3925
    %4094 = vmatprep.subr.bf16.mxu0 0
    %4095 = vmatpush2.bf16.msra.mxu0 %v3940
    %4096 = vmatprep.subr.bf16.mxu0 0
    %4097 = vmatpush2.bf16.msra.mxu0 %v3939
    %4098 = vmatprep.subr.bf16.mxu0 0
    %4099 = vmatpush2.bf16.msra.mxu0 %v3938
    %4100 = vmatprep.subr.bf16.mxu0 0
    %4101 = vmatpush2.bf16.msra.mxu0 %v3937
    %4102 = vmatprep.subr.bf16.mxu0 0
    %4103 = vmatpush2.bf16.msra.mxu0 %v3936
    %4104 = vmatprep.subr.bf16.mxu0 0
    %4105 = vmatpush2.bf16.msra.mxu0 %v3935
    %4106 = vmatprep.subr.bf16.mxu0 0
    %4107 = vmatpush2.bf16.msra.mxu0 %v3934
    %4108 = vmatprep.subr.bf16.mxu0 0
    %4109 = vmatpush2.bf16.msra.mxu0 %v3933
    %4110 = vmatprep.mubr.bf16.mxu0 %v3513
    %4111 = vmatmul.mubr.bf16.gmra.mxu0 %v3512
    %v4112 = vpop.f32.mrf.mxu0
    %v4113 = vadd.f32 %v4072, %v4112
    %v4114 = vpop.f32.mrf.mxu0
    %v4115 = vpop.f32.mrf.mxu0
    %v4116 = vadd.f32 %v4075, %v4115
    %v4117 = vpop.f32.mrf.mxu0
    %4118 = vdwg.mxu0
    %4119 = vmatprep.subr.bf16.mxu0 0
    %4120 = vmatpush1.bf16.msra.mxu0 %v3948
    %4121 = vmatprep.subr.bf16.mxu0 0
    %4122 = vmatpush1.bf16.msra.mxu0 %v3947
    %4123 = vmatprep.subr.bf16.mxu0 0
    %4124 = vmatpush1.bf16.msra.mxu0 %v3946
    %4125 = vmatprep.subr.bf16.mxu0 0
    %4126 = vmatpush1.bf16.msra.mxu0 %v3945
    %4127 = vmatprep.subr.bf16.mxu0 0
    %4128 = vmatpush1.bf16.msra.mxu0 %v3944
    %4129 = vmatprep.subr.bf16.mxu0 0
    %4130 = vmatpush1.bf16.msra.mxu0 %v3943
    %4131 = vmatprep.subr.bf16.mxu0 0
    %4132 = vmatpush1.bf16.msra.mxu0 %v3942
    %4133 = vmatprep.subr.bf16.mxu0 0
    %4134 = vmatpush1.bf16.msra.mxu0 %v3941
    %4135 = vmatprep.subr.bf16.mxu0 0
    %4136 = vmatpush2.bf16.msra.mxu0 %v3956
    %4137 = vmatprep.subr.bf16.mxu0 0
    %4138 = vmatpush2.bf16.msra.mxu0 %v3955
    %4139 = vmatprep.subr.bf16.mxu0 0
    %4140 = vmatpush2.bf16.msra.mxu0 %v3954
    %4141 = vmatprep.subr.bf16.mxu0 0
    %4142 = vmatpush2.bf16.msra.mxu0 %v3953
    %4143 = vmatprep.subr.bf16.mxu0 0
    %4144 = vmatpush2.bf16.msra.mxu0 %v3952
    %4145 = vmatprep.subr.bf16.mxu0 0
    %4146 = vmatpush2.bf16.msra.mxu0 %v3951
    %4147 = vmatprep.subr.bf16.mxu0 0
    %4148 = vmatpush2.bf16.msra.mxu0 %v3950
    %4149 = vmatprep.subr.bf16.mxu0 0
    %4150 = vmatpush2.bf16.msra.mxu0 %v3949
    %4151 = vmatprep.mubr.bf16.mxu0 %v3515
    %4152 = vmatmul.mubr.bf16.gmra.mxu0 %v3514
    %v4153 = vpop.f32.mrf.mxu0
    %v4154 = vadd.f32 %v4113, %v4153
    %v4155 = vpop.f32.mrf.mxu0
    %v4156 = vpop.f32.mrf.mxu0
    %v4157 = vadd.f32 %v4116, %v4156
    %v4158 = vpop.f32.mrf.mxu0
    %4159 = vdwg.mxu0
    %4160 = vmatprep.subr.bf16.mxu0 0
    %4161 = vmatpush1.bf16.msra.mxu0 %v3964
    %4162 = vmatprep.subr.bf16.mxu0 0
    %4163 = vmatpush1.bf16.msra.mxu0 %v3963
    %4164 = vmatprep.subr.bf16.mxu0 0
    %4165 = vmatpush1.bf16.msra.mxu0 %v3962
    %4166 = vmatprep.subr.bf16.mxu0 0
    %4167 = vmatpush1.bf16.msra.mxu0 %v3961
    %4168 = vmatprep.subr.bf16.mxu0 0
    %4169 = vmatpush1.bf16.msra.mxu0 %v3960
    %4170 = vmatprep.subr.bf16.mxu0 0
    %4171 = vmatpush1.bf16.msra.mxu0 %v3959
    %4172 = vmatprep.subr.bf16.mxu0 0
    %4173 = vmatpush1.bf16.msra.mxu0 %v3958
    %4174 = vmatprep.subr.bf16.mxu0 0
    %4175 = vmatpush1.bf16.msra.mxu0 %v3957
    %4176 = vmatprep.subr.bf16.mxu0 0
    %4177 = vmatpush2.bf16.msra.mxu0 %v3972
    %4178 = vmatprep.subr.bf16.mxu0 0
    %4179 = vmatpush2.bf16.msra.mxu0 %v3971
    %4180 = vmatprep.subr.bf16.mxu0 0
    %4181 = vmatpush2.bf16.msra.mxu0 %v3970
    %4182 = vmatprep.subr.bf16.mxu0 0
    %4183 = vmatpush2.bf16.msra.mxu0 %v3969
    %4184 = vmatprep.subr.bf16.mxu0 0
    %4185 = vmatpush2.bf16.msra.mxu0 %v3968
    %4186 = vmatprep.subr.bf16.mxu0 0
    %4187 = vmatpush2.bf16.msra.mxu0 %v3967
    %4188 = vmatprep.subr.bf16.mxu0 0
    %4189 = vmatpush2.bf16.msra.mxu0 %v3966
    %4190 = vmatprep.subr.bf16.mxu0 0
    %4191 = vmatpush2.bf16.msra.mxu0 %v3965
    %4192 = vmatprep.mubr.bf16.mxu0 %v3517
    %4193 = vmatmul.mubr.bf16.gmra.mxu0 %v3516
    %v4194 = vpop.f32.mrf.mxu0
    %v4195 = vadd.f32 %v4154, %v4194
    %v4196 = vpop.f32.mrf.mxu0
    %v4197 = vpop.f32.mrf.mxu0
    %v4198 = vadd.f32 %v4157, %v4197
    %v4199 = vpop.f32.mrf.mxu0
    %4200 = vdwg.mxu0
    %v4201 = vadd.f32 %v3178, %v4195
    %v4202 = vadd.f32 %v3179, %v4198
    %v4203 = vld [vmem:[%s77] sm:$0x1]
    %v4204 = vmul.f32 %v4201, %v4201
    %v4205 = vmul.f32 %v4202, %v4202
    %v4206 = vsel %vm189, %v4204, 0.0
    %4207 = vadd.xlane.f32.xlu0 %v4206
    %v4208 = vpop.xlane.xlu0 %4207
    %v4209 = vsel %vm196, %v4205, 0.0
    %4210 = vadd.xlane.f32.xlu0 %v4209
    %v4211 = vpop.xlane.xlu0 %4210
    %v4212 = vmul.f32 %v4208, %v200
    %v4213 = vmul.f32 %v4211, %v200
    %v4214 = vadd.f32 %v4212, 1e-06
    %v4215 = vadd.f32 %v4213, 1e-06
    %v4216 = vrsqrt.pop %v4214
    %v4217 = vrsqrt.pop %v4215
    %v4218 = vmul.f32 %v4201, %v4216
    %v4219 = vmul.f32 %v4202, %v4217
    %v4221 = vlaneseq
    %v4222 = vshrl.u32 %v4221, 7
    %v4223 = vsub.s32 0, %v4222
    %v4224 = vrot.slane %v4203, %v4223
    %v4226 = vmul.f32 %v4218, %v4224
    %v4227 = vmul.f32 %v4219, %v4224
    %v4228 = vld [vmem:[%s79] sm:$0x1]
    %v4229 = vmul.f32 %v4226, %v4226
    %v4230 = vmul.f32 %v4227, %v4227
    %v4231 = vsel %vm189, %v4229, 0.0
    %4232 = vadd.xlane.f32.xlu0 %v4231
    %v4233 = vpop.xlane.xlu0 %4232
    %v4234 = vsel %vm196, %v4230, 0.0
    %4235 = vadd.xlane.f32.xlu0 %v4234
    %v4236 = vpop.xlane.xlu0 %4235
    %v4237 = vmul.f32 %v4233, %v200
    %v4238 = vmul.f32 %v4236, %v200
    %v4239 = vadd.f32 %v4237, 1e-06
    %v4240 = vadd.f32 %v4238, 1e-06
    %v4241 = vrsqrt.pop %v4239
    %v4242 = vrsqrt.pop %v4240
    %v4243 = vmul.f32 %v4226, %v4241
    %v4244 = vmul.f32 %v4227, %v4242
    %v4246 = vlaneseq
    %v4247 = vshrl.u32 %v4246, 7
    %v4248 = vsub.s32 0, %v4247
    %v4249 = vrot.slane %v4228, %v4248
    %v4251 = vmul.f32 %v4243, %v4249
    %v4252 = vmul.f32 %v4244, %v4249
    %v4253 = vpack.c.bf16 %v4252, %v4251
    %v4254 = vld [vmem:[%s81] sm:$0xf]
    %v4255 = vld [vmem:[%s81 + $0x4] sm:$0xf]
    %v4256 = vld [vmem:[%s81 + $0x8] sm:$0xf]
    %v4257 = vld [vmem:[%s81 + $0xc] sm:$0xf]
    %v4262 = vunpack.c.l.b16 %v4254
    %v4263 = vunpack.c.l.b16 %v4255
    %v4264 = vunpack.c.l.b16 %v4256
    %v4265 = vunpack.c.l.b16 %v4257
    %v4266 = vpack.c.b16 %v4263, %v4262
    %v4267 = vpack.c.b16 %v4265, %v4264
    %v4271 = vsel %vm189, %v4253, 0
    %4273 = vmatprep.subr.bf16.mxu0 0
    %4274 = vmatpush1.bf16.msra.mxu0 0
    %4275 = vmatprep.subr.bf16.mxu0 0
    %4276 = vmatpush1.bf16.msra.mxu0 0
    %4277 = vmatprep.subr.bf16.mxu0 0
    %4278 = vmatpush1.bf16.msra.mxu0 0
    %4279 = vmatprep.subr.bf16.mxu0 0
    %4280 = vmatpush1.bf16.msra.mxu0 0
    %4281 = vmatprep.subr.bf16.mxu0 0
    %4282 = vmatpush1.bf16.msra.mxu0 0
    %4283 = vmatprep.subr.bf16.mxu0 0
    %4284 = vmatpush1.bf16.msra.mxu0 0
    %4285 = vmatprep.subr.bf16.mxu0 0
    %4286 = vmatpush1.bf16.msra.mxu0 %v4267
    %4287 = vmatprep.subr.bf16.mxu0 0
    %4288 = vmatpush1.bf16.msra.mxu0 %v4266
    %4289 = vmatprep.subr.bf16.mxu0 0
    %4290 = vmatpush2.bf16.msra.mxu0 0
    %4291 = vmatprep.subr.bf16.mxu0 0
    %4292 = vmatpush2.bf16.msra.mxu0 0
    %4293 = vmatprep.subr.bf16.mxu0 0
    %4294 = vmatpush2.bf16.msra.mxu0 0
    %4295 = vmatprep.subr.bf16.mxu0 0
    %4296 = vmatpush2.bf16.msra.mxu0 0
    %4297 = vmatprep.subr.bf16.mxu0 0
    %4298 = vmatpush2.bf16.msra.mxu0 0
    %4299 = vmatprep.subr.bf16.mxu0 0
    %4300 = vmatpush2.bf16.msra.mxu0 0
    %4301 = vmatprep.subr.bf16.mxu0 0
    %4302 = vmatpush2.bf16.msra.mxu0 0
    %4303 = vmatprep.subr.bf16.mxu0 0
    %4304 = vmatpush2.bf16.msra.mxu0 0
    %4305 = vmatprep.mubr.bf16.mxu0 0
    %4306 = vmatmul.mubr.bf16.gmra.mxu0 %v4271
    %v4307 = vpop.f32.mrf.mxu0
    %v4308 = vadd.f32 0.0, %v4307
    %v4309 = vpop.f32.mrf.mxu0
    %v4310 = vpop.f32.mrf.mxu0
    %v4311 = vadd.f32 0.0, %v4310
    %v4312 = vpop.f32.mrf.mxu0
    %4313 = vdwg.mxu0
    %4314 = vst [vmem:[%s83] sm:$0xff] %v4308
    %4315 = vst [vmem:[%s83 + $0x8] sm:$0x3] %v4311
    %v4316 = vlaneseq
    %v4317 = vand.u32 %v4316, 127
    %vm4318 = vcmp.lt.s32.totalorder %v4317, 64
    %v4319 = vsel %vm4318, %v4308, -1e+09
    %v4320 = vsel %vm4318, %v4311, -1e+09
    %4321 = vmax.xlane.f32.xlu0 %v4319
    %v4322 = vpop.xlane.xlu0 %4321
    %vm4323 = vcmask 1041408
    %v4324 = vsel %vm4323, %v4320, -inf
    %4325 = vmax.xlane.f32.xlu0 %v4324
    %v4326 = vpop.xlane.xlu0 %4325
    %v4327 = vsub.f32 %v4319, %v4322
    %v4328 = vsub.f32 %v4320, %v4326
    %v4329 = vmul.f32 %v4327, 1.442695
    %v4330 = vpow.pop %v4329
    %v4331 = vmul.f32 %v4328, 1.442695
    %v4332 = vpow.pop %v4331
    %4333 = vadd.xlane.f32.xlu0 %v4330
    %v4334 = vpop.xlane.xlu0 %4333
    %v4335 = vsel %vm4323, %v4332, 0.0
    %4336 = vadd.xlane.f32.xlu0 %v4335
    %v4337 = vpop.xlane.xlu0 %4336
    %v4338 = vlog2.pop %v4334
    %v4339 = vmul.f32 %v4338, 0.6931472
    %v4340 = vlog2.pop %v4337
    %v4341 = vmul.f32 %v4340, 0.6931472
    %v4342 = vadd.f32 %v4322, %v4339
    %v4343 = vadd.f32 %v4326, %v4341
    %v4344 = vld [vmem:[%s11] sm:$0xff]
    %v4345 = vld [vmem:[%s11 + $0x8] sm:$0x3]
    %4346 = vset.pattern.permute.xlu0 0
    %4347 = vperm.xlu0 %4346, %v4344
    %v4348 = vpop.permute.xlu0 %4347
    %4349 = vset.pattern.permute.xlu0 0
    %4350 = vperm.xlu0 %4349, %v4345
    %v4351 = vpop.permute.xlu0 %4350
    %vm4352 = vcmp.eq.s32.totalorder %v4317, %v4348
    %vm4353 = vcmp.eq.s32.totalorder %v4317, %v4351
    %v4354 = vsel %vm4352, %v4308, 0.0
    %v4355 = vsel %vm4353, %v4311, 0.0
    %4356 = vadd.xlane.f32.xlu0 %v4354
    %v4357 = vpop.xlane.xlu0 %4356
    %v4358 = vsel %vm4323, %v4355, 0.0
    %4359 = vadd.xlane.f32.xlu0 %v4358
    %v4360 = vpop.xlane.xlu0 %4359
    %v4361 = vsub.f32 %v4342, %v4357
    %v4362 = vsub.f32 %v4343, %v4360
    %v4363 = vld [vmem:[%s13] sm:$0xff]
    %v4364 = vld [vmem:[%s13 + $0x8] sm:$0x3]
    %4365 = vxpose.xlu0.b32.start [1/16] %v4361, 128
    %4366 = vxpose.xlu0.b32.cont [2/16] %v4362, 128
    %4367 = vxpose.xlu0.b32.cont [3/16] 0.0, 128
    %4368 = vxpose.xlu0.b32.cont [4/16] 0.0, 128
    %4369 = vxpose.xlu0.b32.cont [5/16] 0.0, 128
    %4370 = vxpose.xlu0.b32.cont [6/16] 0.0, 128
    %4371 = vxpose.xlu0.b32.cont [7/16] 0.0, 128
    %4372 = vxpose.xlu0.b32.cont [8/16] 0.0, 128
    %4373 = vxpose.xlu0.b32.cont [9/16] 0.0, 128
    %4374 = vxpose.xlu0.b32.cont [10/16] 0.0, 128
    %4375 = vxpose.xlu0.b32.cont [11/16] 0.0, 128
    %4376 = vxpose.xlu0.b32.cont [12/16] 0.0, 128
    %4377 = vxpose.xlu0.b32.cont [13/16] 0.0, 128
    %4378 = vxpose.xlu0.b32.cont [14/16] 0.0, 128
    %4379 = vxpose.xlu0.b32.cont [15/16] 0.0, 128
    %4380 = vxpose.xlu0.b32.end [16/16] 0.0, 128
    %v4381 = vpop.trf.xlu0
    %v4382 = vpop.trf.xlu0
    %v4383 = vpop.trf.xlu0
    %v4384 = vpop.trf.xlu0
    %v4385 = vpop.trf.xlu0
    %v4386 = vpop.trf.xlu0
    %v4387 = vpop.trf.xlu0
    %v4388 = vpop.trf.xlu0
    %v4389 = vpop.trf.xlu0
    %v4390 = vpop.trf.xlu0
    %v4391 = vpop.trf.xlu0
    %v4392 = vpop.trf.xlu0
    %v4393 = vpop.trf.xlu0
    %v4394 = vpop.trf.xlu0
    %v4395 = vpop.trf.xlu0
    %v4396 = vpop.trf.xlu0
    %v4398 = vsel %vm2283, %v4381, 0
    %v4401 = vsel %vm4323, %v4364, 0
    %4403 = vmatprep.subr.mxu0 0.0
    %4404 = vmatpush1.msra.mxu0 0.0
    %4405 = vmatprep.subr.mxu0 0.0
    %4406 = vmatpush1.msra.mxu0 0.0
    %4407 = vmatprep.subr.mxu0 0.0
    %4408 = vmatpush1.msra.mxu0 0.0
    %4409 = vmatprep.subr.mxu0 0.0
    %4410 = vmatpush1.msra.mxu0 0.0
    %4411 = vmatprep.subr.mxu0 0.0
    %4412 = vmatpush1.msra.mxu0 0.0
    %4413 = vmatprep.subr.mxu0 0.0
    %4414 = vmatpush1.msra.mxu0 0.0
    %4415 = vmatprep.subr.mxu0 0.0
    %4416 = vmatpush1.msra.mxu0 0.0
    %4417 = vmatprep.subr.mxu0 0.0
    %4418 = vmatpush1.msra.mxu0 0.0
    %4419 = vmatprep.subr.mxu0 0.0
    %4420 = vmatpush1.msra.mxu0 0.0
    %4421 = vmatprep.subr.mxu0 0.0
    %4422 = vmatpush1.msra.mxu0 0.0
    %4423 = vmatprep.subr.mxu0 0.0
    %4424 = vmatpush1.msra.mxu0 0.0
    %4425 = vmatprep.subr.mxu0 0.0
    %4426 = vmatpush1.msra.mxu0 0.0
    %4427 = vmatprep.subr.mxu0 0.0
    %4428 = vmatpush1.msra.mxu0 0.0
    %4429 = vmatprep.subr.mxu0 0.0
    %4430 = vmatpush1.msra.mxu0 0.0
    %4431 = vmatprep.subr.mxu0 0.0
    %4432 = vmatpush1.msra.mxu0 %v4401
    %4433 = vmatprep.subr.mxu0 0.0
    %4434 = vmatpush1.msra.mxu0 %v4363
    %4435 = vmatprep.subr.mxu0 0.0
    %4436 = vmatpush2.msra.mxu0 0.0
    %4437 = vmatprep.subr.mxu0 0.0
    %4438 = vmatpush2.msra.mxu0 0.0
    %4439 = vmatprep.subr.mxu0 0.0
    %4440 = vmatpush2.msra.mxu0 0.0
    %4441 = vmatprep.subr.mxu0 0.0
    %4442 = vmatpush2.msra.mxu0 0.0
    %4443 = vmatprep.subr.mxu0 0.0
    %4444 = vmatpush2.msra.mxu0 0.0
    %4445 = vmatprep.subr.mxu0 0.0
    %4446 = vmatpush2.msra.mxu0 0.0
    %4447 = vmatprep.subr.mxu0 0.0
    %4448 = vmatpush2.msra.mxu0 0.0
    %4449 = vmatprep.subr.mxu0 0.0
    %4450 = vmatpush2.msra.mxu0 0.0
    %4451 = vmatprep.subr.mxu0 0.0
    %4452 = vmatpush2.msra.mxu0 0.0
    %4453 = vmatprep.subr.mxu0 0.0
    %4454 = vmatpush2.msra.mxu0 0.0
    %4455 = vmatprep.subr.mxu0 0.0
    %4456 = vmatpush2.msra.mxu0 0.0
    %4457 = vmatprep.subr.mxu0 0.0
    %4458 = vmatpush2.msra.mxu0 0.0
    %4459 = vmatprep.subr.mxu0 0.0
    %4460 = vmatpush2.msra.mxu0 0.0
    %4461 = vmatprep.subr.mxu0 0.0
    %4462 = vmatpush2.msra.mxu0 0.0
    %4463 = vmatprep.subr.mxu0 0.0
    %4464 = vmatpush2.msra.mxu0 0.0
    %4465 = vmatprep.subr.mxu0 0.0
    %4466 = vmatpush2.msra.mxu0 0.0
    %4467 = vmatprep.mubr.f32.mxu0 0.0
    %4468 = vmatmul.mubr.f32.gmra.mxu0 %v4398
    %v4469 = vpop.f32.mrf.mxu0
    %v4470 = vadd.f32 0.0, %v4469
    %v4471 = vpop.f32.mrf.mxu0
    %4472 = vdwg.mxu0
    %vm4473 = vcmask 0
    %4474 = vst.msk [vmem:[#allocation2] sm:$0x1] %vm4473, %v4470
    // Predicated region
    $region166: #{fwd.1} parent=1 // pred_check
      _
    $region167: #{fwd.1} parent=1 // pred_check_branch
      %4476 = sbr.rel (0) target = $region169
    $region168: #{fwd.1} parent=1 // pred_region
      _
    $region169: #{fwd.1} parent=1 // pred_fallthru
      _
    // Predicated region
    $region170: #{fwd.1} parent=1 // pred_check
      _
    $region171: #{fwd.1} parent=1 // pred_check_branch
      %4478 = sbr.rel (0) target = $region173
    $region172: #{fwd.1} parent=1 // pred_region
      %s4480 = ssub.s32 16, 16
      %4481 = vsyncadd [#allocation3], %s4480
      %s4483 = sshll.u32 [#allocation2], 4
      %s4484 = int_to_ptr.vmem [resolvable:$true] %s4483
      %4486 = dma.vmem_to_hbm [thread:$0]  %s4484, 16, %s85, [#allocation3]
    $region173: #{fwd.1} parent=1 // pred_fallthru
      _
    // Predicated region
    $region174: #{fwd.1} parent=1 // pred_check
      _
    $region175: #{fwd.1} parent=1 // pred_check_branch
      %4488 = sbr.rel (0) target = $region177
    $region176: #{fwd.1} parent=1 // pred_region
      _
    $region177: #{fwd.1} parent=1 // pred_fallthru
      _
    // Predicated region
    $region178: #{fwd.1} parent=1 // pred_check
      _
    $region179: #{fwd.1} parent=1 // pred_check_branch
      %4490 = sbr.rel (0) target = $region181
    $region180: #{fwd.1} parent=1 // pred_region
      %4491 = dma.done [#allocation3], 16
    $region181: #{fwd.1} parent=1 // pred_fallthru
      _
    %4492 = vsyncpa [#allocation3], 1

</llo_original>
